<compile_context>
chip_gen: v7x
topology: tpu7x:2x2x1
jax: 0.10.0
libtpu: 0.0.40
codegen_flags: <defaults>
</compile_context>

<pallas_src>
import functools

import jax
import jax.numpy as jnp
from jax.experimental import pallas as pl
from jax.experimental.pallas import tpu as pltpu


# ----------------------------------------------------------------------------
# Fused kernel: all LSTM layers + decoder in one invocation (no grid).
# ----------------------------------------------------------------------------
def make_fused_lstm_kernel(T, B, H, num_layers):
    def kernel(*args):
        # ---- unpack refs ----------------------------------------------------
        seq_ref = args[0]                       # SMEM (T, B) int32 token ids
        h0_ref = args[1]                        # (L, B, H) initial hidden
        c0_ref = args[2]                        # (L, B, H) initial cell
        lw = args[3:3 + 3 * num_layers]         # per layer: w_ih, w_hh, bias
        wdec_ref = args[3 + 3 * num_layers]     # (H, O)
        bdec_ref = args[4 + 3 * num_layers]     # (1, O)
        logits_ref = args[5 + 3 * num_layers]   # (T*B, O)
        hN_ref = args[6 + 3 * num_layers]       # (L, B, H)
        cN_ref = args[7 + 3 * num_layers]       # (L, B, H)
        gx_scr = args[8 + 3 * num_layers]       # VMEM (T*B, 4H) scratch
        x_scr = args[9 + 3 * num_layers]        # VMEM (T*B, H)  scratch

        def run_layer(layer, gx):
            """Sequential LSTM recurrence for one layer.

            gx: (T*B, 4H) precomputed input projection (bias already folded in).
            Writes per-step hidden states into x_scr and final (h, c) into
            hN_ref / cN_ref at index `layer`.
            """
            whh = lw[3 * layer + 1][...]                       # (H, 4H)
            h = h0_ref[layer, :, :]                            # (B, H)
            c = c0_ref[layer, :, :]                            # (B, H)
            for t in range(T):                                 # unrolled (T static)
                gates = gx[t * B:(t + 1) * B, :] + jnp.dot(
                    h, whh, preferred_element_type=jnp.float32)    # (B, 4H)
                sig = jax.nn.sigmoid(gates)                    # full 4H lanes
                tng = jnp.tanh(gates)
                i_g = sig[:, 0 * H:1 * H]
                f_g = sig[:, 1 * H:2 * H]
                g_g = tng[:, 2 * H:3 * H]
                o_g = sig[:, 3 * H:4 * H]
                c = f_g * c + i_g * g_g
                h = o_g * jnp.tanh(c)
                x_scr[t * B:(t + 1) * B, :] = h                # layer output
            hN_ref[layer, :, :] = h
            cN_ref[layer, :, :] = c

        # ---- layer 0: one_hot(tokens) @ W_ih == row gather of W_ih ----------
        w_ih0 = lw[0]
        for t in range(T):
            for b in range(B):
                tok = seq_ref[t, b]                            # scalar from SMEM
                idx = t * B + b
                gx_scr[idx:idx + 1, :] = w_ih0[pl.ds(tok, 1), :]
        gx = gx_scr[...] + lw[2][...]                          # + (b_ih + b_hh)
        run_layer(0, gx)

        # ---- layers 1..L-1: batched input projection hoisted out of the loop
        for layer in range(1, num_layers):
            w_ih = lw[3 * layer][...]
            bias = lw[3 * layer + 2][...]
            gx = jnp.dot(x_scr[...], w_ih,
                         preferred_element_type=jnp.float32) + bias
            run_layer(layer, gx)

        # ---- decoder: Linear(H, O) over all T*B rows at once ----------------
        logits_ref[...] = (jnp.dot(x_scr[...], wdec_ref[...],
                                   preferred_element_type=jnp.float32)
                           + bdec_ref[...])

    return kernel


def fused_lstm_forward(input_seq, h0, c0, params, output_size):
    T, B = input_seq.shape
    layers = params["layers"]
    num_layers = len(layers)
    H = layers[0]["w_hh"].shape[0]

    ins = [input_seq.astype(jnp.int32), h0, c0]
    in_specs = [pl.BlockSpec(memory_space=pltpu.MemorySpace.SMEM),
                pl.BlockSpec(memory_space=pltpu.MemorySpace.VMEM),
                pl.BlockSpec(memory_space=pltpu.MemorySpace.VMEM)]
    for lp in layers:
        ins += [lp["w_ih"], lp["w_hh"], lp["bias"]]
        in_specs += [pl.BlockSpec(memory_space=pltpu.MemorySpace.VMEM)] * 3
    ins += [params["dec_w"], params["dec_b"]]
    in_specs += [pl.BlockSpec(memory_space=pltpu.MemorySpace.VMEM)] * 2

    out_shape = (
        jax.ShapeDtypeStruct((T * B, output_size), jnp.float32),
        jax.ShapeDtypeStruct((num_layers, B, H), jnp.float32),
        jax.ShapeDtypeStruct((num_layers, B, H), jnp.float32),
    )
    out_specs = (pl.BlockSpec(memory_space=pltpu.MemorySpace.VMEM),) * 3

    logits2d, h_n, c_n = pl.pallas_call(
        make_fused_lstm_kernel(T, B, H, num_layers),
        out_shape=out_shape,
        in_specs=in_specs,
        out_specs=out_specs,
        scratch_shapes=[pltpu.VMEM((T * B, 4 * H), jnp.float32),
                        pltpu.VMEM((T * B, H), jnp.float32)],
    )(*ins)
    return logits2d.reshape(T, B, output_size), (h_n, c_n)


# ----------------------------------------------------------------------------
# Module wrapper (parameter setup + glue).
# ----------------------------------------------------------------------------
def init_params(key, input_size, output_size, hidden_size, num_layers):
    scale = 1.0 / jnp.sqrt(hidden_size)
    params = {"layers": []}
    for layer in range(num_layers):
        d_in = input_size if layer == 0 else hidden_size
        key, k1, k2, k3, k4 = jax.random.split(key, 5)
        w_ih = jax.random.uniform(k1, (d_in, 4 * hidden_size),
                                  jnp.float32, -scale, scale)
        w_hh = jax.random.uniform(k2, (hidden_size, 4 * hidden_size),
                                  jnp.float32, -scale, scale)
        b_ih = jax.random.uniform(k3, (4 * hidden_size,),
                                  jnp.float32, -scale, scale)
        b_hh = jax.random.uniform(k4, (4 * hidden_size,),
                                  jnp.float32, -scale, scale)
        params["layers"].append(
            {"w_ih": w_ih, "w_hh": w_hh,
             "bias": (b_ih + b_hh).reshape(1, 4 * hidden_size)})
    key, k5, k6 = jax.random.split(key, 3)
    params["dec_w"] = jax.random.uniform(k5, (hidden_size, output_size),
                                         jnp.float32, -scale, scale)
    params["dec_b"] = jax.random.uniform(k6, (1, output_size),
                                         jnp.float32, -scale, scale)
    return params


@functools.partial(jax.jit, static_argnames=("input_size", "output_size"))
def my_lstm_forward(params, input_seq, internal_state, *, input_size,
                    output_size):
    # `input_size` kept only for interface parity (vocab is W_ih's leading dim);
    # one-hot + matmul is replaced by a row gather inside the kernel.
    del input_size
    h0, c0 = internal_state          # zero arrays == PyTorch internal_state=None
    logits, new_state = fused_lstm_forward(input_seq, h0, c0, params,
                                           output_size)
    return logits, new_state


# ----------------------------------------------------------------------------
# Pure-JAX reference for a numerical sanity check.
# ----------------------------------------------------------------------------
def lstm_reference(params, input_seq, h0, c0, input_size, output_size):
    T, B = input_seq.shape
    x = jax.nn.one_hot(input_seq, input_size, dtype=jnp.float32)
    h_fin, c_fin = [], []
    for l, lp in enumerate(params["layers"]):
        H = lp["w_hh"].shape[0]
        h, c = h0[l], c0[l]
        outs = []
        for t in range(T):
            gates = x[t] @ lp["w_ih"] + h @ lp["w_hh"] + lp["bias"][0]
            i = jax.nn.sigmoid(gates[:, 0 * H:1 * H])
            f = jax.nn.sigmoid(gates[:, 1 * H:2 * H])
            g = jnp.tanh(gates[:, 2 * H:3 * H])
            o = jax.nn.sigmoid(gates[:, 3 * H:4 * H])
            c = f * c + i * g
            h = o * jnp.tanh(c)
            outs.append(h)
        x = jnp.stack(outs, axis=0)
        h_fin.append(h)
        c_fin.append(c)
    logits = x.reshape(T * B, -1) @ params["dec_w"] + params["dec_b"]
    return (logits.reshape(T, B, output_size),
            (jnp.stack(h_fin, 0), jnp.stack(c_fin, 0)))


if __name__ == "__main__":
    INPUT_SIZE = 64     # vocabulary size
    OUTPUT_SIZE = 64
    HIDDEN_SIZE = 32
    NUM_LAYERS = 3
    T, B = 8, 2

    key = jax.random.PRNGKey(0)
    pkey, dkey = jax.random.split(key)
    params = init_params(pkey, INPUT_SIZE, OUTPUT_SIZE, HIDDEN_SIZE, NUM_LAYERS)
    input_seq = jax.random.randint(dkey, (T, B), 0, INPUT_SIZE, dtype=jnp.int32)

    # First call: PyTorch internal_state=None -> zero (h, c).
    zeros_state = (jnp.zeros((NUM_LAYERS, B, HIDDEN_SIZE), jnp.float32),
                   jnp.zeros((NUM_LAYERS, B, HIDDEN_SIZE), jnp.float32))

    logits, (h_n, c_n) = my_lstm_forward(
        params, input_seq, zeros_state,
        input_size=INPUT_SIZE, output_size=OUTPUT_SIZE)
    jax.block_until_ready(logits)
    jax.block_until_ready(h_n)
    jax.block_until_ready(c_n)

    assert logits.shape == (T, B, OUTPUT_SIZE)
    assert h_n.shape == (NUM_LAYERS, B, HIDDEN_SIZE)
    assert c_n.shape == (NUM_LAYERS, B, HIDDEN_SIZE)

    # Numerical check against a pure-JAX reference (zero initial state).
    ref_logits, (ref_h, ref_c) = lstm_reference(
        params, input_seq, zeros_state[0], zeros_state[1],
        INPUT_SIZE, OUTPUT_SIZE)
    assert jnp.allclose(logits, ref_logits, atol=1e-3, rtol=1e-3)
    assert jnp.allclose(h_n, ref_h, atol=1e-3, rtol=1e-3)
    assert jnp.allclose(c_n, ref_c, atol=1e-3, rtol=1e-3)

    # Second call carrying the returned internal_state (stateful module usage).
    logits2, (h_n2, c_n2) = my_lstm_forward(
        params, input_seq, (h_n, c_n),
        input_size=INPUT_SIZE, output_size=OUTPUT_SIZE)
    jax.block_until_ready(logits2)
    ref_logits2, _ = lstm_reference(params, input_seq, h_n, c_n,
                                    INPUT_SIZE, OUTPUT_SIZE)
    assert jnp.allclose(logits2, ref_logits2, atol=1e-3, rtol=1e-3)

    print("KERNEL_OK")
</pallas_src>

<mosaic_0001>
module attributes {stable_mosaic.version = 11 : i64} {
  func.func @kernel(%arg0: memref<8x2xi32, #tpu.memory_space<smem>>, %arg1: memref<3x2x32xf32, #tpu.memory_space<vmem>>, %arg2: memref<3x2x32xf32, #tpu.memory_space<vmem>>, %arg3: memref<64x128xf32, #tpu.memory_space<vmem>>, %arg4: memref<32x128xf32, #tpu.memory_space<vmem>>, %arg5: memref<1x128xf32, #tpu.memory_space<vmem>>, %arg6: memref<32x128xf32, #tpu.memory_space<vmem>>, %arg7: memref<32x128xf32, #tpu.memory_space<vmem>>, %arg8: memref<1x128xf32, #tpu.memory_space<vmem>>, %arg9: memref<32x128xf32, #tpu.memory_space<vmem>>, %arg10: memref<32x128xf32, #tpu.memory_space<vmem>>, %arg11: memref<1x128xf32, #tpu.memory_space<vmem>>, %arg12: memref<32x64xf32, #tpu.memory_space<vmem>>, %arg13: memref<1x64xf32, #tpu.memory_space<vmem>>, %arg14: memref<16x64xf32, #tpu.memory_space<vmem>>, %arg15: memref<3x2x32xf32, #tpu.memory_space<vmem>>, %arg16: memref<3x2x32xf32, #tpu.memory_space<vmem>>, %arg17: memref<16x128xf32, #tpu.memory_space<vmem>>, %arg18: memref<16x32xf32, #tpu.memory_space<vmem>>) attributes {dimension_semantics = [], scalar_prefetch = 0 : i64, scratch_operands = 2 : i64, tpu.core_type = #tpu.core_type<tc>} {
    %c0 = arith.constant 0 : index
    %c0_0 = arith.constant 0 : index
    %0 = memref.load %arg0[%c0, %c0_0] : memref<8x2xi32, #tpu.memory_space<smem>>
    %1 = arith.index_cast %0 : i32 to index
    %c0_1 = arith.constant 0 : index
    %2 = vector.load %arg3[%1, %c0_1] : memref<64x128xf32, #tpu.memory_space<vmem>>, vector<1x128xf32>
    %c0_2 = arith.constant 0 : index
    %c0_3 = arith.constant 0 : index
    %3 = vector.load %arg17[%c0_2, %c0_3] : memref<16x128xf32, #tpu.memory_space<vmem>>, vector<1x128xf32>
    tpu.vector_store %arg17[%c0_2, %c0_3], %2 {strides = array<i32>} : memref<16x128xf32, #tpu.memory_space<vmem>>, vector<1x128xf32>,
    %c0_4 = arith.constant 0 : index
    %c1 = arith.constant 1 : index
    %4 = memref.load %arg0[%c0_4, %c1] : memref<8x2xi32, #tpu.memory_space<smem>>
    %5 = arith.index_cast %4 : i32 to index
    %c0_5 = arith.constant 0 : index
    %6 = vector.load %arg3[%5, %c0_5] : memref<64x128xf32, #tpu.memory_space<vmem>>, vector<1x128xf32>
    %c1_6 = arith.constant 1 : index
    %c0_7 = arith.constant 0 : index
    %7 = vector.load %arg17[%c1_6, %c0_7] : memref<16x128xf32, #tpu.memory_space<vmem>>, vector<1x128xf32>
    tpu.vector_store %arg17[%c1_6, %c0_7], %6 {strides = array<i32>} : memref<16x128xf32, #tpu.memory_space<vmem>>, vector<1x128xf32>,
    %c1_8 = arith.constant 1 : index
    %c0_9 = arith.constant 0 : index
    %8 = memref.load %arg0[%c1_8, %c0_9] : memref<8x2xi32, #tpu.memory_space<smem>>
    %9 = arith.index_cast %8 : i32 to index
    %c0_10 = arith.constant 0 : index
    %10 = vector.load %arg3[%9, %c0_10] : memref<64x128xf32, #tpu.memory_space<vmem>>, vector<1x128xf32>
    %c2 = arith.constant 2 : index
    %c0_11 = arith.constant 0 : index
    %11 = vector.load %arg17[%c2, %c0_11] : memref<16x128xf32, #tpu.memory_space<vmem>>, vector<1x128xf32>
    tpu.vector_store %arg17[%c2, %c0_11], %10 {strides = array<i32>} : memref<16x128xf32, #tpu.memory_space<vmem>>, vector<1x128xf32>,
    %c1_12 = arith.constant 1 : index
    %c1_13 = arith.constant 1 : index
    %12 = memref.load %arg0[%c1_12, %c1_13] : memref<8x2xi32, #tpu.memory_space<smem>>
    %13 = arith.index_cast %12 : i32 to index
    %c0_14 = arith.constant 0 : index
    %14 = vector.load %arg3[%13, %c0_14] : memref<64x128xf32, #tpu.memory_space<vmem>>, vector<1x128xf32>
    %c3 = arith.constant 3 : index
    %c0_15 = arith.constant 0 : index
    %15 = vector.load %arg17[%c3, %c0_15] : memref<16x128xf32, #tpu.memory_space<vmem>>, vector<1x128xf32>
    tpu.vector_store %arg17[%c3, %c0_15], %14 {strides = array<i32>} : memref<16x128xf32, #tpu.memory_space<vmem>>, vector<1x128xf32>,
    %c2_16 = arith.constant 2 : index
    %c0_17 = arith.constant 0 : index
    %16 = memref.load %arg0[%c2_16, %c0_17] : memref<8x2xi32, #tpu.memory_space<smem>>
    %17 = arith.index_cast %16 : i32 to index
    %c0_18 = arith.constant 0 : index
    %18 = vector.load %arg3[%17, %c0_18] : memref<64x128xf32, #tpu.memory_space<vmem>>, vector<1x128xf32>
    %c4 = arith.constant 4 : index
    %c0_19 = arith.constant 0 : index
    %19 = vector.load %arg17[%c4, %c0_19] : memref<16x128xf32, #tpu.memory_space<vmem>>, vector<1x128xf32>
    tpu.vector_store %arg17[%c4, %c0_19], %18 {strides = array<i32>} : memref<16x128xf32, #tpu.memory_space<vmem>>, vector<1x128xf32>,
    %c2_20 = arith.constant 2 : index
    %c1_21 = arith.constant 1 : index
    %20 = memref.load %arg0[%c2_20, %c1_21] : memref<8x2xi32, #tpu.memory_space<smem>>
    %21 = arith.index_cast %20 : i32 to index
    %c0_22 = arith.constant 0 : index
    %22 = vector.load %arg3[%21, %c0_22] : memref<64x128xf32, #tpu.memory_space<vmem>>, vector<1x128xf32>
    %c5 = arith.constant 5 : index
    %c0_23 = arith.constant 0 : index
    %23 = vector.load %arg17[%c5, %c0_23] : memref<16x128xf32, #tpu.memory_space<vmem>>, vector<1x128xf32>
    tpu.vector_store %arg17[%c5, %c0_23], %22 {strides = array<i32>} : memref<16x128xf32, #tpu.memory_space<vmem>>, vector<1x128xf32>,
    %c3_24 = arith.constant 3 : index
    %c0_25 = arith.constant 0 : index
    %24 = memref.load %arg0[%c3_24, %c0_25] : memref<8x2xi32, #tpu.memory_space<smem>>
    %25 = arith.index_cast %24 : i32 to index
    %c0_26 = arith.constant 0 : index
    %26 = vector.load %arg3[%25, %c0_26] : memref<64x128xf32, #tpu.memory_space<vmem>>, vector<1x128xf32>
    %c6 = arith.constant 6 : index
    %c0_27 = arith.constant 0 : index
    %27 = vector.load %arg17[%c6, %c0_27] : memref<16x128xf32, #tpu.memory_space<vmem>>, vector<1x128xf32>
    tpu.vector_store %arg17[%c6, %c0_27], %26 {strides = array<i32>} : memref<16x128xf32, #tpu.memory_space<vmem>>, vector<1x128xf32>,
    %c3_28 = arith.constant 3 : index
    %c1_29 = arith.constant 1 : index
    %28 = memref.load %arg0[%c3_28, %c1_29] : memref<8x2xi32, #tpu.memory_space<smem>>
    %29 = arith.index_cast %28 : i32 to index
    %c0_30 = arith.constant 0 : index
    %30 = vector.load %arg3[%29, %c0_30] : memref<64x128xf32, #tpu.memory_space<vmem>>, vector<1x128xf32>
    %c7 = arith.constant 7 : index
    %c0_31 = arith.constant 0 : index
    %31 = vector.load %arg17[%c7, %c0_31] : memref<16x128xf32, #tpu.memory_space<vmem>>, vector<1x128xf32>
    tpu.vector_store %arg17[%c7, %c0_31], %30 {strides = array<i32>} : memref<16x128xf32, #tpu.memory_space<vmem>>, vector<1x128xf32>,
    %c4_32 = arith.constant 4 : index
    %c0_33 = arith.constant 0 : index
    %32 = memref.load %arg0[%c4_32, %c0_33] : memref<8x2xi32, #tpu.memory_space<smem>>
    %33 = arith.index_cast %32 : i32 to index
    %c0_34 = arith.constant 0 : index
    %34 = vector.load %arg3[%33, %c0_34] : memref<64x128xf32, #tpu.memory_space<vmem>>, vector<1x128xf32>
    %c8 = arith.constant 8 : index
    %c0_35 = arith.constant 0 : index
    %35 = vector.load %arg17[%c8, %c0_35] : memref<16x128xf32, #tpu.memory_space<vmem>>, vector<1x128xf32>
    tpu.vector_store %arg17[%c8, %c0_35], %34 {strides = array<i32>} : memref<16x128xf32, #tpu.memory_space<vmem>>, vector<1x128xf32>,
    %c4_36 = arith.constant 4 : index
    %c1_37 = arith.constant 1 : index
    %36 = memref.load %arg0[%c4_36, %c1_37] : memref<8x2xi32, #tpu.memory_space<smem>>
    %37 = arith.index_cast %36 : i32 to index
    %c0_38 = arith.constant 0 : index
    %38 = vector.load %arg3[%37, %c0_38] : memref<64x128xf32, #tpu.memory_space<vmem>>, vector<1x128xf32>
    %c9 = arith.constant 9 : index
    %c0_39 = arith.constant 0 : index
    %39 = vector.load %arg17[%c9, %c0_39] : memref<16x128xf32, #tpu.memory_space<vmem>>, vector<1x128xf32>
    tpu.vector_store %arg17[%c9, %c0_39], %38 {strides = array<i32>} : memref<16x128xf32, #tpu.memory_space<vmem>>, vector<1x128xf32>,
    %c5_40 = arith.constant 5 : index
    %c0_41 = arith.constant 0 : index
    %40 = memref.load %arg0[%c5_40, %c0_41] : memref<8x2xi32, #tpu.memory_space<smem>>
    %41 = arith.index_cast %40 : i32 to index
    %c0_42 = arith.constant 0 : index
    %42 = vector.load %arg3[%41, %c0_42] : memref<64x128xf32, #tpu.memory_space<vmem>>, vector<1x128xf32>
    %c10 = arith.constant 10 : index
    %c0_43 = arith.constant 0 : index
    %43 = vector.load %arg17[%c10, %c0_43] : memref<16x128xf32, #tpu.memory_space<vmem>>, vector<1x128xf32>
    tpu.vector_store %arg17[%c10, %c0_43], %42 {strides = array<i32>} : memref<16x128xf32, #tpu.memory_space<vmem>>, vector<1x128xf32>,
    %c5_44 = arith.constant 5 : index
    %c1_45 = arith.constant 1 : index
    %44 = memref.load %arg0[%c5_44, %c1_45] : memref<8x2xi32, #tpu.memory_space<smem>>
    %45 = arith.index_cast %44 : i32 to index
    %c0_46 = arith.constant 0 : index
    %46 = vector.load %arg3[%45, %c0_46] : memref<64x128xf32, #tpu.memory_space<vmem>>, vector<1x128xf32>
    %c11 = arith.constant 11 : index
    %c0_47 = arith.constant 0 : index
    %47 = vector.load %arg17[%c11, %c0_47] : memref<16x128xf32, #tpu.memory_space<vmem>>, vector<1x128xf32>
    tpu.vector_store %arg17[%c11, %c0_47], %46 {strides = array<i32>} : memref<16x128xf32, #tpu.memory_space<vmem>>, vector<1x128xf32>,
    %c6_48 = arith.constant 6 : index
    %c0_49 = arith.constant 0 : index
    %48 = memref.load %arg0[%c6_48, %c0_49] : memref<8x2xi32, #tpu.memory_space<smem>>
    %49 = arith.index_cast %48 : i32 to index
    %c0_50 = arith.constant 0 : index
    %50 = vector.load %arg3[%49, %c0_50] : memref<64x128xf32, #tpu.memory_space<vmem>>, vector<1x128xf32>
    %c12 = arith.constant 12 : index
    %c0_51 = arith.constant 0 : index
    %51 = vector.load %arg17[%c12, %c0_51] : memref<16x128xf32, #tpu.memory_space<vmem>>, vector<1x128xf32>
    tpu.vector_store %arg17[%c12, %c0_51], %50 {strides = array<i32>} : memref<16x128xf32, #tpu.memory_space<vmem>>, vector<1x128xf32>,
    %c6_52 = arith.constant 6 : index
    %c1_53 = arith.constant 1 : index
    %52 = memref.load %arg0[%c6_52, %c1_53] : memref<8x2xi32, #tpu.memory_space<smem>>
    %53 = arith.index_cast %52 : i32 to index
    %c0_54 = arith.constant 0 : index
    %54 = vector.load %arg3[%53, %c0_54] : memref<64x128xf32, #tpu.memory_space<vmem>>, vector<1x128xf32>
    %c13 = arith.constant 13 : index
    %c0_55 = arith.constant 0 : index
    %55 = vector.load %arg17[%c13, %c0_55] : memref<16x128xf32, #tpu.memory_space<vmem>>, vector<1x128xf32>
    tpu.vector_store %arg17[%c13, %c0_55], %54 {strides = array<i32>} : memref<16x128xf32, #tpu.memory_space<vmem>>, vector<1x128xf32>,
    %c7_56 = arith.constant 7 : index
    %c0_57 = arith.constant 0 : index
    %56 = memref.load %arg0[%c7_56, %c0_57] : memref<8x2xi32, #tpu.memory_space<smem>>
    %57 = arith.index_cast %56 : i32 to index
    %c0_58 = arith.constant 0 : index
    %58 = vector.load %arg3[%57, %c0_58] : memref<64x128xf32, #tpu.memory_space<vmem>>, vector<1x128xf32>
    %c14 = arith.constant 14 : index
    %c0_59 = arith.constant 0 : index
    %59 = vector.load %arg17[%c14, %c0_59] : memref<16x128xf32, #tpu.memory_space<vmem>>, vector<1x128xf32>
    tpu.vector_store %arg17[%c14, %c0_59], %58 {strides = array<i32>} : memref<16x128xf32, #tpu.memory_space<vmem>>, vector<1x128xf32>,
    %c7_60 = arith.constant 7 : index
    %c1_61 = arith.constant 1 : index
    %60 = memref.load %arg0[%c7_60, %c1_61] : memref<8x2xi32, #tpu.memory_space<smem>>
    %61 = arith.index_cast %60 : i32 to index
    %c0_62 = arith.constant 0 : index
    %62 = vector.load %arg3[%61, %c0_62] : memref<64x128xf32, #tpu.memory_space<vmem>>, vector<1x128xf32>
    %c15 = arith.constant 15 : index
    %c0_63 = arith.constant 0 : index
    %63 = vector.load %arg17[%c15, %c0_63] : memref<16x128xf32, #tpu.memory_space<vmem>>, vector<1x128xf32>
    tpu.vector_store %arg17[%c15, %c0_63], %62 {strides = array<i32>} : memref<16x128xf32, #tpu.memory_space<vmem>>, vector<1x128xf32>,
    %c0_64 = arith.constant 0 : index
    %c0_65 = arith.constant 0 : index
    %64 = vector.load %arg17[%c0_64, %c0_65] : memref<16x128xf32, #tpu.memory_space<vmem>>, vector<16x128xf32>
    %c0_66 = arith.constant 0 : index
    %c0_67 = arith.constant 0 : index
    %65 = vector.load %arg5[%c0_66, %c0_67] : memref<1x128xf32, #tpu.memory_space<vmem>>, vector<1x128xf32>
    %66 = vector.broadcast %65 : vector<1x128xf32> to vector<16x128xf32>
    %67 = arith.addf %64, %66 : vector<16x128xf32>
    %c0_68 = arith.constant 0 : index
    %c0_69 = arith.constant 0 : index
    %68 = vector.load %arg4[%c0_68, %c0_69] : memref<32x128xf32, #tpu.memory_space<vmem>>, vector<32x128xf32>
    %c0_70 = arith.constant 0 : index
    %c0_71 = arith.constant 0 : index
    %c0_72 = arith.constant 0 : index
    %69 = vector.load %arg1[%c0_70, %c0_71, %c0_72] : memref<3x2x32xf32, #tpu.memory_space<vmem>>, vector<1x2x32xf32>
    %70 = vector.shape_cast %69 : vector<1x2x32xf32> to vector<2x32xf32>
    %c0_73 = arith.constant 0 : index
    %c0_74 = arith.constant 0 : index
    %c0_75 = arith.constant 0 : index
    %71 = vector.load %arg2[%c0_73, %c0_74, %c0_75] : memref<3x2x32xf32, #tpu.memory_space<vmem>>, vector<1x2x32xf32>
    %72 = vector.shape_cast %71 : vector<1x2x32xf32> to vector<2x32xf32>
    %73 = vector.extract_strided_slice %67 {offsets = [0, 0], sizes = [2, 128], strides = [1, 1]} : vector<16x128xf32> to vector<2x128xf32>
    %cst = arith.constant dense<0.000000e+00> : vector<2x128xf32>
    %74 = tpu.matmul %70, %68, %cst {dimension_numbers = #tpu.dot_dimension_numbers<[1], [0], [0], [1], [0, 0, 1, 1], [], []>} : vector<2x32xf32>, vector<32x128xf32>, vector<2x128xf32> -> vector<2x128xf32>
    %75 = arith.addf %73, %74 : vector<2x128xf32>
    %76 = arith.negf %75 : vector<2x128xf32>
    %77 = math.exp %76 : vector<2x128xf32>
    %cst_76 = arith.constant 1.000000e+00 : f32
    %78 = vector.broadcast %cst_76 : f32 to vector<2x128xf32>
    %79 = arith.addf %78, %77 : vector<2x128xf32>
    %80 = arith.divf %78, %79 : vector<2x128xf32>
    %81 = math.tanh %75 : vector<2x128xf32>
    %82 = vector.extract_strided_slice %80 {offsets = [0, 0], sizes = [2, 32], strides = [1, 1]} : vector<2x128xf32> to vector<2x32xf32>
    %83 = vector.extract_strided_slice %80 {offsets = [0, 32], sizes = [2, 32], strides = [1, 1]} : vector<2x128xf32> to vector<2x32xf32>
    %84 = vector.extract_strided_slice %81 {offsets = [0, 64], sizes = [2, 32], strides = [1, 1]} : vector<2x128xf32> to vector<2x32xf32>
    %85 = vector.extract_strided_slice %80 {offsets = [0, 96], sizes = [2, 32], strides = [1, 1]} : vector<2x128xf32> to vector<2x32xf32>
    %86 = arith.mulf %83, %72 : vector<2x32xf32>
    %87 = arith.mulf %82, %84 : vector<2x32xf32>
    %88 = arith.addf %86, %87 : vector<2x32xf32>
    %89 = math.tanh %88 : vector<2x32xf32>
    %90 = arith.mulf %85, %89 : vector<2x32xf32>
    %c0_77 = arith.constant 0 : index
    %c0_78 = arith.constant 0 : index
    %91 = vector.load %arg18[%c0_77, %c0_78] : memref<16x32xf32, #tpu.memory_space<vmem>>, vector<2x32xf32>
    tpu.vector_store %arg18[%c0_77, %c0_78], %90 {strides = array<i32>} : memref<16x32xf32, #tpu.memory_space<vmem>>, vector<2x32xf32>,
    %92 = vector.extract_strided_slice %67 {offsets = [2, 0], sizes = [2, 128], strides = [1, 1]} : vector<16x128xf32> to vector<2x128xf32>
    %cst_79 = arith.constant dense<0.000000e+00> : vector<2x128xf32>
    %93 = tpu.matmul %90, %68, %cst_79 {dimension_numbers = #tpu.dot_dimension_numbers<[1], [0], [0], [1], [0, 0, 1, 1], [], []>} : vector<2x32xf32>, vector<32x128xf32>, vector<2x128xf32> -> vector<2x128xf32>
    %94 = arith.addf %92, %93 : vector<2x128xf32>
    %95 = arith.negf %94 : vector<2x128xf32>
    %96 = math.exp %95 : vector<2x128xf32>
    %cst_80 = arith.constant 1.000000e+00 : f32
    %97 = vector.broadcast %cst_80 : f32 to vector<2x128xf32>
    %98 = arith.addf %97, %96 : vector<2x128xf32>
    %99 = arith.divf %97, %98 : vector<2x128xf32>
    %100 = math.tanh %94 : vector<2x128xf32>
    %101 = vector.extract_strided_slice %99 {offsets = [0, 0], sizes = [2, 32], strides = [1, 1]} : vector<2x128xf32> to vector<2x32xf32>
    %102 = vector.extract_strided_slice %99 {offsets = [0, 32], sizes = [2, 32], strides = [1, 1]} : vector<2x128xf32> to vector<2x32xf32>
    %103 = vector.extract_strided_slice %100 {offsets = [0, 64], sizes = [2, 32], strides = [1, 1]} : vector<2x128xf32> to vector<2x32xf32>
    %104 = vector.extract_strided_slice %99 {offsets = [0, 96], sizes = [2, 32], strides = [1, 1]} : vector<2x128xf32> to vector<2x32xf32>
    %105 = arith.mulf %102, %88 : vector<2x32xf32>
    %106 = arith.mulf %101, %103 : vector<2x32xf32>
    %107 = arith.addf %105, %106 : vector<2x32xf32>
    %108 = math.tanh %107 : vector<2x32xf32>
    %109 = arith.mulf %104, %108 : vector<2x32xf32>
    %c2_81 = arith.constant 2 : index
    %c0_82 = arith.constant 0 : index
    %110 = vector.load %arg18[%c2_81, %c0_82] : memref<16x32xf32, #tpu.memory_space<vmem>>, vector<2x32xf32>
    tpu.vector_store %arg18[%c2_81, %c0_82], %109 {strides = array<i32>} : memref<16x32xf32, #tpu.memory_space<vmem>>, vector<2x32xf32>,
    %111 = vector.extract_strided_slice %67 {offsets = [4, 0], sizes = [2, 128], strides = [1, 1]} : vector<16x128xf32> to vector<2x128xf32>
    %cst_83 = arith.constant dense<0.000000e+00> : vector<2x128xf32>
    %112 = tpu.matmul %109, %68, %cst_83 {dimension_numbers = #tpu.dot_dimension_numbers<[1], [0], [0], [1], [0, 0, 1, 1], [], []>} : vector<2x32xf32>, vector<32x128xf32>, vector<2x128xf32> -> vector<2x128xf32>
    %113 = arith.addf %111, %112 : vector<2x128xf32>
    %114 = arith.negf %113 : vector<2x128xf32>
    %115 = math.exp %114 : vector<2x128xf32>
    %cst_84 = arith.constant 1.000000e+00 : f32
    %116 = vector.broadcast %cst_84 : f32 to vector<2x128xf32>
    %117 = arith.addf %116, %115 : vector<2x128xf32>
    %118 = arith.divf %116, %117 : vector<2x128xf32>
    %119 = math.tanh %113 : vector<2x128xf32>
    %120 = vector.extract_strided_slice %118 {offsets = [0, 0], sizes = [2, 32], strides = [1, 1]} : vector<2x128xf32> to vector<2x32xf32>
    %121 = vector.extract_strided_slice %118 {offsets = [0, 32], sizes = [2, 32], strides = [1, 1]} : vector<2x128xf32> to vector<2x32xf32>
    %122 = vector.extract_strided_slice %119 {offsets = [0, 64], sizes = [2, 32], strides = [1, 1]} : vector<2x128xf32> to vector<2x32xf32>
    %123 = vector.extract_strided_slice %118 {offsets = [0, 96], sizes = [2, 32], strides = [1, 1]} : vector<2x128xf32> to vector<2x32xf32>
    %124 = arith.mulf %121, %107 : vector<2x32xf32>
    %125 = arith.mulf %120, %122 : vector<2x32xf32>
    %126 = arith.addf %124, %125 : vector<2x32xf32>
    %127 = math.tanh %126 : vector<2x32xf32>
    %128 = arith.mulf %123, %127 : vector<2x32xf32>
    %c4_85 = arith.constant 4 : index
    %c0_86 = arith.constant 0 : index
    %129 = vector.load %arg18[%c4_85, %c0_86] : memref<16x32xf32, #tpu.memory_space<vmem>>, vector<2x32xf32>
    tpu.vector_store %arg18[%c4_85, %c0_86], %128 {strides = array<i32>} : memref<16x32xf32, #tpu.memory_space<vmem>>, vector<2x32xf32>,
    %130 = vector.extract_strided_slice %67 {offsets = [6, 0], sizes = [2, 128], strides = [1, 1]} : vector<16x128xf32> to vector<2x128xf32>
    %cst_87 = arith.constant dense<0.000000e+00> : vector<2x128xf32>
    %131 = tpu.matmul %128, %68, %cst_87 {dimension_numbers = #tpu.dot_dimension_numbers<[1], [0], [0], [1], [0, 0, 1, 1], [], []>} : vector<2x32xf32>, vector<32x128xf32>, vector<2x128xf32> -> vector<2x128xf32>
    %132 = arith.addf %130, %131 : vector<2x128xf32>
    %133 = arith.negf %132 : vector<2x128xf32>
    %134 = math.exp %133 : vector<2x128xf32>
    %cst_88 = arith.constant 1.000000e+00 : f32
    %135 = vector.broadcast %cst_88 : f32 to vector<2x128xf32>
    %136 = arith.addf %135, %134 : vector<2x128xf32>
    %137 = arith.divf %135, %136 : vector<2x128xf32>
    %138 = math.tanh %132 : vector<2x128xf32>
    %139 = vector.extract_strided_slice %137 {offsets = [0, 0], sizes = [2, 32], strides = [1, 1]} : vector<2x128xf32> to vector<2x32xf32>
    %140 = vector.extract_strided_slice %137 {offsets = [0, 32], sizes = [2, 32], strides = [1, 1]} : vector<2x128xf32> to vector<2x32xf32>
    %141 = vector.extract_strided_slice %138 {offsets = [0, 64], sizes = [2, 32], strides = [1, 1]} : vector<2x128xf32> to vector<2x32xf32>
    %142 = vector.extract_strided_slice %137 {offsets = [0, 96], sizes = [2, 32], strides = [1, 1]} : vector<2x128xf32> to vector<2x32xf32>
    %143 = arith.mulf %140, %126 : vector<2x32xf32>
    %144 = arith.mulf %139, %141 : vector<2x32xf32>
    %145 = arith.addf %143, %144 : vector<2x32xf32>
    %146 = math.tanh %145 : vector<2x32xf32>
    %147 = arith.mulf %142, %146 : vector<2x32xf32>
    %c6_89 = arith.constant 6 : index
    %c0_90 = arith.constant 0 : index
    %148 = vector.load %arg18[%c6_89, %c0_90] : memref<16x32xf32, #tpu.memory_space<vmem>>, vector<2x32xf32>
    tpu.vector_store %arg18[%c6_89, %c0_90], %147 {strides = array<i32>} : memref<16x32xf32, #tpu.memory_space<vmem>>, vector<2x32xf32>,
    %149 = vector.extract_strided_slice %67 {offsets = [8, 0], sizes = [2, 128], strides = [1, 1]} : vector<16x128xf32> to vector<2x128xf32>
    %cst_91 = arith.constant dense<0.000000e+00> : vector<2x128xf32>
    %150 = tpu.matmul %147, %68, %cst_91 {dimension_numbers = #tpu.dot_dimension_numbers<[1], [0], [0], [1], [0, 0, 1, 1], [], []>} : vector<2x32xf32>, vector<32x128xf32>, vector<2x128xf32> -> vector<2x128xf32>
    %151 = arith.addf %149, %150 : vector<2x128xf32>
    %152 = arith.negf %151 : vector<2x128xf32>
    %153 = math.exp %152 : vector<2x128xf32>
    %cst_92 = arith.constant 1.000000e+00 : f32
    %154 = vector.broadcast %cst_92 : f32 to vector<2x128xf32>
    %155 = arith.addf %154, %153 : vector<2x128xf32>
    %156 = arith.divf %154, %155 : vector<2x128xf32>
    %157 = math.tanh %151 : vector<2x128xf32>
    %158 = vector.extract_strided_slice %156 {offsets = [0, 0], sizes = [2, 32], strides = [1, 1]} : vector<2x128xf32> to vector<2x32xf32>
    %159 = vector.extract_strided_slice %156 {offsets = [0, 32], sizes = [2, 32], strides = [1, 1]} : vector<2x128xf32> to vector<2x32xf32>
    %160 = vector.extract_strided_slice %157 {offsets = [0, 64], sizes = [2, 32], strides = [1, 1]} : vector<2x128xf32> to vector<2x32xf32>
    %161 = vector.extract_strided_slice %156 {offsets = [0, 96], sizes = [2, 32], strides = [1, 1]} : vector<2x128xf32> to vector<2x32xf32>
    %162 = arith.mulf %159, %145 : vector<2x32xf32>
    %163 = arith.mulf %158, %160 : vector<2x32xf32>
    %164 = arith.addf %162, %163 : vector<2x32xf32>
    %165 = math.tanh %164 : vector<2x32xf32>
    %166 = arith.mulf %161, %165 : vector<2x32xf32>
    %c8_93 = arith.constant 8 : index
    %c0_94 = arith.constant 0 : index
    %167 = vector.load %arg18[%c8_93, %c0_94] : memref<16x32xf32, #tpu.memory_space<vmem>>, vector<2x32xf32>
    tpu.vector_store %arg18[%c8_93, %c0_94], %166 {strides = array<i32>} : memref<16x32xf32, #tpu.memory_space<vmem>>, vector<2x32xf32>,
    %168 = vector.extract_strided_slice %67 {offsets = [10, 0], sizes = [2, 128], strides = [1, 1]} : vector<16x128xf32> to vector<2x128xf32>
    %cst_95 = arith.constant dense<0.000000e+00> : vector<2x128xf32>
    %169 = tpu.matmul %166, %68, %cst_95 {dimension_numbers = #tpu.dot_dimension_numbers<[1], [0], [0], [1], [0, 0, 1, 1], [], []>} : vector<2x32xf32>, vector<32x128xf32>, vector<2x128xf32> -> vector<2x128xf32>
    %170 = arith.addf %168, %169 : vector<2x128xf32>
    %171 = arith.negf %170 : vector<2x128xf32>
    %172 = math.exp %171 : vector<2x128xf32>
    %cst_96 = arith.constant 1.000000e+00 : f32
    %173 = vector.broadcast %cst_96 : f32 to vector<2x128xf32>
    %174 = arith.addf %173, %172 : vector<2x128xf32>
    %175 = arith.divf %173, %174 : vector<2x128xf32>
    %176 = math.tanh %170 : vector<2x128xf32>
    %177 = vector.extract_strided_slice %175 {offsets = [0, 0], sizes = [2, 32], strides = [1, 1]} : vector<2x128xf32> to vector<2x32xf32>
    %178 = vector.extract_strided_slice %175 {offsets = [0, 32], sizes = [2, 32], strides = [1, 1]} : vector<2x128xf32> to vector<2x32xf32>
    %179 = vector.extract_strided_slice %176 {offsets = [0, 64], sizes = [2, 32], strides = [1, 1]} : vector<2x128xf32> to vector<2x32xf32>
    %180 = vector.extract_strided_slice %175 {offsets = [0, 96], sizes = [2, 32], strides = [1, 1]} : vector<2x128xf32> to vector<2x32xf32>
    %181 = arith.mulf %178, %164 : vector<2x32xf32>
    %182 = arith.mulf %177, %179 : vector<2x32xf32>
    %183 = arith.addf %181, %182 : vector<2x32xf32>
    %184 = math.tanh %183 : vector<2x32xf32>
    %185 = arith.mulf %180, %184 : vector<2x32xf32>
    %c10_97 = arith.constant 10 : index
    %c0_98 = arith.constant 0 : index
    %186 = vector.load %arg18[%c10_97, %c0_98] : memref<16x32xf32, #tpu.memory_space<vmem>>, vector<2x32xf32>
    tpu.vector_store %arg18[%c10_97, %c0_98], %185 {strides = array<i32>} : memref<16x32xf32, #tpu.memory_space<vmem>>, vector<2x32xf32>,
    %187 = vector.extract_strided_slice %67 {offsets = [12, 0], sizes = [2, 128], strides = [1, 1]} : vector<16x128xf32> to vector<2x128xf32>
    %cst_99 = arith.constant dense<0.000000e+00> : vector<2x128xf32>
    %188 = tpu.matmul %185, %68, %cst_99 {dimension_numbers = #tpu.dot_dimension_numbers<[1], [0], [0], [1], [0, 0, 1, 1], [], []>} : vector<2x32xf32>, vector<32x128xf32>, vector<2x128xf32> -> vector<2x128xf32>
    %189 = arith.addf %187, %188 : vector<2x128xf32>
    %190 = arith.negf %189 : vector<2x128xf32>
    %191 = math.exp %190 : vector<2x128xf32>
    %cst_100 = arith.constant 1.000000e+00 : f32
    %192 = vector.broadcast %cst_100 : f32 to vector<2x128xf32>
    %193 = arith.addf %192, %191 : vector<2x128xf32>
    %194 = arith.divf %192, %193 : vector<2x128xf32>
    %195 = math.tanh %189 : vector<2x128xf32>
    %196 = vector.extract_strided_slice %194 {offsets = [0, 0], sizes = [2, 32], strides = [1, 1]} : vector<2x128xf32> to vector<2x32xf32>
    %197 = vector.extract_strided_slice %194 {offsets = [0, 32], sizes = [2, 32], strides = [1, 1]} : vector<2x128xf32> to vector<2x32xf32>
    %198 = vector.extract_strided_slice %195 {offsets = [0, 64], sizes = [2, 32], strides = [1, 1]} : vector<2x128xf32> to vector<2x32xf32>
    %199 = vector.extract_strided_slice %194 {offsets = [0, 96], sizes = [2, 32], strides = [1, 1]} : vector<2x128xf32> to vector<2x32xf32>
    %200 = arith.mulf %197, %183 : vector<2x32xf32>
    %201 = arith.mulf %196, %198 : vector<2x32xf32>
    %202 = arith.addf %200, %201 : vector<2x32xf32>
    %203 = math.tanh %202 : vector<2x32xf32>
    %204 = arith.mulf %199, %203 : vector<2x32xf32>
    %c12_101 = arith.constant 12 : index
    %c0_102 = arith.constant 0 : index
    %205 = vector.load %arg18[%c12_101, %c0_102] : memref<16x32xf32, #tpu.memory_space<vmem>>, vector<2x32xf32>
    tpu.vector_store %arg18[%c12_101, %c0_102], %204 {strides = array<i32>} : memref<16x32xf32, #tpu.memory_space<vmem>>, vector<2x32xf32>,
    %206 = vector.extract_strided_slice %67 {offsets = [14, 0], sizes = [2, 128], strides = [1, 1]} : vector<16x128xf32> to vector<2x128xf32>
    %cst_103 = arith.constant dense<0.000000e+00> : vector<2x128xf32>
    %207 = tpu.matmul %204, %68, %cst_103 {dimension_numbers = #tpu.dot_dimension_numbers<[1], [0], [0], [1], [0, 0, 1, 1], [], []>} : vector<2x32xf32>, vector<32x128xf32>, vector<2x128xf32> -> vector<2x128xf32>
    %208 = arith.addf %206, %207 : vector<2x128xf32>
    %209 = arith.negf %208 : vector<2x128xf32>
    %210 = math.exp %209 : vector<2x128xf32>
    %cst_104 = arith.constant 1.000000e+00 : f32
    %211 = vector.broadcast %cst_104 : f32 to vector<2x128xf32>
    %212 = arith.addf %211, %210 : vector<2x128xf32>
    %213 = arith.divf %211, %212 : vector<2x128xf32>
    %214 = math.tanh %208 : vector<2x128xf32>
    %215 = vector.extract_strided_slice %213 {offsets = [0, 0], sizes = [2, 32], strides = [1, 1]} : vector<2x128xf32> to vector<2x32xf32>
    %216 = vector.extract_strided_slice %213 {offsets = [0, 32], sizes = [2, 32], strides = [1, 1]} : vector<2x128xf32> to vector<2x32xf32>
    %217 = vector.extract_strided_slice %214 {offsets = [0, 64], sizes = [2, 32], strides = [1, 1]} : vector<2x128xf32> to vector<2x32xf32>
    %218 = vector.extract_strided_slice %213 {offsets = [0, 96], sizes = [2, 32], strides = [1, 1]} : vector<2x128xf32> to vector<2x32xf32>
    %219 = arith.mulf %216, %202 : vector<2x32xf32>
    %220 = arith.mulf %215, %217 : vector<2x32xf32>
    %221 = arith.addf %219, %220 : vector<2x32xf32>
    %222 = math.tanh %221 : vector<2x32xf32>
    %223 = arith.mulf %218, %222 : vector<2x32xf32>
    %c14_105 = arith.constant 14 : index
    %c0_106 = arith.constant 0 : index
    %224 = vector.load %arg18[%c14_105, %c0_106] : memref<16x32xf32, #tpu.memory_space<vmem>>, vector<2x32xf32>
    tpu.vector_store %arg18[%c14_105, %c0_106], %223 {strides = array<i32>} : memref<16x32xf32, #tpu.memory_space<vmem>>, vector<2x32xf32>,
    %c0_107 = arith.constant 0 : index
    %c0_108 = arith.constant 0 : index
    %c0_109 = arith.constant 0 : index
    %225 = vector.load %arg15[%c0_107, %c0_108, %c0_109] : memref<3x2x32xf32, #tpu.memory_space<vmem>>, vector<1x2x32xf32>
    %226 = vector.shape_cast %225 : vector<1x2x32xf32> to vector<2x32xf32>
    %227 = vector.shape_cast %223 : vector<2x32xf32> to vector<1x2x32xf32>
    tpu.vector_store %arg15[%c0_107, %c0_108, %c0_109], %227 {strides = array<i32>} : memref<3x2x32xf32, #tpu.memory_space<vmem>>, vector<1x2x32xf32>,
    %c0_110 = arith.constant 0 : index
    %c0_111 = arith.constant 0 : index
    %c0_112 = arith.constant 0 : index
    %228 = vector.load %arg16[%c0_110, %c0_111, %c0_112] : memref<3x2x32xf32, #tpu.memory_space<vmem>>, vector<1x2x32xf32>
    %229 = vector.shape_cast %228 : vector<1x2x32xf32> to vector<2x32xf32>
    %230 = vector.shape_cast %221 : vector<2x32xf32> to vector<1x2x32xf32>
    tpu.vector_store %arg16[%c0_110, %c0_111, %c0_112], %230 {strides = array<i32>} : memref<3x2x32xf32, #tpu.memory_space<vmem>>, vector<1x2x32xf32>,
    %c0_113 = arith.constant 0 : index
    %c0_114 = arith.constant 0 : index
    %231 = vector.load %arg6[%c0_113, %c0_114] : memref<32x128xf32, #tpu.memory_space<vmem>>, vector<32x128xf32>
    %c0_115 = arith.constant 0 : index
    %c0_116 = arith.constant 0 : index
    %232 = vector.load %arg8[%c0_115, %c0_116] : memref<1x128xf32, #tpu.memory_space<vmem>>, vector<1x128xf32>
    %c0_117 = arith.constant 0 : index
    %c0_118 = arith.constant 0 : index
    %233 = vector.load %arg18[%c0_117, %c0_118] : memref<16x32xf32, #tpu.memory_space<vmem>>, vector<16x32xf32>
    %cst_119 = arith.constant dense<0.000000e+00> : vector<16x128xf32>
    %234 = tpu.matmul %233, %231, %cst_119 {dimension_numbers = #tpu.dot_dimension_numbers<[1], [0], [0], [1], [0, 0, 1, 1], [], []>} : vector<16x32xf32>, vector<32x128xf32>, vector<16x128xf32> -> vector<16x128xf32>
    %235 = vector.broadcast %232 : vector<1x128xf32> to vector<16x128xf32>
    %236 = arith.addf %234, %235 : vector<16x128xf32>
    %c0_120 = arith.constant 0 : index
    %c0_121 = arith.constant 0 : index
    %237 = vector.load %arg7[%c0_120, %c0_121] : memref<32x128xf32, #tpu.memory_space<vmem>>, vector<32x128xf32>
    %c1_122 = arith.constant 1 : index
    %c0_123 = arith.constant 0 : index
    %c0_124 = arith.constant 0 : index
    %238 = vector.load %arg1[%c1_122, %c0_123, %c0_124] : memref<3x2x32xf32, #tpu.memory_space<vmem>>, vector<1x2x32xf32>
    %239 = vector.shape_cast %238 : vector<1x2x32xf32> to vector<2x32xf32>
    %c1_125 = arith.constant 1 : index
    %c0_126 = arith.constant 0 : index
    %c0_127 = arith.constant 0 : index
    %240 = vector.load %arg2[%c1_125, %c0_126, %c0_127] : memref<3x2x32xf32, #tpu.memory_space<vmem>>, vector<1x2x32xf32>
    %241 = vector.shape_cast %240 : vector<1x2x32xf32> to vector<2x32xf32>
    %242 = vector.extract_strided_slice %236 {offsets = [0, 0], sizes = [2, 128], strides = [1, 1]} : vector<16x128xf32> to vector<2x128xf32>
    %cst_128 = arith.constant dense<0.000000e+00> : vector<2x128xf32>
    %243 = tpu.matmul %239, %237, %cst_128 {dimension_numbers = #tpu.dot_dimension_numbers<[1], [0], [0], [1], [0, 0, 1, 1], [], []>} : vector<2x32xf32>, vector<32x128xf32>, vector<2x128xf32> -> vector<2x128xf32>
    %244 = arith.addf %242, %243 : vector<2x128xf32>
    %245 = arith.negf %244 : vector<2x128xf32>
    %246 = math.exp %245 : vector<2x128xf32>
    %cst_129 = arith.constant 1.000000e+00 : f32
    %247 = vector.broadcast %cst_129 : f32 to vector<2x128xf32>
    %248 = arith.addf %247, %246 : vector<2x128xf32>
    %249 = arith.divf %247, %248 : vector<2x128xf32>
    %250 = math.tanh %244 : vector<2x128xf32>
    %251 = vector.extract_strided_slice %249 {offsets = [0, 0], sizes = [2, 32], strides = [1, 1]} : vector<2x128xf32> to vector<2x32xf32>
    %252 = vector.extract_strided_slice %249 {offsets = [0, 32], sizes = [2, 32], strides = [1, 1]} : vector<2x128xf32> to vector<2x32xf32>
    %253 = vector.extract_strided_slice %250 {offsets = [0, 64], sizes = [2, 32], strides = [1, 1]} : vector<2x128xf32> to vector<2x32xf32>
    %254 = vector.extract_strided_slice %249 {offsets = [0, 96], sizes = [2, 32], strides = [1, 1]} : vector<2x128xf32> to vector<2x32xf32>
    %255 = arith.mulf %252, %241 : vector<2x32xf32>
    %256 = arith.mulf %251, %253 : vector<2x32xf32>
    %257 = arith.addf %255, %256 : vector<2x32xf32>
    %258 = math.tanh %257 : vector<2x32xf32>
    %259 = arith.mulf %254, %258 : vector<2x32xf32>
    %c0_130 = arith.constant 0 : index
    %c0_131 = arith.constant 0 : index
    %260 = vector.load %arg18[%c0_130, %c0_131] : memref<16x32xf32, #tpu.memory_space<vmem>>, vector<2x32xf32>
    tpu.vector_store %arg18[%c0_130, %c0_131], %259 {strides = array<i32>} : memref<16x32xf32, #tpu.memory_space<vmem>>, vector<2x32xf32>,
    %261 = vector.extract_strided_slice %236 {offsets = [2, 0], sizes = [2, 128], strides = [1, 1]} : vector<16x128xf32> to vector<2x128xf32>
    %cst_132 = arith.constant dense<0.000000e+00> : vector<2x128xf32>
    %262 = tpu.matmul %259, %237, %cst_132 {dimension_numbers = #tpu.dot_dimension_numbers<[1], [0], [0], [1], [0, 0, 1, 1], [], []>} : vector<2x32xf32>, vector<32x128xf32>, vector<2x128xf32> -> vector<2x128xf32>
    %263 = arith.addf %261, %262 : vector<2x128xf32>
    %264 = arith.negf %263 : vector<2x128xf32>
    %265 = math.exp %264 : vector<2x128xf32>
    %cst_133 = arith.constant 1.000000e+00 : f32
    %266 = vector.broadcast %cst_133 : f32 to vector<2x128xf32>
    %267 = arith.addf %266, %265 : vector<2x128xf32>
    %268 = arith.divf %266, %267 : vector<2x128xf32>
    %269 = math.tanh %263 : vector<2x128xf32>
    %270 = vector.extract_strided_slice %268 {offsets = [0, 0], sizes = [2, 32], strides = [1, 1]} : vector<2x128xf32> to vector<2x32xf32>
    %271 = vector.extract_strided_slice %268 {offsets = [0, 32], sizes = [2, 32], strides = [1, 1]} : vector<2x128xf32> to vector<2x32xf32>
    %272 = vector.extract_strided_slice %269 {offsets = [0, 64], sizes = [2, 32], strides = [1, 1]} : vector<2x128xf32> to vector<2x32xf32>
    %273 = vector.extract_strided_slice %268 {offsets = [0, 96], sizes = [2, 32], strides = [1, 1]} : vector<2x128xf32> to vector<2x32xf32>
    %274 = arith.mulf %271, %257 : vector<2x32xf32>
    %275 = arith.mulf %270, %272 : vector<2x32xf32>
    %276 = arith.addf %274, %275 : vector<2x32xf32>
    %277 = math.tanh %276 : vector<2x32xf32>
    %278 = arith.mulf %273, %277 : vector<2x32xf32>
    %c2_134 = arith.constant 2 : index
    %c0_135 = arith.constant 0 : index
    %279 = vector.load %arg18[%c2_134, %c0_135] : memref<16x32xf32, #tpu.memory_space<vmem>>, vector<2x32xf32>
    tpu.vector_store %arg18[%c2_134, %c0_135], %278 {strides = array<i32>} : memref<16x32xf32, #tpu.memory_space<vmem>>, vector<2x32xf32>,
    %280 = vector.extract_strided_slice %236 {offsets = [4, 0], sizes = [2, 128], strides = [1, 1]} : vector<16x128xf32> to vector<2x128xf32>
    %cst_136 = arith.constant dense<0.000000e+00> : vector<2x128xf32>
    %281 = tpu.matmul %278, %237, %cst_136 {dimension_numbers = #tpu.dot_dimension_numbers<[1], [0], [0], [1], [0, 0, 1, 1], [], []>} : vector<2x32xf32>, vector<32x128xf32>, vector<2x128xf32> -> vector<2x128xf32>
    %282 = arith.addf %280, %281 : vector<2x128xf32>
    %283 = arith.negf %282 : vector<2x128xf32>
    %284 = math.exp %283 : vector<2x128xf32>
    %cst_137 = arith.constant 1.000000e+00 : f32
    %285 = vector.broadcast %cst_137 : f32 to vector<2x128xf32>
    %286 = arith.addf %285, %284 : vector<2x128xf32>
    %287 = arith.divf %285, %286 : vector<2x128xf32>
    %288 = math.tanh %282 : vector<2x128xf32>
    %289 = vector.extract_strided_slice %287 {offsets = [0, 0], sizes = [2, 32], strides = [1, 1]} : vector<2x128xf32> to vector<2x32xf32>
    %290 = vector.extract_strided_slice %287 {offsets = [0, 32], sizes = [2, 32], strides = [1, 1]} : vector<2x128xf32> to vector<2x32xf32>
    %291 = vector.extract_strided_slice %288 {offsets = [0, 64], sizes = [2, 32], strides = [1, 1]} : vector<2x128xf32> to vector<2x32xf32>
    %292 = vector.extract_strided_slice %287 {offsets = [0, 96], sizes = [2, 32], strides = [1, 1]} : vector<2x128xf32> to vector<2x32xf32>
    %293 = arith.mulf %290, %276 : vector<2x32xf32>
    %294 = arith.mulf %289, %291 : vector<2x32xf32>
    %295 = arith.addf %293, %294 : vector<2x32xf32>
    %296 = math.tanh %295 : vector<2x32xf32>
    %297 = arith.mulf %292, %296 : vector<2x32xf32>
    %c4_138 = arith.constant 4 : index
    %c0_139 = arith.constant 0 : index
    %298 = vector.load %arg18[%c4_138, %c0_139] : memref<16x32xf32, #tpu.memory_space<vmem>>, vector<2x32xf32>
    tpu.vector_store %arg18[%c4_138, %c0_139], %297 {strides = array<i32>} : memref<16x32xf32, #tpu.memory_space<vmem>>, vector<2x32xf32>,
    %299 = vector.extract_strided_slice %236 {offsets = [6, 0], sizes = [2, 128], strides = [1, 1]} : vector<16x128xf32> to vector<2x128xf32>
    %cst_140 = arith.constant dense<0.000000e+00> : vector<2x128xf32>
    %300 = tpu.matmul %297, %237, %cst_140 {dimension_numbers = #tpu.dot_dimension_numbers<[1], [0], [0], [1], [0, 0, 1, 1], [], []>} : vector<2x32xf32>, vector<32x128xf32>, vector<2x128xf32> -> vector<2x128xf32>
    %301 = arith.addf %299, %300 : vector<2x128xf32>
    %302 = arith.negf %301 : vector<2x128xf32>
    %303 = math.exp %302 : vector<2x128xf32>
    %cst_141 = arith.constant 1.000000e+00 : f32
    %304 = vector.broadcast %cst_141 : f32 to vector<2x128xf32>
    %305 = arith.addf %304, %303 : vector<2x128xf32>
    %306 = arith.divf %304, %305 : vector<2x128xf32>
    %307 = math.tanh %301 : vector<2x128xf32>
    %308 = vector.extract_strided_slice %306 {offsets = [0, 0], sizes = [2, 32], strides = [1, 1]} : vector<2x128xf32> to vector<2x32xf32>
    %309 = vector.extract_strided_slice %306 {offsets = [0, 32], sizes = [2, 32], strides = [1, 1]} : vector<2x128xf32> to vector<2x32xf32>
    %310 = vector.extract_strided_slice %307 {offsets = [0, 64], sizes = [2, 32], strides = [1, 1]} : vector<2x128xf32> to vector<2x32xf32>
    %311 = vector.extract_strided_slice %306 {offsets = [0, 96], sizes = [2, 32], strides = [1, 1]} : vector<2x128xf32> to vector<2x32xf32>
    %312 = arith.mulf %309, %295 : vector<2x32xf32>
    %313 = arith.mulf %308, %310 : vector<2x32xf32>
    %314 = arith.addf %312, %313 : vector<2x32xf32>
    %315 = math.tanh %314 : vector<2x32xf32>
    %316 = arith.mulf %311, %315 : vector<2x32xf32>
    %c6_142 = arith.constant 6 : index
    %c0_143 = arith.constant 0 : index
    %317 = vector.load %arg18[%c6_142, %c0_143] : memref<16x32xf32, #tpu.memory_space<vmem>>, vector<2x32xf32>
    tpu.vector_store %arg18[%c6_142, %c0_143], %316 {strides = array<i32>} : memref<16x32xf32, #tpu.memory_space<vmem>>, vector<2x32xf32>,
    %318 = vector.extract_strided_slice %236 {offsets = [8, 0], sizes = [2, 128], strides = [1, 1]} : vector<16x128xf32> to vector<2x128xf32>
    %cst_144 = arith.constant dense<0.000000e+00> : vector<2x128xf32>
    %319 = tpu.matmul %316, %237, %cst_144 {dimension_numbers = #tpu.dot_dimension_numbers<[1], [0], [0], [1], [0, 0, 1, 1], [], []>} : vector<2x32xf32>, vector<32x128xf32>, vector<2x128xf32> -> vector<2x128xf32>
    %320 = arith.addf %318, %319 : vector<2x128xf32>
    %321 = arith.negf %320 : vector<2x128xf32>
    %322 = math.exp %321 : vector<2x128xf32>
    %cst_145 = arith.constant 1.000000e+00 : f32
    %323 = vector.broadcast %cst_145 : f32 to vector<2x128xf32>
    %324 = arith.addf %323, %322 : vector<2x128xf32>
    %325 = arith.divf %323, %324 : vector<2x128xf32>
    %326 = math.tanh %320 : vector<2x128xf32>
    %327 = vector.extract_strided_slice %325 {offsets = [0, 0], sizes = [2, 32], strides = [1, 1]} : vector<2x128xf32> to vector<2x32xf32>
    %328 = vector.extract_strided_slice %325 {offsets = [0, 32], sizes = [2, 32], strides = [1, 1]} : vector<2x128xf32> to vector<2x32xf32>
    %329 = vector.extract_strided_slice %326 {offsets = [0, 64], sizes = [2, 32], strides = [1, 1]} : vector<2x128xf32> to vector<2x32xf32>
    %330 = vector.extract_strided_slice %325 {offsets = [0, 96], sizes = [2, 32], strides = [1, 1]} : vector<2x128xf32> to vector<2x32xf32>
    %331 = arith.mulf %328, %314 : vector<2x32xf32>
    %332 = arith.mulf %327, %329 : vector<2x32xf32>
    %333 = arith.addf %331, %332 : vector<2x32xf32>
    %334 = math.tanh %333 : vector<2x32xf32>
    %335 = arith.mulf %330, %334 : vector<2x32xf32>
    %c8_146 = arith.constant 8 : index
    %c0_147 = arith.constant 0 : index
    %336 = vector.load %arg18[%c8_146, %c0_147] : memref<16x32xf32, #tpu.memory_space<vmem>>, vector<2x32xf32>
    tpu.vector_store %arg18[%c8_146, %c0_147], %335 {strides = array<i32>} : memref<16x32xf32, #tpu.memory_space<vmem>>, vector<2x32xf32>,
    %337 = vector.extract_strided_slice %236 {offsets = [10, 0], sizes = [2, 128], strides = [1, 1]} : vector<16x128xf32> to vector<2x128xf32>
    %cst_148 = arith.constant dense<0.000000e+00> : vector<2x128xf32>
    %338 = tpu.matmul %335, %237, %cst_148 {dimension_numbers = #tpu.dot_dimension_numbers<[1], [0], [0], [1], [0, 0, 1, 1], [], []>} : vector<2x32xf32>, vector<32x128xf32>, vector<2x128xf32> -> vector<2x128xf32>
    %339 = arith.addf %337, %338 : vector<2x128xf32>
    %340 = arith.negf %339 : vector<2x128xf32>
    %341 = math.exp %340 : vector<2x128xf32>
    %cst_149 = arith.constant 1.000000e+00 : f32
    %342 = vector.broadcast %cst_149 : f32 to vector<2x128xf32>
    %343 = arith.addf %342, %341 : vector<2x128xf32>
    %344 = arith.divf %342, %343 : vector<2x128xf32>
    %345 = math.tanh %339 : vector<2x128xf32>
    %346 = vector.extract_strided_slice %344 {offsets = [0, 0], sizes = [2, 32], strides = [1, 1]} : vector<2x128xf32> to vector<2x32xf32>
    %347 = vector.extract_strided_slice %344 {offsets = [0, 32], sizes = [2, 32], strides = [1, 1]} : vector<2x128xf32> to vector<2x32xf32>
    %348 = vector.extract_strided_slice %345 {offsets = [0, 64], sizes = [2, 32], strides = [1, 1]} : vector<2x128xf32> to vector<2x32xf32>
    %349 = vector.extract_strided_slice %344 {offsets = [0, 96], sizes = [2, 32], strides = [1, 1]} : vector<2x128xf32> to vector<2x32xf32>
    %350 = arith.mulf %347, %333 : vector<2x32xf32>
    %351 = arith.mulf %346, %348 : vector<2x32xf32>
    %352 = arith.addf %350, %351 : vector<2x32xf32>
    %353 = math.tanh %352 : vector<2x32xf32>
    %354 = arith.mulf %349, %353 : vector<2x32xf32>
    %c10_150 = arith.constant 10 : index
    %c0_151 = arith.constant 0 : index
    %355 = vector.load %arg18[%c10_150, %c0_151] : memref<16x32xf32, #tpu.memory_space<vmem>>, vector<2x32xf32>
    tpu.vector_store %arg18[%c10_150, %c0_151], %354 {strides = array<i32>} : memref<16x32xf32, #tpu.memory_space<vmem>>, vector<2x32xf32>,
    %356 = vector.extract_strided_slice %236 {offsets = [12, 0], sizes = [2, 128], strides = [1, 1]} : vector<16x128xf32> to vector<2x128xf32>
    %cst_152 = arith.constant dense<0.000000e+00> : vector<2x128xf32>
    %357 = tpu.matmul %354, %237, %cst_152 {dimension_numbers = #tpu.dot_dimension_numbers<[1], [0], [0], [1], [0, 0, 1, 1], [], []>} : vector<2x32xf32>, vector<32x128xf32>, vector<2x128xf32> -> vector<2x128xf32>
    %358 = arith.addf %356, %357 : vector<2x128xf32>
    %359 = arith.negf %358 : vector<2x128xf32>
    %360 = math.exp %359 : vector<2x128xf32>
    %cst_153 = arith.constant 1.000000e+00 : f32
    %361 = vector.broadcast %cst_153 : f32 to vector<2x128xf32>
    %362 = arith.addf %361, %360 : vector<2x128xf32>
    %363 = arith.divf %361, %362 : vector<2x128xf32>
    %364 = math.tanh %358 : vector<2x128xf32>
    %365 = vector.extract_strided_slice %363 {offsets = [0, 0], sizes = [2, 32], strides = [1, 1]} : vector<2x128xf32> to vector<2x32xf32>
    %366 = vector.extract_strided_slice %363 {offsets = [0, 32], sizes = [2, 32], strides = [1, 1]} : vector<2x128xf32> to vector<2x32xf32>
    %367 = vector.extract_strided_slice %364 {offsets = [0, 64], sizes = [2, 32], strides = [1, 1]} : vector<2x128xf32> to vector<2x32xf32>
    %368 = vector.extract_strided_slice %363 {offsets = [0, 96], sizes = [2, 32], strides = [1, 1]} : vector<2x128xf32> to vector<2x32xf32>
    %369 = arith.mulf %366, %352 : vector<2x32xf32>
    %370 = arith.mulf %365, %367 : vector<2x32xf32>
    %371 = arith.addf %369, %370 : vector<2x32xf32>
    %372 = math.tanh %371 : vector<2x32xf32>
    %373 = arith.mulf %368, %372 : vector<2x32xf32>
    %c12_154 = arith.constant 12 : index
    %c0_155 = arith.constant 0 : index
    %374 = vector.load %arg18[%c12_154, %c0_155] : memref<16x32xf32, #tpu.memory_space<vmem>>, vector<2x32xf32>
    tpu.vector_store %arg18[%c12_154, %c0_155], %373 {strides = array<i32>} : memref<16x32xf32, #tpu.memory_space<vmem>>, vector<2x32xf32>,
    %375 = vector.extract_strided_slice %236 {offsets = [14, 0], sizes = [2, 128], strides = [1, 1]} : vector<16x128xf32> to vector<2x128xf32>
    %cst_156 = arith.constant dense<0.000000e+00> : vector<2x128xf32>
    %376 = tpu.matmul %373, %237, %cst_156 {dimension_numbers = #tpu.dot_dimension_numbers<[1], [0], [0], [1], [0, 0, 1, 1], [], []>} : vector<2x32xf32>, vector<32x128xf32>, vector<2x128xf32> -> vector<2x128xf32>
    %377 = arith.addf %375, %376 : vector<2x128xf32>
    %378 = arith.negf %377 : vector<2x128xf32>
    %379 = math.exp %378 : vector<2x128xf32>
    %cst_157 = arith.constant 1.000000e+00 : f32
    %380 = vector.broadcast %cst_157 : f32 to vector<2x128xf32>
    %381 = arith.addf %380, %379 : vector<2x128xf32>
    %382 = arith.divf %380, %381 : vector<2x128xf32>
    %383 = math.tanh %377 : vector<2x128xf32>
    %384 = vector.extract_strided_slice %382 {offsets = [0, 0], sizes = [2, 32], strides = [1, 1]} : vector<2x128xf32> to vector<2x32xf32>
    %385 = vector.extract_strided_slice %382 {offsets = [0, 32], sizes = [2, 32], strides = [1, 1]} : vector<2x128xf32> to vector<2x32xf32>
    %386 = vector.extract_strided_slice %383 {offsets = [0, 64], sizes = [2, 32], strides = [1, 1]} : vector<2x128xf32> to vector<2x32xf32>
    %387 = vector.extract_strided_slice %382 {offsets = [0, 96], sizes = [2, 32], strides = [1, 1]} : vector<2x128xf32> to vector<2x32xf32>
    %388 = arith.mulf %385, %371 : vector<2x32xf32>
    %389 = arith.mulf %384, %386 : vector<2x32xf32>
    %390 = arith.addf %388, %389 : vector<2x32xf32>
    %391 = math.tanh %390 : vector<2x32xf32>
    %392 = arith.mulf %387, %391 : vector<2x32xf32>
    %c14_158 = arith.constant 14 : index
    %c0_159 = arith.constant 0 : index
    %393 = vector.load %arg18[%c14_158, %c0_159] : memref<16x32xf32, #tpu.memory_space<vmem>>, vector<2x32xf32>
    tpu.vector_store %arg18[%c14_158, %c0_159], %392 {strides = array<i32>} : memref<16x32xf32, #tpu.memory_space<vmem>>, vector<2x32xf32>,
    %c1_160 = arith.constant 1 : index
    %c0_161 = arith.constant 0 : index
    %c0_162 = arith.constant 0 : index
    %394 = vector.load %arg15[%c1_160, %c0_161, %c0_162] : memref<3x2x32xf32, #tpu.memory_space<vmem>>, vector<1x2x32xf32>
    %395 = vector.shape_cast %394 : vector<1x2x32xf32> to vector<2x32xf32>
    %396 = vector.shape_cast %392 : vector<2x32xf32> to vector<1x2x32xf32>
    tpu.vector_store %arg15[%c1_160, %c0_161, %c0_162], %396 {strides = array<i32>} : memref<3x2x32xf32, #tpu.memory_space<vmem>>, vector<1x2x32xf32>,
    %c1_163 = arith.constant 1 : index
    %c0_164 = arith.constant 0 : index
    %c0_165 = arith.constant 0 : index
    %397 = vector.load %arg16[%c1_163, %c0_164, %c0_165] : memref<3x2x32xf32, #tpu.memory_space<vmem>>, vector<1x2x32xf32>
    %398 = vector.shape_cast %397 : vector<1x2x32xf32> to vector<2x32xf32>
    %399 = vector.shape_cast %390 : vector<2x32xf32> to vector<1x2x32xf32>
    tpu.vector_store %arg16[%c1_163, %c0_164, %c0_165], %399 {strides = array<i32>} : memref<3x2x32xf32, #tpu.memory_space<vmem>>, vector<1x2x32xf32>,
    %c0_166 = arith.constant 0 : index
    %c0_167 = arith.constant 0 : index
    %400 = vector.load %arg9[%c0_166, %c0_167] : memref<32x128xf32, #tpu.memory_space<vmem>>, vector<32x128xf32>
    %c0_168 = arith.constant 0 : index
    %c0_169 = arith.constant 0 : index
    %401 = vector.load %arg11[%c0_168, %c0_169] : memref<1x128xf32, #tpu.memory_space<vmem>>, vector<1x128xf32>
    %c0_170 = arith.constant 0 : index
    %c0_171 = arith.constant 0 : index
    %402 = vector.load %arg18[%c0_170, %c0_171] : memref<16x32xf32, #tpu.memory_space<vmem>>, vector<16x32xf32>
    %cst_172 = arith.constant dense<0.000000e+00> : vector<16x128xf32>
    %403 = tpu.matmul %402, %400, %cst_172 {dimension_numbers = #tpu.dot_dimension_numbers<[1], [0], [0], [1], [0, 0, 1, 1], [], []>} : vector<16x32xf32>, vector<32x128xf32>, vector<16x128xf32> -> vector<16x128xf32>
    %404 = vector.broadcast %401 : vector<1x128xf32> to vector<16x128xf32>
    %405 = arith.addf %403, %404 : vector<16x128xf32>
    %c0_173 = arith.constant 0 : index
    %c0_174 = arith.constant 0 : index
    %406 = vector.load %arg10[%c0_173, %c0_174] : memref<32x128xf32, #tpu.memory_space<vmem>>, vector<32x128xf32>
    %c2_175 = arith.constant 2 : index
    %c0_176 = arith.constant 0 : index
    %c0_177 = arith.constant 0 : index
    %407 = vector.load %arg1[%c2_175, %c0_176, %c0_177] : memref<3x2x32xf32, #tpu.memory_space<vmem>>, vector<1x2x32xf32>
    %408 = vector.shape_cast %407 : vector<1x2x32xf32> to vector<2x32xf32>
    %c2_178 = arith.constant 2 : index
    %c0_179 = arith.constant 0 : index
    %c0_180 = arith.constant 0 : index
    %409 = vector.load %arg2[%c2_178, %c0_179, %c0_180] : memref<3x2x32xf32, #tpu.memory_space<vmem>>, vector<1x2x32xf32>
    %410 = vector.shape_cast %409 : vector<1x2x32xf32> to vector<2x32xf32>
    %411 = vector.extract_strided_slice %405 {offsets = [0, 0], sizes = [2, 128], strides = [1, 1]} : vector<16x128xf32> to vector<2x128xf32>
    %cst_181 = arith.constant dense<0.000000e+00> : vector<2x128xf32>
    %412 = tpu.matmul %408, %406, %cst_181 {dimension_numbers = #tpu.dot_dimension_numbers<[1], [0], [0], [1], [0, 0, 1, 1], [], []>} : vector<2x32xf32>, vector<32x128xf32>, vector<2x128xf32> -> vector<2x128xf32>
    %413 = arith.addf %411, %412 : vector<2x128xf32>
    %414 = arith.negf %413 : vector<2x128xf32>
    %415 = math.exp %414 : vector<2x128xf32>
    %cst_182 = arith.constant 1.000000e+00 : f32
    %416 = vector.broadcast %cst_182 : f32 to vector<2x128xf32>
    %417 = arith.addf %416, %415 : vector<2x128xf32>
    %418 = arith.divf %416, %417 : vector<2x128xf32>
    %419 = math.tanh %413 : vector<2x128xf32>
    %420 = vector.extract_strided_slice %418 {offsets = [0, 0], sizes = [2, 32], strides = [1, 1]} : vector<2x128xf32> to vector<2x32xf32>
    %421 = vector.extract_strided_slice %418 {offsets = [0, 32], sizes = [2, 32], strides = [1, 1]} : vector<2x128xf32> to vector<2x32xf32>
    %422 = vector.extract_strided_slice %419 {offsets = [0, 64], sizes = [2, 32], strides = [1, 1]} : vector<2x128xf32> to vector<2x32xf32>
    %423 = vector.extract_strided_slice %418 {offsets = [0, 96], sizes = [2, 32], strides = [1, 1]} : vector<2x128xf32> to vector<2x32xf32>
    %424 = arith.mulf %421, %410 : vector<2x32xf32>
    %425 = arith.mulf %420, %422 : vector<2x32xf32>
    %426 = arith.addf %424, %425 : vector<2x32xf32>
    %427 = math.tanh %426 : vector<2x32xf32>
    %428 = arith.mulf %423, %427 : vector<2x32xf32>
    %c0_183 = arith.constant 0 : index
    %c0_184 = arith.constant 0 : index
    %429 = vector.load %arg18[%c0_183, %c0_184] : memref<16x32xf32, #tpu.memory_space<vmem>>, vector<2x32xf32>
    tpu.vector_store %arg18[%c0_183, %c0_184], %428 {strides = array<i32>} : memref<16x32xf32, #tpu.memory_space<vmem>>, vector<2x32xf32>,
    %430 = vector.extract_strided_slice %405 {offsets = [2, 0], sizes = [2, 128], strides = [1, 1]} : vector<16x128xf32> to vector<2x128xf32>
    %cst_185 = arith.constant dense<0.000000e+00> : vector<2x128xf32>
    %431 = tpu.matmul %428, %406, %cst_185 {dimension_numbers = #tpu.dot_dimension_numbers<[1], [0], [0], [1], [0, 0, 1, 1], [], []>} : vector<2x32xf32>, vector<32x128xf32>, vector<2x128xf32> -> vector<2x128xf32>
    %432 = arith.addf %430, %431 : vector<2x128xf32>
    %433 = arith.negf %432 : vector<2x128xf32>
    %434 = math.exp %433 : vector<2x128xf32>
    %cst_186 = arith.constant 1.000000e+00 : f32
    %435 = vector.broadcast %cst_186 : f32 to vector<2x128xf32>
    %436 = arith.addf %435, %434 : vector<2x128xf32>
    %437 = arith.divf %435, %436 : vector<2x128xf32>
    %438 = math.tanh %432 : vector<2x128xf32>
    %439 = vector.extract_strided_slice %437 {offsets = [0, 0], sizes = [2, 32], strides = [1, 1]} : vector<2x128xf32> to vector<2x32xf32>
    %440 = vector.extract_strided_slice %437 {offsets = [0, 32], sizes = [2, 32], strides = [1, 1]} : vector<2x128xf32> to vector<2x32xf32>
    %441 = vector.extract_strided_slice %438 {offsets = [0, 64], sizes = [2, 32], strides = [1, 1]} : vector<2x128xf32> to vector<2x32xf32>
    %442 = vector.extract_strided_slice %437 {offsets = [0, 96], sizes = [2, 32], strides = [1, 1]} : vector<2x128xf32> to vector<2x32xf32>
    %443 = arith.mulf %440, %426 : vector<2x32xf32>
    %444 = arith.mulf %439, %441 : vector<2x32xf32>
    %445 = arith.addf %443, %444 : vector<2x32xf32>
    %446 = math.tanh %445 : vector<2x32xf32>
    %447 = arith.mulf %442, %446 : vector<2x32xf32>
    %c2_187 = arith.constant 2 : index
    %c0_188 = arith.constant 0 : index
    %448 = vector.load %arg18[%c2_187, %c0_188] : memref<16x32xf32, #tpu.memory_space<vmem>>, vector<2x32xf32>
    tpu.vector_store %arg18[%c2_187, %c0_188], %447 {strides = array<i32>} : memref<16x32xf32, #tpu.memory_space<vmem>>, vector<2x32xf32>,
    %449 = vector.extract_strided_slice %405 {offsets = [4, 0], sizes = [2, 128], strides = [1, 1]} : vector<16x128xf32> to vector<2x128xf32>
    %cst_189 = arith.constant dense<0.000000e+00> : vector<2x128xf32>
    %450 = tpu.matmul %447, %406, %cst_189 {dimension_numbers = #tpu.dot_dimension_numbers<[1], [0], [0], [1], [0, 0, 1, 1], [], []>} : vector<2x32xf32>, vector<32x128xf32>, vector<2x128xf32> -> vector<2x128xf32>
    %451 = arith.addf %449, %450 : vector<2x128xf32>
    %452 = arith.negf %451 : vector<2x128xf32>
    %453 = math.exp %452 : vector<2x128xf32>
    %cst_190 = arith.constant 1.000000e+00 : f32
    %454 = vector.broadcast %cst_190 : f32 to vector<2x128xf32>
    %455 = arith.addf %454, %453 : vector<2x128xf32>
    %456 = arith.divf %454, %455 : vector<2x128xf32>
    %457 = math.tanh %451 : vector<2x128xf32>
    %458 = vector.extract_strided_slice %456 {offsets = [0, 0], sizes = [2, 32], strides = [1, 1]} : vector<2x128xf32> to vector<2x32xf32>
    %459 = vector.extract_strided_slice %456 {offsets = [0, 32], sizes = [2, 32], strides = [1, 1]} : vector<2x128xf32> to vector<2x32xf32>
    %460 = vector.extract_strided_slice %457 {offsets = [0, 64], sizes = [2, 32], strides = [1, 1]} : vector<2x128xf32> to vector<2x32xf32>
    %461 = vector.extract_strided_slice %456 {offsets = [0, 96], sizes = [2, 32], strides = [1, 1]} : vector<2x128xf32> to vector<2x32xf32>
    %462 = arith.mulf %459, %445 : vector<2x32xf32>
    %463 = arith.mulf %458, %460 : vector<2x32xf32>
    %464 = arith.addf %462, %463 : vector<2x32xf32>
    %465 = math.tanh %464 : vector<2x32xf32>
    %466 = arith.mulf %461, %465 : vector<2x32xf32>
    %c4_191 = arith.constant 4 : index
    %c0_192 = arith.constant 0 : index
    %467 = vector.load %arg18[%c4_191, %c0_192] : memref<16x32xf32, #tpu.memory_space<vmem>>, vector<2x32xf32>
    tpu.vector_store %arg18[%c4_191, %c0_192], %466 {strides = array<i32>} : memref<16x32xf32, #tpu.memory_space<vmem>>, vector<2x32xf32>,
    %468 = vector.extract_strided_slice %405 {offsets = [6, 0], sizes = [2, 128], strides = [1, 1]} : vector<16x128xf32> to vector<2x128xf32>
    %cst_193 = arith.constant dense<0.000000e+00> : vector<2x128xf32>
    %469 = tpu.matmul %466, %406, %cst_193 {dimension_numbers = #tpu.dot_dimension_numbers<[1], [0], [0], [1], [0, 0, 1, 1], [], []>} : vector<2x32xf32>, vector<32x128xf32>, vector<2x128xf32> -> vector<2x128xf32>
    %470 = arith.addf %468, %469 : vector<2x128xf32>
    %471 = arith.negf %470 : vector<2x128xf32>
    %472 = math.exp %471 : vector<2x128xf32>
    %cst_194 = arith.constant 1.000000e+00 : f32
    %473 = vector.broadcast %cst_194 : f32 to vector<2x128xf32>
    %474 = arith.addf %473, %472 : vector<2x128xf32>
    %475 = arith.divf %473, %474 : vector<2x128xf32>
    %476 = math.tanh %470 : vector<2x128xf32>
    %477 = vector.extract_strided_slice %475 {offsets = [0, 0], sizes = [2, 32], strides = [1, 1]} : vector<2x128xf32> to vector<2x32xf32>
    %478 = vector.extract_strided_slice %475 {offsets = [0, 32], sizes = [2, 32], strides = [1, 1]} : vector<2x128xf32> to vector<2x32xf32>
    %479 = vector.extract_strided_slice %476 {offsets = [0, 64], sizes = [2, 32], strides = [1, 1]} : vector<2x128xf32> to vector<2x32xf32>
    %480 = vector.extract_strided_slice %475 {offsets = [0, 96], sizes = [2, 32], strides = [1, 1]} : vector<2x128xf32> to vector<2x32xf32>
    %481 = arith.mulf %478, %464 : vector<2x32xf32>
    %482 = arith.mulf %477, %479 : vector<2x32xf32>
    %483 = arith.addf %481, %482 : vector<2x32xf32>
    %484 = math.tanh %483 : vector<2x32xf32>
    %485 = arith.mulf %480, %484 : vector<2x32xf32>
    %c6_195 = arith.constant 6 : index
    %c0_196 = arith.constant 0 : index
    %486 = vector.load %arg18[%c6_195, %c0_196] : memref<16x32xf32, #tpu.memory_space<vmem>>, vector<2x32xf32>
    tpu.vector_store %arg18[%c6_195, %c0_196], %485 {strides = array<i32>} : memref<16x32xf32, #tpu.memory_space<vmem>>, vector<2x32xf32>,
    %487 = vector.extract_strided_slice %405 {offsets = [8, 0], sizes = [2, 128], strides = [1, 1]} : vector<16x128xf32> to vector<2x128xf32>
    %cst_197 = arith.constant dense<0.000000e+00> : vector<2x128xf32>
    %488 = tpu.matmul %485, %406, %cst_197 {dimension_numbers = #tpu.dot_dimension_numbers<[1], [0], [0], [1], [0, 0, 1, 1], [], []>} : vector<2x32xf32>, vector<32x128xf32>, vector<2x128xf32> -> vector<2x128xf32>
    %489 = arith.addf %487, %488 : vector<2x128xf32>
    %490 = arith.negf %489 : vector<2x128xf32>
    %491 = math.exp %490 : vector<2x128xf32>
    %cst_198 = arith.constant 1.000000e+00 : f32
    %492 = vector.broadcast %cst_198 : f32 to vector<2x128xf32>
    %493 = arith.addf %492, %491 : vector<2x128xf32>
    %494 = arith.divf %492, %493 : vector<2x128xf32>
    %495 = math.tanh %489 : vector<2x128xf32>
    %496 = vector.extract_strided_slice %494 {offsets = [0, 0], sizes = [2, 32], strides = [1, 1]} : vector<2x128xf32> to vector<2x32xf32>
    %497 = vector.extract_strided_slice %494 {offsets = [0, 32], sizes = [2, 32], strides = [1, 1]} : vector<2x128xf32> to vector<2x32xf32>
    %498 = vector.extract_strided_slice %495 {offsets = [0, 64], sizes = [2, 32], strides = [1, 1]} : vector<2x128xf32> to vector<2x32xf32>
    %499 = vector.extract_strided_slice %494 {offsets = [0, 96], sizes = [2, 32], strides = [1, 1]} : vector<2x128xf32> to vector<2x32xf32>
    %500 = arith.mulf %497, %483 : vector<2x32xf32>
    %501 = arith.mulf %496, %498 : vector<2x32xf32>
    %502 = arith.addf %500, %501 : vector<2x32xf32>
    %503 = math.tanh %502 : vector<2x32xf32>
    %504 = arith.mulf %499, %503 : vector<2x32xf32>
    %c8_199 = arith.constant 8 : index
    %c0_200 = arith.constant 0 : index
    %505 = vector.load %arg18[%c8_199, %c0_200] : memref<16x32xf32, #tpu.memory_space<vmem>>, vector<2x32xf32>
    tpu.vector_store %arg18[%c8_199, %c0_200], %504 {strides = array<i32>} : memref<16x32xf32, #tpu.memory_space<vmem>>, vector<2x32xf32>,
    %506 = vector.extract_strided_slice %405 {offsets = [10, 0], sizes = [2, 128], strides = [1, 1]} : vector<16x128xf32> to vector<2x128xf32>
    %cst_201 = arith.constant dense<0.000000e+00> : vector<2x128xf32>
    %507 = tpu.matmul %504, %406, %cst_201 {dimension_numbers = #tpu.dot_dimension_numbers<[1], [0], [0], [1], [0, 0, 1, 1], [], []>} : vector<2x32xf32>, vector<32x128xf32>, vector<2x128xf32> -> vector<2x128xf32>
    %508 = arith.addf %506, %507 : vector<2x128xf32>
    %509 = arith.negf %508 : vector<2x128xf32>
    %510 = math.exp %509 : vector<2x128xf32>
    %cst_202 = arith.constant 1.000000e+00 : f32
    %511 = vector.broadcast %cst_202 : f32 to vector<2x128xf32>
    %512 = arith.addf %511, %510 : vector<2x128xf32>
    %513 = arith.divf %511, %512 : vector<2x128xf32>
    %514 = math.tanh %508 : vector<2x128xf32>
    %515 = vector.extract_strided_slice %513 {offsets = [0, 0], sizes = [2, 32], strides = [1, 1]} : vector<2x128xf32> to vector<2x32xf32>
    %516 = vector.extract_strided_slice %513 {offsets = [0, 32], sizes = [2, 32], strides = [1, 1]} : vector<2x128xf32> to vector<2x32xf32>
    %517 = vector.extract_strided_slice %514 {offsets = [0, 64], sizes = [2, 32], strides = [1, 1]} : vector<2x128xf32> to vector<2x32xf32>
    %518 = vector.extract_strided_slice %513 {offsets = [0, 96], sizes = [2, 32], strides = [1, 1]} : vector<2x128xf32> to vector<2x32xf32>
    %519 = arith.mulf %516, %502 : vector<2x32xf32>
    %520 = arith.mulf %515, %517 : vector<2x32xf32>
    %521 = arith.addf %519, %520 : vector<2x32xf32>
    %522 = math.tanh %521 : vector<2x32xf32>
    %523 = arith.mulf %518, %522 : vector<2x32xf32>
    %c10_203 = arith.constant 10 : index
    %c0_204 = arith.constant 0 : index
    %524 = vector.load %arg18[%c10_203, %c0_204] : memref<16x32xf32, #tpu.memory_space<vmem>>, vector<2x32xf32>
    tpu.vector_store %arg18[%c10_203, %c0_204], %523 {strides = array<i32>} : memref<16x32xf32, #tpu.memory_space<vmem>>, vector<2x32xf32>,
    %525 = vector.extract_strided_slice %405 {offsets = [12, 0], sizes = [2, 128], strides = [1, 1]} : vector<16x128xf32> to vector<2x128xf32>
    %cst_205 = arith.constant dense<0.000000e+00> : vector<2x128xf32>
    %526 = tpu.matmul %523, %406, %cst_205 {dimension_numbers = #tpu.dot_dimension_numbers<[1], [0], [0], [1], [0, 0, 1, 1], [], []>} : vector<2x32xf32>, vector<32x128xf32>, vector<2x128xf32> -> vector<2x128xf32>
    %527 = arith.addf %525, %526 : vector<2x128xf32>
    %528 = arith.negf %527 : vector<2x128xf32>
    %529 = math.exp %528 : vector<2x128xf32>
    %cst_206 = arith.constant 1.000000e+00 : f32
    %530 = vector.broadcast %cst_206 : f32 to vector<2x128xf32>
    %531 = arith.addf %530, %529 : vector<2x128xf32>
    %532 = arith.divf %530, %531 : vector<2x128xf32>
    %533 = math.tanh %527 : vector<2x128xf32>
    %534 = vector.extract_strided_slice %532 {offsets = [0, 0], sizes = [2, 32], strides = [1, 1]} : vector<2x128xf32> to vector<2x32xf32>
    %535 = vector.extract_strided_slice %532 {offsets = [0, 32], sizes = [2, 32], strides = [1, 1]} : vector<2x128xf32> to vector<2x32xf32>
    %536 = vector.extract_strided_slice %533 {offsets = [0, 64], sizes = [2, 32], strides = [1, 1]} : vector<2x128xf32> to vector<2x32xf32>
    %537 = vector.extract_strided_slice %532 {offsets = [0, 96], sizes = [2, 32], strides = [1, 1]} : vector<2x128xf32> to vector<2x32xf32>
    %538 = arith.mulf %535, %521 : vector<2x32xf32>
    %539 = arith.mulf %534, %536 : vector<2x32xf32>
    %540 = arith.addf %538, %539 : vector<2x32xf32>
    %541 = math.tanh %540 : vector<2x32xf32>
    %542 = arith.mulf %537, %541 : vector<2x32xf32>
    %c12_207 = arith.constant 12 : index
    %c0_208 = arith.constant 0 : index
    %543 = vector.load %arg18[%c12_207, %c0_208] : memref<16x32xf32, #tpu.memory_space<vmem>>, vector<2x32xf32>
    tpu.vector_store %arg18[%c12_207, %c0_208], %542 {strides = array<i32>} : memref<16x32xf32, #tpu.memory_space<vmem>>, vector<2x32xf32>,
    %544 = vector.extract_strided_slice %405 {offsets = [14, 0], sizes = [2, 128], strides = [1, 1]} : vector<16x128xf32> to vector<2x128xf32>
    %cst_209 = arith.constant dense<0.000000e+00> : vector<2x128xf32>
    %545 = tpu.matmul %542, %406, %cst_209 {dimension_numbers = #tpu.dot_dimension_numbers<[1], [0], [0], [1], [0, 0, 1, 1], [], []>} : vector<2x32xf32>, vector<32x128xf32>, vector<2x128xf32> -> vector<2x128xf32>
    %546 = arith.addf %544, %545 : vector<2x128xf32>
    %547 = arith.negf %546 : vector<2x128xf32>
    %548 = math.exp %547 : vector<2x128xf32>
    %cst_210 = arith.constant 1.000000e+00 : f32
    %549 = vector.broadcast %cst_210 : f32 to vector<2x128xf32>
    %550 = arith.addf %549, %548 : vector<2x128xf32>
    %551 = arith.divf %549, %550 : vector<2x128xf32>
    %552 = math.tanh %546 : vector<2x128xf32>
    %553 = vector.extract_strided_slice %551 {offsets = [0, 0], sizes = [2, 32], strides = [1, 1]} : vector<2x128xf32> to vector<2x32xf32>
    %554 = vector.extract_strided_slice %551 {offsets = [0, 32], sizes = [2, 32], strides = [1, 1]} : vector<2x128xf32> to vector<2x32xf32>
    %555 = vector.extract_strided_slice %552 {offsets = [0, 64], sizes = [2, 32], strides = [1, 1]} : vector<2x128xf32> to vector<2x32xf32>
    %556 = vector.extract_strided_slice %551 {offsets = [0, 96], sizes = [2, 32], strides = [1, 1]} : vector<2x128xf32> to vector<2x32xf32>
    %557 = arith.mulf %554, %540 : vector<2x32xf32>
    %558 = arith.mulf %553, %555 : vector<2x32xf32>
    %559 = arith.addf %557, %558 : vector<2x32xf32>
    %560 = math.tanh %559 : vector<2x32xf32>
    %561 = arith.mulf %556, %560 : vector<2x32xf32>
    %c14_211 = arith.constant 14 : index
    %c0_212 = arith.constant 0 : index
    %562 = vector.load %arg18[%c14_211, %c0_212] : memref<16x32xf32, #tpu.memory_space<vmem>>, vector<2x32xf32>
    tpu.vector_store %arg18[%c14_211, %c0_212], %561 {strides = array<i32>} : memref<16x32xf32, #tpu.memory_space<vmem>>, vector<2x32xf32>,
    %c2_213 = arith.constant 2 : index
    %c0_214 = arith.constant 0 : index
    %c0_215 = arith.constant 0 : index
    %563 = vector.load %arg15[%c2_213, %c0_214, %c0_215] : memref<3x2x32xf32, #tpu.memory_space<vmem>>, vector<1x2x32xf32>
    %564 = vector.shape_cast %563 : vector<1x2x32xf32> to vector<2x32xf32>
    %565 = vector.shape_cast %561 : vector<2x32xf32> to vector<1x2x32xf32>
    tpu.vector_store %arg15[%c2_213, %c0_214, %c0_215], %565 {strides = array<i32>} : memref<3x2x32xf32, #tpu.memory_space<vmem>>, vector<1x2x32xf32>,
    %c2_216 = arith.constant 2 : index
    %c0_217 = arith.constant 0 : index
    %c0_218 = arith.constant 0 : index
    %566 = vector.load %arg16[%c2_216, %c0_217, %c0_218] : memref<3x2x32xf32, #tpu.memory_space<vmem>>, vector<1x2x32xf32>
    %567 = vector.shape_cast %566 : vector<1x2x32xf32> to vector<2x32xf32>
    %568 = vector.shape_cast %559 : vector<2x32xf32> to vector<1x2x32xf32>
    tpu.vector_store %arg16[%c2_216, %c0_217, %c0_218], %568 {strides = array<i32>} : memref<3x2x32xf32, #tpu.memory_space<vmem>>, vector<1x2x32xf32>,
    %c0_219 = arith.constant 0 : index
    %c0_220 = arith.constant 0 : index
    %569 = vector.load %arg18[%c0_219, %c0_220] : memref<16x32xf32, #tpu.memory_space<vmem>>, vector<16x32xf32>
    %c0_221 = arith.constant 0 : index
    %c0_222 = arith.constant 0 : index
    %570 = vector.load %arg12[%c0_221, %c0_222] : memref<32x64xf32, #tpu.memory_space<vmem>>, vector<32x64xf32>
    %cst_223 = arith.constant dense<0.000000e+00> : vector<16x64xf32>
    %571 = tpu.matmul %569, %570, %cst_223 {dimension_numbers = #tpu.dot_dimension_numbers<[1], [0], [0], [1], [0, 0, 1, 1], [], []>} : vector<16x32xf32>, vector<32x64xf32>, vector<16x64xf32> -> vector<16x64xf32>
    %c0_224 = arith.constant 0 : index
    %c0_225 = arith.constant 0 : index
    %572 = vector.load %arg13[%c0_224, %c0_225] : memref<1x64xf32, #tpu.memory_space<vmem>>, vector<1x64xf32>
    %573 = vector.broadcast %572 : vector<1x64xf32> to vector<16x64xf32>
    %574 = arith.addf %571, %573 : vector<16x64xf32>
    %c0_226 = arith.constant 0 : index
    %c0_227 = arith.constant 0 : index
    %575 = vector.load %arg14[%c0_226, %c0_227] : memref<16x64xf32, #tpu.memory_space<vmem>>, vector<16x64xf32>
    tpu.vector_store %arg14[%c0_226, %c0_227], %574 {strides = array<i32>} : memref<16x64xf32, #tpu.memory_space<vmem>>, vector<16x64xf32>,
    return
  }
}

</mosaic_0001>

<llo_original>
// kernel: my_lstm_forward.1
$region0: #{my_lstm_forward.1}
  #allocation0 [shape = 'u32[]', space=smem, size = 0x4, offset = 0x4, fixed_abs, tag = 'smem constant byte address 0x4 - core index']
  #allocation1 [shape = 'u32[144,128]{1,0:T(1,128)}', space=vmem, size = 0x12000, scoped, tag = 'internal scratch']
  #allocation2 [shape = 'f32[16,128]{1,0:T(8,128)}', space=vmem, size = 0x2000, scoped, tag = 'scratch operand']
  #allocation3 [shape = 'f32[16,32]{1,0:T(8,128)}', space=vmem, size = 0x2000, scoped, tag = 'scratch operand']
  %s0 = inlined_call_operand.vmem [shape: s32[8,2], index: 0, kind: input, shape index: {}]
  %s1 = inlined_call_operand.vmem [shape: f32[3,2,32], index: 1, kind: input, shape index: {}]
  %s2 = inlined_call_operand.vmem [shape: f32[3,2,32], index: 2, kind: input, shape index: {}]
  %s3 = inlined_call_operand.hbm [shape: f32[64,128], index: 3, kind: input, shape index: {}]
  %s4 = inlined_call_operand.hbm [shape: f32[32,128], index: 4, kind: input, shape index: {}]
  %s5 = inlined_call_operand.hbm [shape: f32[1,128], index: 5, kind: input, shape index: {}]
  %s6 = inlined_call_operand.vmem [shape: f32[32,128], index: 6, kind: input, shape index: {}]
  %s7 = inlined_call_operand.hbm [shape: f32[32,128], index: 7, kind: input, shape index: {}]
  %s8 = inlined_call_operand.hbm [shape: f32[1,128], index: 8, kind: input, shape index: {}]
  %s9 = inlined_call_operand.hbm [shape: f32[32,128], index: 9, kind: input, shape index: {}]
  %s10 = inlined_call_operand.hbm [shape: f32[32,128], index: 10, kind: input, shape index: {}]
  %s11 = inlined_call_operand.hbm [shape: f32[1,128], index: 11, kind: input, shape index: {}]
  %s12 = inlined_call_operand.hbm [shape: f32[32,64], index: 12, kind: input, shape index: {}]
  %s13 = inlined_call_operand.hbm [shape: f32[1,64], index: 13, kind: input, shape index: {}]
  %s14 = inlined_call_operand.hbm [shape: f32[16,64], index: 14, kind: output, shape index: {0}]
  %s15 = inlined_call_operand.hbm [shape: f32[3,2,32], index: 15, kind: output, shape index: {1}]
  %s16 = inlined_call_operand.hbm [shape: f32[3,2,32], index: 16, kind: output, shape index: {2}]
  %17 = xla_tuple %s14, %s15, %s16
  %s18 = sld [smem:[#allocation0]]
  $region126: #{my_lstm_forward.1} parent=0
    _
  %s20 = ssub.s32 1, %s18
  %s21 = scalar_select 0, %s20, %s18
  $region1: #{my_lstm_forward.1} parent=0
    #allocation4 [shape = 'u8[4096]{0}', space=smem, size = 0x1000, scoped, tag = 'input window, operand 0, single buffered']
    #allocation5 [shape = 's32[1]{0}', space=sflag, size = 0x4, scoped, tag = 'scoped memory for my_lstm_forward.1']
    #allocation6 [shape = 's32[1]{0}', space=sflag, size = 0x4, scoped, tag = 'scoped memory for my_lstm_forward.1']
    #allocation7 [shape = 's32[1]{0}', space=sflag, size = 0x4, scoped, tag = 'scoped memory for my_lstm_forward.1']
    #allocation8 [shape = 'u8[32768]{0}', space=vmem, size = 0x8000, scoped, tag = 'input window, operand 3, single buffered']
    #allocation9 [shape = 'u8[16384]{0}', space=vmem, size = 0x4000, scoped, tag = 'input window, operand 4, single buffered']
    #allocation10 [shape = 's32[1]{0}', space=sflag, size = 0x4, scoped, tag = 'scoped memory for my_lstm_forward.1']
    #allocation11 [shape = 'u8[512]{0}', space=vmem, size = 0x400, scoped, tag = 'input window, operand 5, single buffered']
    #allocation12 [shape = 'u8[16384]{0}', space=vmem, size = 0x4000, scoped, tag = 'input window, operand 7, single buffered']
    #allocation13 [shape = 's32[1]{0}', space=sflag, size = 0x4, scoped, tag = 'scoped memory for my_lstm_forward.1']
    #allocation14 [shape = 'u8[512]{0}', space=vmem, size = 0x400, scoped, tag = 'input window, operand 8, single buffered']
    #allocation15 [shape = 'u8[16384]{0}', space=vmem, size = 0x4000, scoped, tag = 'input window, operand 9, single buffered']
    #allocation16 [shape = 's32[1]{0}', space=sflag, size = 0x4, scoped, tag = 'scoped memory for my_lstm_forward.1']
    #allocation17 [shape = 'u8[16384]{0}', space=vmem, size = 0x4000, scoped, tag = 'input window, operand 10, single buffered']
    #allocation18 [shape = 'u8[512]{0}', space=vmem, size = 0x400, scoped, tag = 'input window, operand 11, single buffered']
    #allocation19 [shape = 's32[1]{0}', space=sflag, size = 0x4, scoped, tag = 'scoped memory for my_lstm_forward.1']
    #allocation20 [shape = 'u8[16384]{0}', space=vmem, size = 0x4000, scoped, tag = 'input window, operand 12, single buffered']
    #allocation21 [shape = 'u8[512]{0}', space=vmem, size = 0x400, scoped, tag = 'input window, operand 13, single buffered']
    #allocation22 [shape = 's32[1]{0}', space=sflag, size = 0x4, scoped, tag = 'scoped memory for my_lstm_forward.1']
    #allocation23 [shape = 'u8[8192]{0}', space=vmem, size = 0x2000, scoped, tag = 'output window, operand 0, single buffered']
    #allocation24 [shape = 'u8[3072]{0}', space=vmem, size = 0xc00, scoped, tag = 'output window, operand 1, single buffered']
    #allocation25 [shape = 's32[1]{0}', space=sflag, size = 0x4, scoped, tag = 'scoped memory for my_lstm_forward.1']
    #allocation26 [shape = 'u8[3072]{0}', space=vmem, size = 0xc00, scoped, tag = 'output window, operand 2, single buffered']
    %22 = vsyncpa [#allocation7], 0
    %23 = vsyncpa [#allocation5], 0
    %24 = vsyncpa [#allocation10], 0
    %25 = vsyncpa [#allocation13], 0
    %26 = vsyncpa [#allocation16], 0
    %27 = vsyncpa [#allocation19], 0
    %28 = vsyncpa [#allocation22], 0
    %29 = vsyncpa [#allocation6], 0
    %30 = vsyncpa [#allocation25], 0
    // Predicated region
    $region2: #{my_lstm_forward.1} parent=1 // pred_check
      _
    $region3: #{my_lstm_forward.1} parent=1 // pred_check_branch
      %32 = sbr.rel (0) target = $region5
    $region4: #{my_lstm_forward.1} parent=1 // pred_region
      %s34 = ssub.s32 128, 128
      %35 = vsyncadd [#allocation7], %s34
      %s37 = sshll.u32 %s0, 4
      %s38 = int_to_ptr.vmem [resolvable:$true] %s37
      %40 = dma.vmem_to_smem %s38, 128, [#allocation4], [#allocation7]
    $region5: #{my_lstm_forward.1} parent=1 // pred_fallthru
      _
    // Predicated region
    $region6: #{my_lstm_forward.1} parent=1 // pred_check
      _
    $region7: #{my_lstm_forward.1} parent=1 // pred_check_branch
      %42 = sbr.rel (0) target = $region9
    $region8: #{my_lstm_forward.1} parent=1 // pred_region
      _
    $region9: #{my_lstm_forward.1} parent=1 // pred_fallthru
      _
    // Predicated region
    $region10: #{my_lstm_forward.1} parent=1 // pred_check
      _
    $region11: #{my_lstm_forward.1} parent=1 // pred_check_branch
      %44 = sbr.rel (0) target = $region13
    $region12: #{my_lstm_forward.1} parent=1 // pred_region
      _
    $region13: #{my_lstm_forward.1} parent=1 // pred_fallthru
      _
    // Predicated region
    $region14: #{my_lstm_forward.1} parent=1 // pred_check
      _
    $region15: #{my_lstm_forward.1} parent=1 // pred_check_branch
      %46 = sbr.rel (0) target = $region17
    $region16: #{my_lstm_forward.1} parent=1 // pred_region
      %s48 = ssub.s32 1024, 1024
      %49 = vsyncadd [#allocation5], %s48
      %s50 = sshll.u32 [#allocation8], 4
      %s51 = int_to_ptr.vmem [resolvable:$true] %s50
      %56 = dma.hbm_to_vmem [thread:$0]  %s3, 1024, %s51, [#allocation5], 128, 128, 8
    $region17: #{my_lstm_forward.1} parent=1 // pred_fallthru
      _
    // Predicated region
    $region18: #{my_lstm_forward.1} parent=1 // pred_check
      _
    $region19: #{my_lstm_forward.1} parent=1 // pred_check_branch
      %58 = sbr.rel (0) target = $region21
    $region20: #{my_lstm_forward.1} parent=1 // pred_region
      %s60 = ssub.s32 512, 512
      %61 = vsyncadd [#allocation10], %s60
      %s62 = sshll.u32 [#allocation9], 4
      %s63 = int_to_ptr.vmem [resolvable:$true] %s62
      %68 = dma.hbm_to_vmem [thread:$0]  %s4, 512, %s63, [#allocation10], 128, 128, 8
    $region21: #{my_lstm_forward.1} parent=1 // pred_fallthru
      _
    // Predicated region
    $region22: #{my_lstm_forward.1} parent=1 // pred_check
      _
    $region23: #{my_lstm_forward.1} parent=1 // pred_check_branch
      %70 = sbr.rel (0) target = $region25
    $region24: #{my_lstm_forward.1} parent=1 // pred_region
      %s72 = ssub.s32 16, 16
      %73 = vsyncadd [#allocation10], %s72
      %s75 = sshll.u32 [#allocation11], 4
      %s76 = int_to_ptr.vmem [resolvable:$true] %s75
      %78 = dma.hbm_to_vmem [thread:$0]  %s5, 16, %s76, [#allocation10]
    $region25: #{my_lstm_forward.1} parent=1 // pred_fallthru
      _
    // Predicated region
    $region26: #{my_lstm_forward.1} parent=1 // pred_check
      _
    $region27: #{my_lstm_forward.1} parent=1 // pred_check_branch
      %80 = sbr.rel (0) target = $region29
    $region28: #{my_lstm_forward.1} parent=1 // pred_region
      _
    $region29: #{my_lstm_forward.1} parent=1 // pred_fallthru
      _
    // Predicated region
    $region30: #{my_lstm_forward.1} parent=1 // pred_check
      _
    $region31: #{my_lstm_forward.1} parent=1 // pred_check_branch
      %82 = sbr.rel (0) target = $region33
    $region32: #{my_lstm_forward.1} parent=1 // pred_region
      %s84 = ssub.s32 512, 512
      %85 = vsyncadd [#allocation13], %s84
      %s86 = sshll.u32 [#allocation12], 4
      %s87 = int_to_ptr.vmem [resolvable:$true] %s86
      %92 = dma.hbm_to_vmem [thread:$0]  %s7, 512, %s87, [#allocation13], 128, 128, 8
    $region33: #{my_lstm_forward.1} parent=1 // pred_fallthru
      _
    // Predicated region
    $region34: #{my_lstm_forward.1} parent=1 // pred_check
      _
    $region35: #{my_lstm_forward.1} parent=1 // pred_check_branch
      %94 = sbr.rel (0) target = $region37
    $region36: #{my_lstm_forward.1} parent=1 // pred_region
      %s96 = ssub.s32 16, 16
      %97 = vsyncadd [#allocation13], %s96
      %s99 = sshll.u32 [#allocation14], 4
      %s100 = int_to_ptr.vmem [resolvable:$true] %s99
      %102 = dma.hbm_to_vmem [thread:$0]  %s8, 16, %s100, [#allocation13]
    $region37: #{my_lstm_forward.1} parent=1 // pred_fallthru
      _
    // Predicated region
    $region38: #{my_lstm_forward.1} parent=1 // pred_check
      _
    $region39: #{my_lstm_forward.1} parent=1 // pred_check_branch
      %104 = sbr.rel (0) target = $region41
    $region40: #{my_lstm_forward.1} parent=1 // pred_region
      %s106 = ssub.s32 512, 512
      %107 = vsyncadd [#allocation16], %s106
      %s108 = sshll.u32 [#allocation15], 4
      %s109 = int_to_ptr.vmem [resolvable:$true] %s108
      %114 = dma.hbm_to_vmem [thread:$0]  %s9, 512, %s109, [#allocation16], 128, 128, 8
    $region41: #{my_lstm_forward.1} parent=1 // pred_fallthru
      _
    // Predicated region
    $region42: #{my_lstm_forward.1} parent=1 // pred_check
      _
    $region43: #{my_lstm_forward.1} parent=1 // pred_check_branch
      %116 = sbr.rel (0) target = $region45
    $region44: #{my_lstm_forward.1} parent=1 // pred_region
      %s118 = ssub.s32 512, 512
      %119 = vsyncadd [#allocation16], %s118
      %s120 = sshll.u32 [#allocation17], 4
      %s121 = int_to_ptr.vmem [resolvable:$true] %s120
      %126 = dma.hbm_to_vmem [thread:$0]  %s10, 512, %s121, [#allocation16], 128, 128, 8
    $region45: #{my_lstm_forward.1} parent=1 // pred_fallthru
      _
    // Predicated region
    $region46: #{my_lstm_forward.1} parent=1 // pred_check
      _
    $region47: #{my_lstm_forward.1} parent=1 // pred_check_branch
      %128 = sbr.rel (0) target = $region49
    $region48: #{my_lstm_forward.1} parent=1 // pred_region
      %s130 = ssub.s32 16, 16
      %131 = vsyncadd [#allocation19], %s130
      %s133 = sshll.u32 [#allocation18], 4
      %s134 = int_to_ptr.vmem [resolvable:$true] %s133
      %136 = dma.hbm_to_vmem [thread:$0]  %s11, 16, %s134, [#allocation19]
    $region49: #{my_lstm_forward.1} parent=1 // pred_fallthru
      _
    // Predicated region
    $region50: #{my_lstm_forward.1} parent=1 // pred_check
      _
    $region51: #{my_lstm_forward.1} parent=1 // pred_check_branch
      %138 = sbr.rel (0) target = $region53
    $region52: #{my_lstm_forward.1} parent=1 // pred_region
      %s140 = ssub.s32 512, 512
      %141 = vsyncadd [#allocation19], %s140
      %s142 = sshll.u32 [#allocation20], 4
      %s143 = int_to_ptr.vmem [resolvable:$true] %s142
      %148 = dma.hbm_to_vmem [thread:$0]  %s12, 512, %s143, [#allocation19], 128, 128, 8
    $region53: #{my_lstm_forward.1} parent=1 // pred_fallthru
      _
    // Predicated region
    $region54: #{my_lstm_forward.1} parent=1 // pred_check
      _
    $region55: #{my_lstm_forward.1} parent=1 // pred_check_branch
      %150 = sbr.rel (0) target = $region57
    $region56: #{my_lstm_forward.1} parent=1 // pred_region
      %s152 = ssub.s32 16, 16
      %153 = vsyncadd [#allocation22], %s152
      %s155 = sshll.u32 [#allocation21], 4
      %s156 = int_to_ptr.vmem [resolvable:$true] %s155
      %158 = dma.hbm_to_vmem [thread:$0]  %s13, 16, %s156, [#allocation22]
    $region57: #{my_lstm_forward.1} parent=1 // pred_fallthru
      _
    // Predicated region
    $region58: #{my_lstm_forward.1} parent=1 // pred_check
      _
    $region59: #{my_lstm_forward.1} parent=1 // pred_check_branch
      %160 = sbr.rel (0) target = $region61
    $region60: #{my_lstm_forward.1} parent=1 // pred_region
      %161 = dma.done [#allocation7], 128
    $region61: #{my_lstm_forward.1} parent=1 // pred_fallthru
      _
    // Predicated region
    $region62: #{my_lstm_forward.1} parent=1 // pred_check
      _
    $region63: #{my_lstm_forward.1} parent=1 // pred_check_branch
      %163 = sbr.rel (0) target = $region65
    $region64: #{my_lstm_forward.1} parent=1 // pred_region
      %164 = dma.done [#allocation5], 1024
    $region65: #{my_lstm_forward.1} parent=1 // pred_fallthru
      _
    // Predicated region
    $region66: #{my_lstm_forward.1} parent=1 // pred_check
      _
    $region67: #{my_lstm_forward.1} parent=1 // pred_check_branch
      %166 = sbr.rel (0) target = $region69
    $region68: #{my_lstm_forward.1} parent=1 // pred_region
      %167 = dma.done [#allocation10], 512
    $region69: #{my_lstm_forward.1} parent=1 // pred_fallthru
      _
    // Predicated region
    $region70: #{my_lstm_forward.1} parent=1 // pred_check
      _
    $region71: #{my_lstm_forward.1} parent=1 // pred_check_branch
      %169 = sbr.rel (0) target = $region73
    $region72: #{my_lstm_forward.1} parent=1 // pred_region
      %170 = dma.done [#allocation10], 16
    $region73: #{my_lstm_forward.1} parent=1 // pred_fallthru
      _
    // Predicated region
    $region74: #{my_lstm_forward.1} parent=1 // pred_check
      _
    $region75: #{my_lstm_forward.1} parent=1 // pred_check_branch
      %172 = sbr.rel (0) target = $region77
    $region76: #{my_lstm_forward.1} parent=1 // pred_region
      %173 = dma.done [#allocation13], 512
    $region77: #{my_lstm_forward.1} parent=1 // pred_fallthru
      _
    // Predicated region
    $region78: #{my_lstm_forward.1} parent=1 // pred_check
      _
    $region79: #{my_lstm_forward.1} parent=1 // pred_check_branch
      %175 = sbr.rel (0) target = $region81
    $region80: #{my_lstm_forward.1} parent=1 // pred_region
      %176 = dma.done [#allocation13], 16
    $region81: #{my_lstm_forward.1} parent=1 // pred_fallthru
      _
    // Predicated region
    $region82: #{my_lstm_forward.1} parent=1 // pred_check
      _
    $region83: #{my_lstm_forward.1} parent=1 // pred_check_branch
      %178 = sbr.rel (0) target = $region85
    $region84: #{my_lstm_forward.1} parent=1 // pred_region
      %179 = dma.done [#allocation16], 512
    $region85: #{my_lstm_forward.1} parent=1 // pred_fallthru
      _
    // Predicated region
    $region86: #{my_lstm_forward.1} parent=1 // pred_check
      _
    $region87: #{my_lstm_forward.1} parent=1 // pred_check_branch
      %181 = sbr.rel (0) target = $region89
    $region88: #{my_lstm_forward.1} parent=1 // pred_region
      %182 = dma.done [#allocation16], 512
    $region89: #{my_lstm_forward.1} parent=1 // pred_fallthru
      _
    // Predicated region
    $region90: #{my_lstm_forward.1} parent=1 // pred_check
      _
    $region91: #{my_lstm_forward.1} parent=1 // pred_check_branch
      %184 = sbr.rel (0) target = $region93
    $region92: #{my_lstm_forward.1} parent=1 // pred_region
      %185 = dma.done [#allocation19], 16
    $region93: #{my_lstm_forward.1} parent=1 // pred_fallthru
      _
    // Predicated region
    $region94: #{my_lstm_forward.1} parent=1 // pred_check
      _
    $region95: #{my_lstm_forward.1} parent=1 // pred_check_branch
      %187 = sbr.rel (0) target = $region97
    $region96: #{my_lstm_forward.1} parent=1 // pred_region
      %188 = dma.done [#allocation19], 512
    $region97: #{my_lstm_forward.1} parent=1 // pred_fallthru
      _
    // Predicated region
    $region98: #{my_lstm_forward.1} parent=1 // pred_check
      _
    $region99: #{my_lstm_forward.1} parent=1 // pred_check_branch
      %190 = sbr.rel (0) target = $region101
    $region100: #{my_lstm_forward.1} parent=1 // pred_region
      %191 = dma.done [#allocation22], 16
    $region101: #{my_lstm_forward.1} parent=1 // pred_fallthru
      _
    %192 = sfence
    %s193 = sld [smem:[#allocation4]]
    %s194 = scalar_lea.vmem [#allocation8], %s193
    %v195 = vld [vmem:[%s194] sm:$0x1]
    %196 = vst [vmem:[#allocation2] sm:$0x1] %v195
    %s197 = sld [smem:[#allocation4 + $0x1]]
    %s198 = scalar_lea.vmem [#allocation8], %s197
    %v199 = vld [vmem:[%s198] sm:$0x1]
    %200 = vst [vmem:[#allocation2 + $0x1] sm:$0x1] %v199
    %s201 = sld [smem:[#allocation4 + $0x80]]
    %s202 = scalar_lea.vmem [#allocation8], %s201
    %v203 = vld [vmem:[%s202] sm:$0x1]
    %204 = vst [vmem:[#allocation2 + $0x2] sm:$0x1] %v203
    %s205 = sld [smem:[#allocation4 + $0x81]]
    %s206 = scalar_lea.vmem [#allocation8], %s205
    %v207 = vld [vmem:[%s206] sm:$0x1]
    %208 = vst [vmem:[#allocation2 + $0x3] sm:$0x1] %v207
    %s209 = sld [smem:[#allocation4 + $0x100]]
    %s210 = scalar_lea.vmem [#allocation8], %s209
    %v211 = vld [vmem:[%s210] sm:$0x1]
    %212 = vst [vmem:[#allocation2 + $0x4] sm:$0x1] %v211
    %s213 = sld [smem:[#allocation4 + $0x101]]
    %s214 = scalar_lea.vmem [#allocation8], %s213
    %v215 = vld [vmem:[%s214] sm:$0x1]
    %216 = vst [vmem:[#allocation2 + $0x5] sm:$0x1] %v215
    %s217 = sld [smem:[#allocation4 + $0x180]]
    %s218 = scalar_lea.vmem [#allocation8], %s217
    %v219 = vld [vmem:[%s218] sm:$0x1]
    %220 = vst [vmem:[#allocation2 + $0x6] sm:$0x1] %v219
    %s221 = sld [smem:[#allocation4 + $0x181]]
    %s222 = scalar_lea.vmem [#allocation8], %s221
    %v223 = vld [vmem:[%s222] sm:$0x1]
    %224 = vst [vmem:[#allocation2 + $0x7] sm:$0x1] %v223
    %s225 = sld [smem:[#allocation4 + $0x200]]
    %s226 = scalar_lea.vmem [#allocation8], %s225
    %v227 = vld [vmem:[%s226] sm:$0x1]
    %228 = vst [vmem:[#allocation2 + $0x8] sm:$0x1] %v227
    %s229 = sld [smem:[#allocation4 + $0x201]]
    %s230 = scalar_lea.vmem [#allocation8], %s229
    %v231 = vld [vmem:[%s230] sm:$0x1]
    %232 = vst [vmem:[#allocation2 + $0x9] sm:$0x1] %v231
    %s233 = sld [smem:[#allocation4 + $0x280]]
    %s234 = scalar_lea.vmem [#allocation8], %s233
    %v235 = vld [vmem:[%s234] sm:$0x1]
    %236 = vst [vmem:[#allocation2 + $0xa] sm:$0x1] %v235
    %s237 = sld [smem:[#allocation4 + $0x281]]
    %s238 = scalar_lea.vmem [#allocation8], %s237
    %v239 = vld [vmem:[%s238] sm:$0x1]
    %240 = vst [vmem:[#allocation2 + $0xb] sm:$0x1] %v239
    %s241 = sld [smem:[#allocation4 + $0x300]]
    %s242 = scalar_lea.vmem [#allocation8], %s241
    %v243 = vld [vmem:[%s242] sm:$0x1]
    %244 = vst [vmem:[#allocation2 + $0xc] sm:$0x1] %v243
    %s245 = sld [smem:[#allocation4 + $0x301]]
    %s246 = scalar_lea.vmem [#allocation8], %s245
    %v247 = vld [vmem:[%s246] sm:$0x1]
    %248 = vst [vmem:[#allocation2 + $0xd] sm:$0x1] %v247
    %s249 = sld [smem:[#allocation4 + $0x380]]
    %s250 = scalar_lea.vmem [#allocation8], %s249
    %v251 = vld [vmem:[%s250] sm:$0x1]
    %252 = vst [vmem:[#allocation2 + $0xe] sm:$0x1] %v251
    %s253 = sld [smem:[#allocation4 + $0x381]]
    %s254 = scalar_lea.vmem [#allocation8], %s253
    %v255 = vld [vmem:[%s254] sm:$0x1]
    %256 = vst [vmem:[#allocation2 + $0xf] sm:$0x1] %v255
    %v257 = vld [vmem:[#allocation2] sm:$0xff]
    %v258 = vld [vmem:[#allocation2 + $0x8] sm:$0xff]
    %v259 = vld [vmem:[#allocation11] sm:$0x1]
    %v261 = vlaneseq
    %v262 = vshrl.u32 %v261, 7
    %v263 = vsub.s32 0, %v262
    %v264 = vrot.slane %v259, %v263
    %v266 = vadd.f32 %v257, %v264
    %v267 = vadd.f32 %v258, %v264
    %v268 = vld [vmem:[#allocation9] sm:$0xff]
    %v269 = vld [vmem:[#allocation9 + $0x8] sm:$0xff]
    %v270 = vld [vmem:[#allocation9 + $0x10] sm:$0xff]
    %v271 = vld [vmem:[#allocation9 + $0x18] sm:$0xff]
    %v272 = vld [vmem:[%s1] sm:$0x3]
    %v273 = vld [vmem:[%s2] sm:$0x3]
    %vm274 = vcmask 261120
    %v276 = vsel %vm274, %v272, 0
    %278 = vmatprep.subr.mxu0 0.0
    %279 = vmatpush1.msra.mxu0 %v268
    %280 = vmatprep.subr.mxu0 0.0
    %281 = vmatpush1.msra.mxu0 %v269
    %282 = vmatprep.subr.mxu0 0.0
    %283 = vmatpush1.msra.mxu0 %v270
    %284 = vmatprep.subr.mxu0 0.0
    %285 = vmatpush1.msra.mxu0 %v271
    %286 = vmatprep.subr.mxu0 0.0
    %287 = vmatpush1.msra.mxu0 0.0
    %288 = vmatprep.subr.mxu0 0.0
    %289 = vmatpush1.msra.mxu0 0.0
    %290 = vmatprep.subr.mxu0 0.0
    %291 = vmatpush1.msra.mxu0 0.0
    %292 = vmatprep.subr.mxu0 0.0
    %293 = vmatpush1.msra.mxu0 0.0
    %294 = vmatprep.subr.mxu0 0.0
    %295 = vmatpush1.msra.mxu0 0.0
    %296 = vmatprep.subr.mxu0 0.0
    %297 = vmatpush1.msra.mxu0 0.0
    %298 = vmatprep.subr.mxu0 0.0
    %299 = vmatpush1.msra.mxu0 0.0
    %300 = vmatprep.subr.mxu0 0.0
    %301 = vmatpush1.msra.mxu0 0.0
    %302 = vmatprep.subr.mxu0 0.0
    %303 = vmatpush1.msra.mxu0 0.0
    %304 = vmatprep.subr.mxu0 0.0
    %305 = vmatpush1.msra.mxu0 0.0
    %306 = vmatprep.subr.mxu0 0.0
    %307 = vmatpush1.msra.mxu0 0.0
    %308 = vmatprep.subr.mxu0 0.0
    %309 = vmatpush1.msra.mxu0 0.0
    %310 = vmatprep.subr.mxu0 0.0
    %311 = vmatpush1.msra.mxu0 0.0
    %312 = vmatprep.subr.mxu0 0.0
    %313 = vmatpush1.msra.mxu0 0.0
    %314 = vmatprep.subr.mxu0 0.0
    %315 = vmatpush1.msra.mxu0 0.0
    %316 = vmatprep.subr.mxu0 0.0
    %317 = vmatpush1.msra.mxu0 0.0
    %318 = vmatprep.subr.mxu0 0.0
    %319 = vmatpush1.msra.mxu0 0.0
    %320 = vmatprep.subr.mxu0 0.0
    %321 = vmatpush1.msra.mxu0 0.0
    %322 = vmatprep.subr.mxu0 0.0
    %323 = vmatpush1.msra.mxu0 0.0
    %324 = vmatprep.subr.mxu0 0.0
    %325 = vmatpush1.msra.mxu0 0.0
    %326 = vmatprep.subr.mxu0 0.0
    %327 = vmatpush1.msra.mxu0 0.0
    %328 = vmatprep.subr.mxu0 0.0
    %329 = vmatpush1.msra.mxu0 0.0
    %330 = vmatprep.subr.mxu0 0.0
    %331 = vmatpush1.msra.mxu0 0.0
    %332 = vmatprep.subr.mxu0 0.0
    %333 = vmatpush1.msra.mxu0 0.0
    %334 = vmatprep.subr.mxu0 0.0
    %335 = vmatpush1.msra.mxu0 0.0
    %336 = vmatprep.subr.mxu0 0.0
    %337 = vmatpush1.msra.mxu0 0.0
    %338 = vmatprep.subr.mxu0 0.0
    %339 = vmatpush1.msra.mxu0 0.0
    %340 = vmatprep.subr.mxu0 0.0
    %341 = vmatpush1.msra.mxu0 0.0
    %342 = vmatprep.mubr.f32.mxu0 0.0
    %343 = vmatmul.mubr.f32.gmra.mrb[0].mxu0 %v276
    %v344 = vpop.f32.mrb[0].mxu0
    %v345 = vadd.f32 0.0, %v344
    %v346 = vpop.f32.mrb[0].mxu0
    %347 = vdwg.mxu0
    %v348 = vadd.f32 %v266, %v345
    %v349 = vxor.u32 %v348, 2147483648
    %v350 = vmul.f32 %v349, 1.442695
    %v351 = vpow.pop %v350
    %v352 = vadd.f32 %v351, 1.0
    %v353 = vrcp.pop %v352
    %v354 = vmul.f32 1.0, %v353
    %v355 = vtanh.pop %v348
    %357 = vrot.lane.b32.xlu0 %v273, 32
    %v358 = vpop.permute.xlu0 %357
    %v360 = vmul.f32 %v354, %v358
    %362 = vrot.lane.b32.xlu0 %v355, 64
    %v363 = vpop.permute.xlu0 %362
    %v365 = vmul.f32 %v354, %v363
    %367 = vrot.lane.b32.xlu0 %v365, 32
    %v368 = vpop.permute.xlu0 %367
    %v370 = vadd.f32 %v360, %v368
    %v371 = vtanh.pop %v370
    %373 = vrot.lane.b32.xlu0 %v371, 64
    %v374 = vpop.permute.xlu0 %373
    %v376 = vmul.f32 %v354, %v374
    %378 = vrot.lane.b32.xlu0 %v376, 32
    %v379 = vpop.permute.xlu0 %378
    %vm381 = vcmask 254976
    %382 = vst.msk [vmem:[#allocation3] sm:$0x3] %vm381, %v379
    %v383 = vsel %vm274, %v379, 0
    %385 = vmatprep.subr.mxu0 0.0
    %386 = vmatpush1.msra.mxu0 %v268
    %387 = vmatprep.subr.mxu0 0.0
    %388 = vmatpush1.msra.mxu0 %v269
    %389 = vmatprep.subr.mxu0 0.0
    %390 = vmatpush1.msra.mxu0 %v270
    %391 = vmatprep.subr.mxu0 0.0
    %392 = vmatpush1.msra.mxu0 %v271
    %393 = vmatprep.subr.mxu0 0.0
    %394 = vmatpush1.msra.mxu0 0.0
    %395 = vmatprep.subr.mxu0 0.0
    %396 = vmatpush1.msra.mxu0 0.0
    %397 = vmatprep.subr.mxu0 0.0
    %398 = vmatpush1.msra.mxu0 0.0
    %399 = vmatprep.subr.mxu0 0.0
    %400 = vmatpush1.msra.mxu0 0.0
    %401 = vmatprep.subr.mxu0 0.0
    %402 = vmatpush1.msra.mxu0 0.0
    %403 = vmatprep.subr.mxu0 0.0
    %404 = vmatpush1.msra.mxu0 0.0
    %405 = vmatprep.subr.mxu0 0.0
    %406 = vmatpush1.msra.mxu0 0.0
    %407 = vmatprep.subr.mxu0 0.0
    %408 = vmatpush1.msra.mxu0 0.0
    %409 = vmatprep.subr.mxu0 0.0
    %410 = vmatpush1.msra.mxu0 0.0
    %411 = vmatprep.subr.mxu0 0.0
    %412 = vmatpush1.msra.mxu0 0.0
    %413 = vmatprep.subr.mxu0 0.0
    %414 = vmatpush1.msra.mxu0 0.0
    %415 = vmatprep.subr.mxu0 0.0
    %416 = vmatpush1.msra.mxu0 0.0
    %417 = vmatprep.subr.mxu0 0.0
    %418 = vmatpush1.msra.mxu0 0.0
    %419 = vmatprep.subr.mxu0 0.0
    %420 = vmatpush1.msra.mxu0 0.0
    %421 = vmatprep.subr.mxu0 0.0
    %422 = vmatpush1.msra.mxu0 0.0
    %423 = vmatprep.subr.mxu0 0.0
    %424 = vmatpush1.msra.mxu0 0.0
    %425 = vmatprep.subr.mxu0 0.0
    %426 = vmatpush1.msra.mxu0 0.0
    %427 = vmatprep.subr.mxu0 0.0
    %428 = vmatpush1.msra.mxu0 0.0
    %429 = vmatprep.subr.mxu0 0.0
    %430 = vmatpush1.msra.mxu0 0.0
    %431 = vmatprep.subr.mxu0 0.0
    %432 = vmatpush1.msra.mxu0 0.0
    %433 = vmatprep.subr.mxu0 0.0
    %434 = vmatpush1.msra.mxu0 0.0
    %435 = vmatprep.subr.mxu0 0.0
    %436 = vmatpush1.msra.mxu0 0.0
    %437 = vmatprep.subr.mxu0 0.0
    %438 = vmatpush1.msra.mxu0 0.0
    %439 = vmatprep.subr.mxu0 0.0
    %440 = vmatpush1.msra.mxu0 0.0
    %441 = vmatprep.subr.mxu0 0.0
    %442 = vmatpush1.msra.mxu0 0.0
    %443 = vmatprep.subr.mxu0 0.0
    %444 = vmatpush1.msra.mxu0 0.0
    %445 = vmatprep.subr.mxu0 0.0
    %446 = vmatpush1.msra.mxu0 0.0
    %447 = vmatprep.subr.mxu0 0.0
    %448 = vmatpush1.msra.mxu0 0.0
    %449 = vmatprep.mubr.f32.mxu0 0.0
    %450 = vmatmul.mubr.f32.gmra.mrb[0].mxu0 %v383
    %v451 = vpop.f32.mrb[0].mxu0
    %v452 = vadd.f32 0.0, %v451
    %v453 = vpop.f32.mrb[0].mxu0
    %454 = vdwg.mxu0
    %v456 = vrot.slane %v452, 6
    %v458 = vadd.f32 %v266, %v456
    %v459 = vxor.u32 %v458, 2147483648
    %v460 = vmul.f32 %v459, 1.442695
    %v461 = vpow.pop %v460
    %v462 = vadd.f32 %v461, 1.0
    %v463 = vrcp.pop %v462
    %v464 = vmul.f32 1.0, %v463
    %v465 = vtanh.pop %v458
    %v467 = vrot.slane %v370, 6
    %v469 = vmul.f32 %v464, %v467
    %471 = vrot.lane.b32.xlu0 %v465, 64
    %v472 = vpop.permute.xlu0 %471
    %v474 = vmul.f32 %v464, %v472
    %476 = vrot.lane.b32.xlu0 %v474, 32
    %v477 = vpop.permute.xlu0 %476
    %v479 = vadd.f32 %v469, %v477
    %v480 = vtanh.pop %v479
    %482 = vrot.lane.b32.xlu0 %v480, 64
    %v483 = vpop.permute.xlu0 %482
    %v485 = vmul.f32 %v464, %v483
    %487 = vrot.lane.b32.xlu0 %v485, 32
    %v488 = vpop.permute.xlu0 %487
    %vm490 = vcmask 257026
    %491 = vst.msk [vmem:[#allocation3] sm:$0xc] %vm490, %v488
    %v492 = vrot.slane %v485, 2
    %493 = vrot.lane.b32.xlu0 %v492, 32
    %v494 = vpop.permute.xlu0 %493
    %v495 = vsel %vm274, %v494, 0
    %497 = vmatprep.subr.mxu0 0.0
    %498 = vmatpush1.msra.mxu0 %v268
    %499 = vmatprep.subr.mxu0 0.0
    %500 = vmatpush1.msra.mxu0 %v269
    %501 = vmatprep.subr.mxu0 0.0
    %502 = vmatpush1.msra.mxu0 %v270
    %503 = vmatprep.subr.mxu0 0.0
    %504 = vmatpush1.msra.mxu0 %v271
    %505 = vmatprep.subr.mxu0 0.0
    %506 = vmatpush1.msra.mxu0 0.0
    %507 = vmatprep.subr.mxu0 0.0
    %508 = vmatpush1.msra.mxu0 0.0
    %509 = vmatprep.subr.mxu0 0.0
    %510 = vmatpush1.msra.mxu0 0.0
    %511 = vmatprep.subr.mxu0 0.0
    %512 = vmatpush1.msra.mxu0 0.0
    %513 = vmatprep.subr.mxu0 0.0
    %514 = vmatpush1.msra.mxu0 0.0
    %515 = vmatprep.subr.mxu0 0.0
    %516 = vmatpush1.msra.mxu0 0.0
    %517 = vmatprep.subr.mxu0 0.0
    %518 = vmatpush1.msra.mxu0 0.0
    %519 = vmatprep.subr.mxu0 0.0
    %520 = vmatpush1.msra.mxu0 0.0
    %521 = vmatprep.subr.mxu0 0.0
    %522 = vmatpush1.msra.mxu0 0.0
    %523 = vmatprep.subr.mxu0 0.0
    %524 = vmatpush1.msra.mxu0 0.0
    %525 = vmatprep.subr.mxu0 0.0
    %526 = vmatpush1.msra.mxu0 0.0
    %527 = vmatprep.subr.mxu0 0.0
    %528 = vmatpush1.msra.mxu0 0.0
    %529 = vmatprep.subr.mxu0 0.0
    %530 = vmatpush1.msra.mxu0 0.0
    %531 = vmatprep.subr.mxu0 0.0
    %532 = vmatpush1.msra.mxu0 0.0
    %533 = vmatprep.subr.mxu0 0.0
    %534 = vmatpush1.msra.mxu0 0.0
    %535 = vmatprep.subr.mxu0 0.0
    %536 = vmatpush1.msra.mxu0 0.0
    %537 = vmatprep.subr.mxu0 0.0
    %538 = vmatpush1.msra.mxu0 0.0
    %539 = vmatprep.subr.mxu0 0.0
    %540 = vmatpush1.msra.mxu0 0.0
    %541 = vmatprep.subr.mxu0 0.0
    %542 = vmatpush1.msra.mxu0 0.0
    %543 = vmatprep.subr.mxu0 0.0
    %544 = vmatpush1.msra.mxu0 0.0
    %545 = vmatprep.subr.mxu0 0.0
    %546 = vmatpush1.msra.mxu0 0.0
    %547 = vmatprep.subr.mxu0 0.0
    %548 = vmatpush1.msra.mxu0 0.0
    %549 = vmatprep.subr.mxu0 0.0
    %550 = vmatpush1.msra.mxu0 0.0
    %551 = vmatprep.subr.mxu0 0.0
    %552 = vmatpush1.msra.mxu0 0.0
    %553 = vmatprep.subr.mxu0 0.0
    %554 = vmatpush1.msra.mxu0 0.0
    %555 = vmatprep.subr.mxu0 0.0
    %556 = vmatpush1.msra.mxu0 0.0
    %557 = vmatprep.subr.mxu0 0.0
    %558 = vmatpush1.msra.mxu0 0.0
    %559 = vmatprep.subr.mxu0 0.0
    %560 = vmatpush1.msra.mxu0 0.0
    %561 = vmatprep.mubr.f32.mxu0 0.0
    %562 = vmatmul.mubr.f32.gmra.mrb[0].mxu0 %v495
    %v563 = vpop.f32.mrb[0].mxu0
    %v564 = vadd.f32 0.0, %v563
    %v565 = vpop.f32.mrb[0].mxu0
    %566 = vdwg.mxu0
    %v568 = vrot.slane %v564, 4
    %v570 = vadd.f32 %v266, %v568
    %v571 = vxor.u32 %v570, 2147483648
    %v572 = vmul.f32 %v571, 1.442695
    %v573 = vpow.pop %v572
    %v574 = vadd.f32 %v573, 1.0
    %v575 = vrcp.pop %v574
    %v576 = vmul.f32 1.0, %v575
    %v577 = vtanh.pop %v570
    %v579 = vrot.slane %v479, 6
    %v581 = vmul.f32 %v576, %v579
    %583 = vrot.lane.b32.xlu0 %v577, 64
    %v584 = vpop.permute.xlu0 %583
    %v586 = vmul.f32 %v576, %v584
    %588 = vrot.lane.b32.xlu0 %v586, 32
    %v589 = vpop.permute.xlu0 %588
    %v591 = vadd.f32 %v581, %v589
    %v592 = vtanh.pop %v591
    %594 = vrot.lane.b32.xlu0 %v592, 64
    %v595 = vpop.permute.xlu0 %594
    %v597 = vmul.f32 %v576, %v595
    %599 = vrot.lane.b32.xlu0 %v597, 32
    %v600 = vpop.permute.xlu0 %599
    %vm602 = vcmask 259076
    %603 = vst.msk [vmem:[#allocation3] sm:$0x30] %vm602, %v600
    %v604 = vrot.slane %v597, 4
    %605 = vrot.lane.b32.xlu0 %v604, 32
    %v606 = vpop.permute.xlu0 %605
    %v607 = vsel %vm274, %v606, 0
    %609 = vmatprep.subr.mxu0 0.0
    %610 = vmatpush1.msra.mxu0 %v268
    %611 = vmatprep.subr.mxu0 0.0
    %612 = vmatpush1.msra.mxu0 %v269
    %613 = vmatprep.subr.mxu0 0.0
    %614 = vmatpush1.msra.mxu0 %v270
    %615 = vmatprep.subr.mxu0 0.0
    %616 = vmatpush1.msra.mxu0 %v271
    %617 = vmatprep.subr.mxu0 0.0
    %618 = vmatpush1.msra.mxu0 0.0
    %619 = vmatprep.subr.mxu0 0.0
    %620 = vmatpush1.msra.mxu0 0.0
    %621 = vmatprep.subr.mxu0 0.0
    %622 = vmatpush1.msra.mxu0 0.0
    %623 = vmatprep.subr.mxu0 0.0
    %624 = vmatpush1.msra.mxu0 0.0
    %625 = vmatprep.subr.mxu0 0.0
    %626 = vmatpush1.msra.mxu0 0.0
    %627 = vmatprep.subr.mxu0 0.0
    %628 = vmatpush1.msra.mxu0 0.0
    %629 = vmatprep.subr.mxu0 0.0
    %630 = vmatpush1.msra.mxu0 0.0
    %631 = vmatprep.subr.mxu0 0.0
    %632 = vmatpush1.msra.mxu0 0.0
    %633 = vmatprep.subr.mxu0 0.0
    %634 = vmatpush1.msra.mxu0 0.0
    %635 = vmatprep.subr.mxu0 0.0
    %636 = vmatpush1.msra.mxu0 0.0
    %637 = vmatprep.subr.mxu0 0.0
    %638 = vmatpush1.msra.mxu0 0.0
    %639 = vmatprep.subr.mxu0 0.0
    %640 = vmatpush1.msra.mxu0 0.0
    %641 = vmatprep.subr.mxu0 0.0
    %642 = vmatpush1.msra.mxu0 0.0
    %643 = vmatprep.subr.mxu0 0.0
    %644 = vmatpush1.msra.mxu0 0.0
    %645 = vmatprep.subr.mxu0 0.0
    %646 = vmatpush1.msra.mxu0 0.0
    %647 = vmatprep.subr.mxu0 0.0
    %648 = vmatpush1.msra.mxu0 0.0
    %649 = vmatprep.subr.mxu0 0.0
    %650 = vmatpush1.msra.mxu0 0.0
    %651 = vmatprep.subr.mxu0 0.0
    %652 = vmatpush1.msra.mxu0 0.0
    %653 = vmatprep.subr.mxu0 0.0
    %654 = vmatpush1.msra.mxu0 0.0
    %655 = vmatprep.subr.mxu0 0.0
    %656 = vmatpush1.msra.mxu0 0.0
    %657 = vmatprep.subr.mxu0 0.0
    %658 = vmatpush1.msra.mxu0 0.0
    %659 = vmatprep.subr.mxu0 0.0
    %660 = vmatpush1.msra.mxu0 0.0
    %661 = vmatprep.subr.mxu0 0.0
    %662 = vmatpush1.msra.mxu0 0.0
    %663 = vmatprep.subr.mxu0 0.0
    %664 = vmatpush1.msra.mxu0 0.0
    %665 = vmatprep.subr.mxu0 0.0
    %666 = vmatpush1.msra.mxu0 0.0
    %667 = vmatprep.subr.mxu0 0.0
    %668 = vmatpush1.msra.mxu0 0.0
    %669 = vmatprep.subr.mxu0 0.0
    %670 = vmatpush1.msra.mxu0 0.0
    %671 = vmatprep.subr.mxu0 0.0
    %672 = vmatpush1.msra.mxu0 0.0
    %673 = vmatprep.mubr.f32.mxu0 0.0
    %674 = vmatmul.mubr.f32.gmra.mrb[0].mxu0 %v607
    %v675 = vpop.f32.mrb[0].mxu0
    %v676 = vadd.f32 0.0, %v675
    %v677 = vpop.f32.mrb[0].mxu0
    %678 = vdwg.mxu0
    %v680 = vrot.slane %v676, 2
    %v682 = vadd.f32 %v266, %v680
    %v683 = vxor.u32 %v682, 2147483648
    %v684 = vmul.f32 %v683, 1.442695
    %v685 = vpow.pop %v684
    %v686 = vadd.f32 %v685, 1.0
    %v687 = vrcp.pop %v686
    %v688 = vmul.f32 1.0, %v687
    %v689 = vtanh.pop %v682
    %v691 = vrot.slane %v591, 6
    %v693 = vmul.f32 %v688, %v691
    %695 = vrot.lane.b32.xlu0 %v689, 64
    %v696 = vpop.permute.xlu0 %695
    %v698 = vmul.f32 %v688, %v696
    %700 = vrot.lane.b32.xlu0 %v698, 32
    %v701 = vpop.permute.xlu0 %700
    %v703 = vadd.f32 %v693, %v701
    %v704 = vtanh.pop %v703
    %706 = vrot.lane.b32.xlu0 %v704, 64
    %v707 = vpop.permute.xlu0 %706
    %v709 = vmul.f32 %v688, %v707
    %711 = vrot.lane.b32.xlu0 %v709, 32
    %v712 = vpop.permute.xlu0 %711
    %vm714 = vcmask 261126
    %715 = vst.msk [vmem:[#allocation3] sm:$0xc0] %vm714, %v712
    %v716 = vrot.slane %v709, 6
    %717 = vrot.lane.b32.xlu0 %v716, 32
    %v718 = vpop.permute.xlu0 %717
    %v719 = vsel %vm274, %v718, 0
    %721 = vmatprep.subr.mxu0 0.0
    %722 = vmatpush1.msra.mxu0 %v268
    %723 = vmatprep.subr.mxu0 0.0
    %724 = vmatpush1.msra.mxu0 %v269
    %725 = vmatprep.subr.mxu0 0.0
    %726 = vmatpush1.msra.mxu0 %v270
    %727 = vmatprep.subr.mxu0 0.0
    %728 = vmatpush1.msra.mxu0 %v271
    %729 = vmatprep.subr.mxu0 0.0
    %730 = vmatpush1.msra.mxu0 0.0
    %731 = vmatprep.subr.mxu0 0.0
    %732 = vmatpush1.msra.mxu0 0.0
    %733 = vmatprep.subr.mxu0 0.0
    %734 = vmatpush1.msra.mxu0 0.0
    %735 = vmatprep.subr.mxu0 0.0
    %736 = vmatpush1.msra.mxu0 0.0
    %737 = vmatprep.subr.mxu0 0.0
    %738 = vmatpush1.msra.mxu0 0.0
    %739 = vmatprep.subr.mxu0 0.0
    %740 = vmatpush1.msra.mxu0 0.0
    %741 = vmatprep.subr.mxu0 0.0
    %742 = vmatpush1.msra.mxu0 0.0
    %743 = vmatprep.subr.mxu0 0.0
    %744 = vmatpush1.msra.mxu0 0.0
    %745 = vmatprep.subr.mxu0 0.0
    %746 = vmatpush1.msra.mxu0 0.0
    %747 = vmatprep.subr.mxu0 0.0
    %748 = vmatpush1.msra.mxu0 0.0
    %749 = vmatprep.subr.mxu0 0.0
    %750 = vmatpush1.msra.mxu0 0.0
    %751 = vmatprep.subr.mxu0 0.0
    %752 = vmatpush1.msra.mxu0 0.0
    %753 = vmatprep.subr.mxu0 0.0
    %754 = vmatpush1.msra.mxu0 0.0
    %755 = vmatprep.subr.mxu0 0.0
    %756 = vmatpush1.msra.mxu0 0.0
    %757 = vmatprep.subr.mxu0 0.0
    %758 = vmatpush1.msra.mxu0 0.0
    %759 = vmatprep.subr.mxu0 0.0
    %760 = vmatpush1.msra.mxu0 0.0
    %761 = vmatprep.subr.mxu0 0.0
    %762 = vmatpush1.msra.mxu0 0.0
    %763 = vmatprep.subr.mxu0 0.0
    %764 = vmatpush1.msra.mxu0 0.0
    %765 = vmatprep.subr.mxu0 0.0
    %766 = vmatpush1.msra.mxu0 0.0
    %767 = vmatprep.subr.mxu0 0.0
    %768 = vmatpush1.msra.mxu0 0.0
    %769 = vmatprep.subr.mxu0 0.0
    %770 = vmatpush1.msra.mxu0 0.0
    %771 = vmatprep.subr.mxu0 0.0
    %772 = vmatpush1.msra.mxu0 0.0
    %773 = vmatprep.subr.mxu0 0.0
    %774 = vmatpush1.msra.mxu0 0.0
    %775 = vmatprep.subr.mxu0 0.0
    %776 = vmatpush1.msra.mxu0 0.0
    %777 = vmatprep.subr.mxu0 0.0
    %778 = vmatpush1.msra.mxu0 0.0
    %779 = vmatprep.subr.mxu0 0.0
    %780 = vmatpush1.msra.mxu0 0.0
    %781 = vmatprep.subr.mxu0 0.0
    %782 = vmatpush1.msra.mxu0 0.0
    %783 = vmatprep.subr.mxu0 0.0
    %784 = vmatpush1.msra.mxu0 0.0
    %785 = vmatprep.mubr.f32.mxu0 0.0
    %786 = vmatmul.mubr.f32.gmra.mrb[0].mxu0 %v719
    %v787 = vpop.f32.mrb[0].mxu0
    %v788 = vadd.f32 0.0, %v787
    %v789 = vpop.f32.mrb[0].mxu0
    %790 = vdwg.mxu0
    %v791 = vadd.f32 %v267, %v788
    %v792 = vxor.u32 %v791, 2147483648
    %v793 = vmul.f32 %v792, 1.442695
    %v794 = vpow.pop %v793
    %v795 = vadd.f32 %v794, 1.0
    %v796 = vrcp.pop %v795
    %v797 = vmul.f32 1.0, %v796
    %v798 = vtanh.pop %v791
    %v800 = vrot.slane %v703, 6
    %v802 = vmul.f32 %v797, %v800
    %804 = vrot.lane.b32.xlu0 %v798, 64
    %v805 = vpop.permute.xlu0 %804
    %v807 = vmul.f32 %v797, %v805
    %809 = vrot.lane.b32.xlu0 %v807, 32
    %v810 = vpop.permute.xlu0 %809
    %v812 = vadd.f32 %v802, %v810
    %v813 = vtanh.pop %v812
    %815 = vrot.lane.b32.xlu0 %v813, 64
    %v816 = vpop.permute.xlu0 %815
    %v818 = vmul.f32 %v797, %v816
    %820 = vrot.lane.b32.xlu0 %v818, 32
    %v821 = vpop.permute.xlu0 %820
    %823 = vst.msk [vmem:[#allocation3 + $0x8] sm:$0x3] %vm381, %v821
    %v824 = vsel %vm274, %v821, 0
    %826 = vmatprep.subr.mxu0 0.0
    %827 = vmatpush1.msra.mxu0 %v268
    %828 = vmatprep.subr.mxu0 0.0
    %829 = vmatpush1.msra.mxu0 %v269
    %830 = vmatprep.subr.mxu0 0.0
    %831 = vmatpush1.msra.mxu0 %v270
    %832 = vmatprep.subr.mxu0 0.0
    %833 = vmatpush1.msra.mxu0 %v271
    %834 = vmatprep.subr.mxu0 0.0
    %835 = vmatpush1.msra.mxu0 0.0
    %836 = vmatprep.subr.mxu0 0.0
    %837 = vmatpush1.msra.mxu0 0.0
    %838 = vmatprep.subr.mxu0 0.0
    %839 = vmatpush1.msra.mxu0 0.0
    %840 = vmatprep.subr.mxu0 0.0
    %841 = vmatpush1.msra.mxu0 0.0
    %842 = vmatprep.subr.mxu0 0.0
    %843 = vmatpush1.msra.mxu0 0.0
    %844 = vmatprep.subr.mxu0 0.0
    %845 = vmatpush1.msra.mxu0 0.0
    %846 = vmatprep.subr.mxu0 0.0
    %847 = vmatpush1.msra.mxu0 0.0
    %848 = vmatprep.subr.mxu0 0.0
    %849 = vmatpush1.msra.mxu0 0.0
    %850 = vmatprep.subr.mxu0 0.0
    %851 = vmatpush1.msra.mxu0 0.0
    %852 = vmatprep.subr.mxu0 0.0
    %853 = vmatpush1.msra.mxu0 0.0
    %854 = vmatprep.subr.mxu0 0.0
    %855 = vmatpush1.msra.mxu0 0.0
    %856 = vmatprep.subr.mxu0 0.0
    %857 = vmatpush1.msra.mxu0 0.0
    %858 = vmatprep.subr.mxu0 0.0
    %859 = vmatpush1.msra.mxu0 0.0
    %860 = vmatprep.subr.mxu0 0.0
    %861 = vmatpush1.msra.mxu0 0.0
    %862 = vmatprep.subr.mxu0 0.0
    %863 = vmatpush1.msra.mxu0 0.0
    %864 = vmatprep.subr.mxu0 0.0
    %865 = vmatpush1.msra.mxu0 0.0
    %866 = vmatprep.subr.mxu0 0.0
    %867 = vmatpush1.msra.mxu0 0.0
    %868 = vmatprep.subr.mxu0 0.0
    %869 = vmatpush1.msra.mxu0 0.0
    %870 = vmatprep.subr.mxu0 0.0
    %871 = vmatpush1.msra.mxu0 0.0
    %872 = vmatprep.subr.mxu0 0.0
    %873 = vmatpush1.msra.mxu0 0.0
    %874 = vmatprep.subr.mxu0 0.0
    %875 = vmatpush1.msra.mxu0 0.0
    %876 = vmatprep.subr.mxu0 0.0
    %877 = vmatpush1.msra.mxu0 0.0
    %878 = vmatprep.subr.mxu0 0.0
    %879 = vmatpush1.msra.mxu0 0.0
    %880 = vmatprep.subr.mxu0 0.0
    %881 = vmatpush1.msra.mxu0 0.0
    %882 = vmatprep.subr.mxu0 0.0
    %883 = vmatpush1.msra.mxu0 0.0
    %884 = vmatprep.subr.mxu0 0.0
    %885 = vmatpush1.msra.mxu0 0.0
    %886 = vmatprep.subr.mxu0 0.0
    %887 = vmatpush1.msra.mxu0 0.0
    %888 = vmatprep.subr.mxu0 0.0
    %889 = vmatpush1.msra.mxu0 0.0
    %890 = vmatprep.mubr.f32.mxu0 0.0
    %891 = vmatmul.mubr.f32.gmra.mrb[0].mxu0 %v824
    %v892 = vpop.f32.mrb[0].mxu0
    %v893 = vadd.f32 0.0, %v892
    %v894 = vpop.f32.mrb[0].mxu0
    %895 = vdwg.mxu0
    %v897 = vrot.slane %v893, 6
    %v899 = vadd.f32 %v267, %v897
    %v900 = vxor.u32 %v899, 2147483648
    %v901 = vmul.f32 %v900, 1.442695
    %v902 = vpow.pop %v901
    %v903 = vadd.f32 %v902, 1.0
    %v904 = vrcp.pop %v903
    %v905 = vmul.f32 1.0, %v904
    %v906 = vtanh.pop %v899
    %v908 = vrot.slane %v812, 6
    %v910 = vmul.f32 %v905, %v908
    %912 = vrot.lane.b32.xlu0 %v906, 64
    %v913 = vpop.permute.xlu0 %912
    %v915 = vmul.f32 %v905, %v913
    %917 = vrot.lane.b32.xlu0 %v915, 32
    %v918 = vpop.permute.xlu0 %917
    %v920 = vadd.f32 %v910, %v918
    %v921 = vtanh.pop %v920
    %923 = vrot.lane.b32.xlu0 %v921, 64
    %v924 = vpop.permute.xlu0 %923
    %v926 = vmul.f32 %v905, %v924
    %928 = vrot.lane.b32.xlu0 %v926, 32
    %v929 = vpop.permute.xlu0 %928
    %931 = vst.msk [vmem:[#allocation3 + $0x8] sm:$0xc] %vm490, %v929
    %v932 = vrot.slane %v926, 2
    %933 = vrot.lane.b32.xlu0 %v932, 32
    %v934 = vpop.permute.xlu0 %933
    %v935 = vsel %vm274, %v934, 0
    %937 = vmatprep.subr.mxu0 0.0
    %938 = vmatpush1.msra.mxu0 %v268
    %939 = vmatprep.subr.mxu0 0.0
    %940 = vmatpush1.msra.mxu0 %v269
    %941 = vmatprep.subr.mxu0 0.0
    %942 = vmatpush1.msra.mxu0 %v270
    %943 = vmatprep.subr.mxu0 0.0
    %944 = vmatpush1.msra.mxu0 %v271
    %945 = vmatprep.subr.mxu0 0.0
    %946 = vmatpush1.msra.mxu0 0.0
    %947 = vmatprep.subr.mxu0 0.0
    %948 = vmatpush1.msra.mxu0 0.0
    %949 = vmatprep.subr.mxu0 0.0
    %950 = vmatpush1.msra.mxu0 0.0
    %951 = vmatprep.subr.mxu0 0.0
    %952 = vmatpush1.msra.mxu0 0.0
    %953 = vmatprep.subr.mxu0 0.0
    %954 = vmatpush1.msra.mxu0 0.0
    %955 = vmatprep.subr.mxu0 0.0
    %956 = vmatpush1.msra.mxu0 0.0
    %957 = vmatprep.subr.mxu0 0.0
    %958 = vmatpush1.msra.mxu0 0.0
    %959 = vmatprep.subr.mxu0 0.0
    %960 = vmatpush1.msra.mxu0 0.0
    %961 = vmatprep.subr.mxu0 0.0
    %962 = vmatpush1.msra.mxu0 0.0
    %963 = vmatprep.subr.mxu0 0.0
    %964 = vmatpush1.msra.mxu0 0.0
    %965 = vmatprep.subr.mxu0 0.0
    %966 = vmatpush1.msra.mxu0 0.0
    %967 = vmatprep.subr.mxu0 0.0
    %968 = vmatpush1.msra.mxu0 0.0
    %969 = vmatprep.subr.mxu0 0.0
    %970 = vmatpush1.msra.mxu0 0.0
    %971 = vmatprep.subr.mxu0 0.0
    %972 = vmatpush1.msra.mxu0 0.0
    %973 = vmatprep.subr.mxu0 0.0
    %974 = vmatpush1.msra.mxu0 0.0
    %975 = vmatprep.subr.mxu0 0.0
    %976 = vmatpush1.msra.mxu0 0.0
    %977 = vmatprep.subr.mxu0 0.0
    %978 = vmatpush1.msra.mxu0 0.0
    %979 = vmatprep.subr.mxu0 0.0
    %980 = vmatpush1.msra.mxu0 0.0
    %981 = vmatprep.subr.mxu0 0.0
    %982 = vmatpush1.msra.mxu0 0.0
    %983 = vmatprep.subr.mxu0 0.0
    %984 = vmatpush1.msra.mxu0 0.0
    %985 = vmatprep.subr.mxu0 0.0
    %986 = vmatpush1.msra.mxu0 0.0
    %987 = vmatprep.subr.mxu0 0.0
    %988 = vmatpush1.msra.mxu0 0.0
    %989 = vmatprep.subr.mxu0 0.0
    %990 = vmatpush1.msra.mxu0 0.0
    %991 = vmatprep.subr.mxu0 0.0
    %992 = vmatpush1.msra.mxu0 0.0
    %993 = vmatprep.subr.mxu0 0.0
    %994 = vmatpush1.msra.mxu0 0.0
    %995 = vmatprep.subr.mxu0 0.0
    %996 = vmatpush1.msra.mxu0 0.0
    %997 = vmatprep.subr.mxu0 0.0
    %998 = vmatpush1.msra.mxu0 0.0
    %999 = vmatprep.subr.mxu0 0.0
    %1000 = vmatpush1.msra.mxu0 0.0
    %1001 = vmatprep.mubr.f32.mxu0 0.0
    %1002 = vmatmul.mubr.f32.gmra.mrb[0].mxu0 %v935
    %v1003 = vpop.f32.mrb[0].mxu0
    %v1004 = vadd.f32 0.0, %v1003
    %v1005 = vpop.f32.mrb[0].mxu0
    %1006 = vdwg.mxu0
    %v1008 = vrot.slane %v1004, 4
    %v1010 = vadd.f32 %v267, %v1008
    %v1011 = vxor.u32 %v1010, 2147483648
    %v1012 = vmul.f32 %v1011, 1.442695
    %v1013 = vpow.pop %v1012
    %v1014 = vadd.f32 %v1013, 1.0
    %v1015 = vrcp.pop %v1014
    %v1016 = vmul.f32 1.0, %v1015
    %v1017 = vtanh.pop %v1010
    %v1019 = vrot.slane %v920, 6
    %v1021 = vmul.f32 %v1016, %v1019
    %1023 = vrot.lane.b32.xlu0 %v1017, 64
    %v1024 = vpop.permute.xlu0 %1023
    %v1026 = vmul.f32 %v1016, %v1024
    %1028 = vrot.lane.b32.xlu0 %v1026, 32
    %v1029 = vpop.permute.xlu0 %1028
    %v1031 = vadd.f32 %v1021, %v1029
    %v1032 = vtanh.pop %v1031
    %1034 = vrot.lane.b32.xlu0 %v1032, 64
    %v1035 = vpop.permute.xlu0 %1034
    %v1037 = vmul.f32 %v1016, %v1035
    %1039 = vrot.lane.b32.xlu0 %v1037, 32
    %v1040 = vpop.permute.xlu0 %1039
    %1042 = vst.msk [vmem:[#allocation3 + $0x8] sm:$0x30] %vm602, %v1040
    %v1043 = vrot.slane %v1037, 4
    %1044 = vrot.lane.b32.xlu0 %v1043, 32
    %v1045 = vpop.permute.xlu0 %1044
    %v1046 = vsel %vm274, %v1045, 0
    %1048 = vmatprep.subr.mxu0 0.0
    %1049 = vmatpush1.msra.mxu0 %v268
    %1050 = vmatprep.subr.mxu0 0.0
    %1051 = vmatpush1.msra.mxu0 %v269
    %1052 = vmatprep.subr.mxu0 0.0
    %1053 = vmatpush1.msra.mxu0 %v270
    %1054 = vmatprep.subr.mxu0 0.0
    %1055 = vmatpush1.msra.mxu0 %v271
    %1056 = vmatprep.subr.mxu0 0.0
    %1057 = vmatpush1.msra.mxu0 0.0
    %1058 = vmatprep.subr.mxu0 0.0
    %1059 = vmatpush1.msra.mxu0 0.0
    %1060 = vmatprep.subr.mxu0 0.0
    %1061 = vmatpush1.msra.mxu0 0.0
    %1062 = vmatprep.subr.mxu0 0.0
    %1063 = vmatpush1.msra.mxu0 0.0
    %1064 = vmatprep.subr.mxu0 0.0
    %1065 = vmatpush1.msra.mxu0 0.0
    %1066 = vmatprep.subr.mxu0 0.0
    %1067 = vmatpush1.msra.mxu0 0.0
    %1068 = vmatprep.subr.mxu0 0.0
    %1069 = vmatpush1.msra.mxu0 0.0
    %1070 = vmatprep.subr.mxu0 0.0
    %1071 = vmatpush1.msra.mxu0 0.0
    %1072 = vmatprep.subr.mxu0 0.0
    %1073 = vmatpush1.msra.mxu0 0.0
    %1074 = vmatprep.subr.mxu0 0.0
    %1075 = vmatpush1.msra.mxu0 0.0
    %1076 = vmatprep.subr.mxu0 0.0
    %1077 = vmatpush1.msra.mxu0 0.0
    %1078 = vmatprep.subr.mxu0 0.0
    %1079 = vmatpush1.msra.mxu0 0.0
    %1080 = vmatprep.subr.mxu0 0.0
    %1081 = vmatpush1.msra.mxu0 0.0
    %1082 = vmatprep.subr.mxu0 0.0
    %1083 = vmatpush1.msra.mxu0 0.0
    %1084 = vmatprep.subr.mxu0 0.0
    %1085 = vmatpush1.msra.mxu0 0.0
    %1086 = vmatprep.subr.mxu0 0.0
    %1087 = vmatpush1.msra.mxu0 0.0
    %1088 = vmatprep.subr.mxu0 0.0
    %1089 = vmatpush1.msra.mxu0 0.0
    %1090 = vmatprep.subr.mxu0 0.0
    %1091 = vmatpush1.msra.mxu0 0.0
    %1092 = vmatprep.subr.mxu0 0.0
    %1093 = vmatpush1.msra.mxu0 0.0
    %1094 = vmatprep.subr.mxu0 0.0
    %1095 = vmatpush1.msra.mxu0 0.0
    %1096 = vmatprep.subr.mxu0 0.0
    %1097 = vmatpush1.msra.mxu0 0.0
    %1098 = vmatprep.subr.mxu0 0.0
    %1099 = vmatpush1.msra.mxu0 0.0
    %1100 = vmatprep.subr.mxu0 0.0
    %1101 = vmatpush1.msra.mxu0 0.0
    %1102 = vmatprep.subr.mxu0 0.0
    %1103 = vmatpush1.msra.mxu0 0.0
    %1104 = vmatprep.subr.mxu0 0.0
    %1105 = vmatpush1.msra.mxu0 0.0
    %1106 = vmatprep.subr.mxu0 0.0
    %1107 = vmatpush1.msra.mxu0 0.0
    %1108 = vmatprep.subr.mxu0 0.0
    %1109 = vmatpush1.msra.mxu0 0.0
    %1110 = vmatprep.subr.mxu0 0.0
    %1111 = vmatpush1.msra.mxu0 0.0
    %1112 = vmatprep.mubr.f32.mxu0 0.0
    %1113 = vmatmul.mubr.f32.gmra.mrb[0].mxu0 %v1046
    %v1114 = vpop.f32.mrb[0].mxu0
    %v1115 = vadd.f32 0.0, %v1114
    %v1116 = vpop.f32.mrb[0].mxu0
    %1117 = vdwg.mxu0
    %v1119 = vrot.slane %v1115, 2
    %v1121 = vadd.f32 %v267, %v1119
    %v1122 = vxor.u32 %v1121, 2147483648
    %v1123 = vmul.f32 %v1122, 1.442695
    %v1124 = vpow.pop %v1123
    %v1125 = vadd.f32 %v1124, 1.0
    %v1126 = vrcp.pop %v1125
    %v1127 = vmul.f32 1.0, %v1126
    %v1128 = vtanh.pop %v1121
    %v1130 = vrot.slane %v1031, 6
    %v1132 = vmul.f32 %v1127, %v1130
    %1134 = vrot.lane.b32.xlu0 %v1128, 64
    %v1135 = vpop.permute.xlu0 %1134
    %v1137 = vmul.f32 %v1127, %v1135
    %1139 = vrot.lane.b32.xlu0 %v1137, 32
    %v1140 = vpop.permute.xlu0 %1139
    %v1142 = vadd.f32 %v1132, %v1140
    %v1143 = vtanh.pop %v1142
    %1145 = vrot.lane.b32.xlu0 %v1143, 64
    %v1146 = vpop.permute.xlu0 %1145
    %v1148 = vmul.f32 %v1127, %v1146
    %1150 = vrot.lane.b32.xlu0 %v1148, 32
    %v1151 = vpop.permute.xlu0 %1150
    %1153 = vst.msk [vmem:[#allocation3 + $0x8] sm:$0xc0] %vm714, %v1151
    %1154 = vst.msk [vmem:[#allocation24 - $0x6] sm:$0xc0] %vm714, %v1151
    %1156 = vrot.lane.b32.xlu0 %v1142, 96
    %v1157 = vpop.permute.xlu0 %1156
    %1159 = vst.msk [vmem:[#allocation26 - $0x6] sm:$0xc0] %vm714, %v1157
    %v1160 = vld [vmem:[%s6] sm:$0xff]
    %v1161 = vld [vmem:[%s6 + $0x8] sm:$0xff]
    %v1162 = vld [vmem:[%s6 + $0x10] sm:$0xff]
    %v1163 = vld [vmem:[%s6 + $0x18] sm:$0xff]
    %v1164 = vld [vmem:[#allocation14] sm:$0x1]
    %v1165 = vld [vmem:[#allocation3] sm:$0xff]
    %v1166 = vld [vmem:[#allocation3 + $0x8] sm:$0xff]
    %v1168 = vlaneseq
    %v1169 = vshrl.u32 %v1168, 7
    %v1170 = vsub.s32 0, %v1169
    %v1171 = vrot.slane %v1164, %v1170
    %v1174 = vsel %vm274, %v1165, 0
    %v1177 = vsel %vm274, %v1166, 0
    %1179 = vmatprep.subr.mxu0 0.0
    %1180 = vmatpush1.msra.mxu0 %v1160
    %1181 = vmatprep.subr.mxu0 0.0
    %1182 = vmatpush1.msra.mxu0 %v1161
    %1183 = vmatprep.subr.mxu0 0.0
    %1184 = vmatpush1.msra.mxu0 %v1162
    %1185 = vmatprep.subr.mxu0 0.0
    %1186 = vmatpush1.msra.mxu0 %v1163
    %1187 = vmatprep.subr.mxu0 0.0
    %1188 = vmatpush1.msra.mxu0 0.0
    %1189 = vmatprep.subr.mxu0 0.0
    %1190 = vmatpush1.msra.mxu0 0.0
    %1191 = vmatprep.subr.mxu0 0.0
    %1192 = vmatpush1.msra.mxu0 0.0
    %1193 = vmatprep.subr.mxu0 0.0
    %1194 = vmatpush1.msra.mxu0 0.0
    %1195 = vmatprep.subr.mxu0 0.0
    %1196 = vmatpush1.msra.mxu0 0.0
    %1197 = vmatprep.subr.mxu0 0.0
    %1198 = vmatpush1.msra.mxu0 0.0
    %1199 = vmatprep.subr.mxu0 0.0
    %1200 = vmatpush1.msra.mxu0 0.0
    %1201 = vmatprep.subr.mxu0 0.0
    %1202 = vmatpush1.msra.mxu0 0.0
    %1203 = vmatprep.subr.mxu0 0.0
    %1204 = vmatpush1.msra.mxu0 0.0
    %1205 = vmatprep.subr.mxu0 0.0
    %1206 = vmatpush1.msra.mxu0 0.0
    %1207 = vmatprep.subr.mxu0 0.0
    %1208 = vmatpush1.msra.mxu0 0.0
    %1209 = vmatprep.subr.mxu0 0.0
    %1210 = vmatpush1.msra.mxu0 0.0
    %1211 = vmatprep.subr.mxu0 0.0
    %1212 = vmatpush1.msra.mxu0 0.0
    %1213 = vmatprep.subr.mxu0 0.0
    %1214 = vmatpush1.msra.mxu0 0.0
    %1215 = vmatprep.subr.mxu0 0.0
    %1216 = vmatpush1.msra.mxu0 0.0
    %1217 = vmatprep.subr.mxu0 0.0
    %1218 = vmatpush1.msra.mxu0 0.0
    %1219 = vmatprep.subr.mxu0 0.0
    %1220 = vmatpush1.msra.mxu0 0.0
    %1221 = vmatprep.subr.mxu0 0.0
    %1222 = vmatpush1.msra.mxu0 0.0
    %1223 = vmatprep.subr.mxu0 0.0
    %1224 = vmatpush1.msra.mxu0 0.0
    %1225 = vmatprep.subr.mxu0 0.0
    %1226 = vmatpush1.msra.mxu0 0.0
    %1227 = vmatprep.subr.mxu0 0.0
    %1228 = vmatpush1.msra.mxu0 0.0
    %1229 = vmatprep.subr.mxu0 0.0
    %1230 = vmatpush1.msra.mxu0 0.0
    %1231 = vmatprep.subr.mxu0 0.0
    %1232 = vmatpush1.msra.mxu0 0.0
    %1233 = vmatprep.subr.mxu0 0.0
    %1234 = vmatpush1.msra.mxu0 0.0
    %1235 = vmatprep.subr.mxu0 0.0
    %1236 = vmatpush1.msra.mxu0 0.0
    %1237 = vmatprep.subr.mxu0 0.0
    %1238 = vmatpush1.msra.mxu0 0.0
    %1239 = vmatprep.subr.mxu0 0.0
    %1240 = vmatpush1.msra.mxu0 0.0
    %1241 = vmatprep.subr.mxu0 0.0
    %1242 = vmatpush1.msra.mxu0 0.0
    %1243 = vmatprep.mubr.f32.mxu0 0.0
    %1244 = vmatmul.mubr.f32.gmra.mrb[0].mxu0 %v1174
    %v1245 = vpop.f32.mrb[0].mxu0
    %v1246 = vadd.f32 %v1171, %v1245
    %v1247 = vpop.f32.mrb[0].mxu0
    %1248 = vmatprep.mubr.f32.mxu0 0.0
    %1249 = vmatmul.mubr.f32.gmra.mrb[0].mxu0 %v1177
    %v1250 = vpop.f32.mrb[0].mxu0
    %v1251 = vadd.f32 %v1171, %v1250
    %v1252 = vpop.f32.mrb[0].mxu0
    %1253 = vdwg.mxu0
    %v1254 = vld [vmem:[#allocation12] sm:$0xff]
    %v1255 = vld [vmem:[#allocation12 + $0x8] sm:$0xff]
    %v1256 = vld [vmem:[#allocation12 + $0x10] sm:$0xff]
    %v1257 = vld [vmem:[#allocation12 + $0x18] sm:$0xff]
    %s1258 = scalar_lea.vmem %s1, 2
    %v1259 = vld [vmem:[%s1258] sm:$0x3]
    %s1260 = scalar_lea.vmem %s2, 2
    %v1261 = vld [vmem:[%s1260] sm:$0x3]
    %v1263 = vsel %vm274, %v1259, 0
    %1265 = vmatprep.subr.mxu0 0.0
    %1266 = vmatpush1.msra.mxu0 %v1254
    %1267 = vmatprep.subr.mxu0 0.0
    %1268 = vmatpush1.msra.mxu0 %v1255
    %1269 = vmatprep.subr.mxu0 0.0
    %1270 = vmatpush1.msra.mxu0 %v1256
    %1271 = vmatprep.subr.mxu0 0.0
    %1272 = vmatpush1.msra.mxu0 %v1257
    %1273 = vmatprep.subr.mxu0 0.0
    %1274 = vmatpush1.msra.mxu0 0.0
    %1275 = vmatprep.subr.mxu0 0.0
    %1276 = vmatpush1.msra.mxu0 0.0
    %1277 = vmatprep.subr.mxu0 0.0
    %1278 = vmatpush1.msra.mxu0 0.0
    %1279 = vmatprep.subr.mxu0 0.0
    %1280 = vmatpush1.msra.mxu0 0.0
    %1281 = vmatprep.subr.mxu0 0.0
    %1282 = vmatpush1.msra.mxu0 0.0
    %1283 = vmatprep.subr.mxu0 0.0
    %1284 = vmatpush1.msra.mxu0 0.0
    %1285 = vmatprep.subr.mxu0 0.0
    %1286 = vmatpush1.msra.mxu0 0.0
    %1287 = vmatprep.subr.mxu0 0.0
    %1288 = vmatpush1.msra.mxu0 0.0
    %1289 = vmatprep.subr.mxu0 0.0
    %1290 = vmatpush1.msra.mxu0 0.0
    %1291 = vmatprep.subr.mxu0 0.0
    %1292 = vmatpush1.msra.mxu0 0.0
    %1293 = vmatprep.subr.mxu0 0.0
    %1294 = vmatpush1.msra.mxu0 0.0
    %1295 = vmatprep.subr.mxu0 0.0
    %1296 = vmatpush1.msra.mxu0 0.0
    %1297 = vmatprep.subr.mxu0 0.0
    %1298 = vmatpush1.msra.mxu0 0.0
    %1299 = vmatprep.subr.mxu0 0.0
    %1300 = vmatpush1.msra.mxu0 0.0
    %1301 = vmatprep.subr.mxu0 0.0
    %1302 = vmatpush1.msra.mxu0 0.0
    %1303 = vmatprep.subr.mxu0 0.0
    %1304 = vmatpush1.msra.mxu0 0.0
    %1305 = vmatprep.subr.mxu0 0.0
    %1306 = vmatpush1.msra.mxu0 0.0
    %1307 = vmatprep.subr.mxu0 0.0
    %1308 = vmatpush1.msra.mxu0 0.0
    %1309 = vmatprep.subr.mxu0 0.0
    %1310 = vmatpush1.msra.mxu0 0.0
    %1311 = vmatprep.subr.mxu0 0.0
    %1312 = vmatpush1.msra.mxu0 0.0
    %1313 = vmatprep.subr.mxu0 0.0
    %1314 = vmatpush1.msra.mxu0 0.0
    %1315 = vmatprep.subr.mxu0 0.0
    %1316 = vmatpush1.msra.mxu0 0.0
    %1317 = vmatprep.subr.mxu0 0.0
    %1318 = vmatpush1.msra.mxu0 0.0
    %1319 = vmatprep.subr.mxu0 0.0
    %1320 = vmatpush1.msra.mxu0 0.0
    %1321 = vmatprep.subr.mxu0 0.0
    %1322 = vmatpush1.msra.mxu0 0.0
    %1323 = vmatprep.subr.mxu0 0.0
    %1324 = vmatpush1.msra.mxu0 0.0
    %1325 = vmatprep.subr.mxu0 0.0
    %1326 = vmatpush1.msra.mxu0 0.0
    %1327 = vmatprep.subr.mxu0 0.0
    %1328 = vmatpush1.msra.mxu0 0.0
    %1329 = vmatprep.mubr.f32.mxu0 0.0
    %1330 = vmatmul.mubr.f32.gmra.mrb[0].mxu0 %v1263
    %v1331 = vpop.f32.mrb[0].mxu0
    %v1332 = vadd.f32 0.0, %v1331
    %v1333 = vpop.f32.mrb[0].mxu0
    %1334 = vdwg.mxu0
    %v1335 = vadd.f32 %v1246, %v1332
    %v1336 = vxor.u32 %v1335, 2147483648
    %v1337 = vmul.f32 %v1336, 1.442695
    %v1338 = vpow.pop %v1337
    %v1339 = vadd.f32 %v1338, 1.0
    %v1340 = vrcp.pop %v1339
    %v1341 = vmul.f32 1.0, %v1340
    %v1342 = vtanh.pop %v1335
    %1344 = vrot.lane.b32.xlu0 %v1261, 32
    %v1345 = vpop.permute.xlu0 %1344
    %v1347 = vmul.f32 %v1341, %v1345
    %1349 = vrot.lane.b32.xlu0 %v1342, 64
    %v1350 = vpop.permute.xlu0 %1349
    %v1352 = vmul.f32 %v1341, %v1350
    %1354 = vrot.lane.b32.xlu0 %v1352, 32
    %v1355 = vpop.permute.xlu0 %1354
    %v1357 = vadd.f32 %v1347, %v1355
    %v1358 = vtanh.pop %v1357
    %1360 = vrot.lane.b32.xlu0 %v1358, 64
    %v1361 = vpop.permute.xlu0 %1360
    %v1363 = vmul.f32 %v1341, %v1361
    %1365 = vrot.lane.b32.xlu0 %v1363, 32
    %v1366 = vpop.permute.xlu0 %1365
    %1368 = vst.msk [vmem:[#allocation3] sm:$0x3] %vm381, %v1366
    %v1369 = vsel %vm274, %v1366, 0
    %1371 = vmatprep.subr.mxu0 0.0
    %1372 = vmatpush1.msra.mxu0 %v1254
    %1373 = vmatprep.subr.mxu0 0.0
    %1374 = vmatpush1.msra.mxu0 %v1255
    %1375 = vmatprep.subr.mxu0 0.0
    %1376 = vmatpush1.msra.mxu0 %v1256
    %1377 = vmatprep.subr.mxu0 0.0
    %1378 = vmatpush1.msra.mxu0 %v1257
    %1379 = vmatprep.subr.mxu0 0.0
    %1380 = vmatpush1.msra.mxu0 0.0
    %1381 = vmatprep.subr.mxu0 0.0
    %1382 = vmatpush1.msra.mxu0 0.0
    %1383 = vmatprep.subr.mxu0 0.0
    %1384 = vmatpush1.msra.mxu0 0.0
    %1385 = vmatprep.subr.mxu0 0.0
    %1386 = vmatpush1.msra.mxu0 0.0
    %1387 = vmatprep.subr.mxu0 0.0
    %1388 = vmatpush1.msra.mxu0 0.0
    %1389 = vmatprep.subr.mxu0 0.0
    %1390 = vmatpush1.msra.mxu0 0.0
    %1391 = vmatprep.subr.mxu0 0.0
    %1392 = vmatpush1.msra.mxu0 0.0
    %1393 = vmatprep.subr.mxu0 0.0
    %1394 = vmatpush1.msra.mxu0 0.0
    %1395 = vmatprep.subr.mxu0 0.0
    %1396 = vmatpush1.msra.mxu0 0.0
    %1397 = vmatprep.subr.mxu0 0.0
    %1398 = vmatpush1.msra.mxu0 0.0
    %1399 = vmatprep.subr.mxu0 0.0
    %1400 = vmatpush1.msra.mxu0 0.0
    %1401 = vmatprep.subr.mxu0 0.0
    %1402 = vmatpush1.msra.mxu0 0.0
    %1403 = vmatprep.subr.mxu0 0.0
    %1404 = vmatpush1.msra.mxu0 0.0
    %1405 = vmatprep.subr.mxu0 0.0
    %1406 = vmatpush1.msra.mxu0 0.0
    %1407 = vmatprep.subr.mxu0 0.0
    %1408 = vmatpush1.msra.mxu0 0.0
    %1409 = vmatprep.subr.mxu0 0.0
    %1410 = vmatpush1.msra.mxu0 0.0
    %1411 = vmatprep.subr.mxu0 0.0
    %1412 = vmatpush1.msra.mxu0 0.0
    %1413 = vmatprep.subr.mxu0 0.0
    %1414 = vmatpush1.msra.mxu0 0.0
    %1415 = vmatprep.subr.mxu0 0.0
    %1416 = vmatpush1.msra.mxu0 0.0
    %1417 = vmatprep.subr.mxu0 0.0
    %1418 = vmatpush1.msra.mxu0 0.0
    %1419 = vmatprep.subr.mxu0 0.0
    %1420 = vmatpush1.msra.mxu0 0.0
    %1421 = vmatprep.subr.mxu0 0.0
    %1422 = vmatpush1.msra.mxu0 0.0
    %1423 = vmatprep.subr.mxu0 0.0
    %1424 = vmatpush1.msra.mxu0 0.0
    %1425 = vmatprep.subr.mxu0 0.0
    %1426 = vmatpush1.msra.mxu0 0.0
    %1427 = vmatprep.subr.mxu0 0.0
    %1428 = vmatpush1.msra.mxu0 0.0
    %1429 = vmatprep.subr.mxu0 0.0
    %1430 = vmatpush1.msra.mxu0 0.0
    %1431 = vmatprep.subr.mxu0 0.0
    %1432 = vmatpush1.msra.mxu0 0.0
    %1433 = vmatprep.subr.mxu0 0.0
    %1434 = vmatpush1.msra.mxu0 0.0
    %1435 = vmatprep.mubr.f32.mxu0 0.0
    %1436 = vmatmul.mubr.f32.gmra.mrb[0].mxu0 %v1369
    %v1437 = vpop.f32.mrb[0].mxu0
    %v1438 = vadd.f32 0.0, %v1437
    %v1439 = vpop.f32.mrb[0].mxu0
    %1440 = vdwg.mxu0
    %v1442 = vrot.slane %v1438, 6
    %v1444 = vadd.f32 %v1246, %v1442
    %v1445 = vxor.u32 %v1444, 2147483648
    %v1446 = vmul.f32 %v1445, 1.442695
    %v1447 = vpow.pop %v1446
    %v1448 = vadd.f32 %v1447, 1.0
    %v1449 = vrcp.pop %v1448
    %v1450 = vmul.f32 1.0, %v1449
    %v1451 = vtanh.pop %v1444
    %v1453 = vrot.slane %v1357, 6
    %v1455 = vmul.f32 %v1450, %v1453
    %1457 = vrot.lane.b32.xlu0 %v1451, 64
    %v1458 = vpop.permute.xlu0 %1457
    %v1460 = vmul.f32 %v1450, %v1458
    %1462 = vrot.lane.b32.xlu0 %v1460, 32
    %v1463 = vpop.permute.xlu0 %1462
    %v1465 = vadd.f32 %v1455, %v1463
    %v1466 = vtanh.pop %v1465
    %1468 = vrot.lane.b32.xlu0 %v1466, 64
    %v1469 = vpop.permute.xlu0 %1468
    %v1471 = vmul.f32 %v1450, %v1469
    %1473 = vrot.lane.b32.xlu0 %v1471, 32
    %v1474 = vpop.permute.xlu0 %1473
    %1476 = vst.msk [vmem:[#allocation3] sm:$0xc] %vm490, %v1474
    %v1477 = vrot.slane %v1471, 2
    %1478 = vrot.lane.b32.xlu0 %v1477, 32
    %v1479 = vpop.permute.xlu0 %1478
    %v1480 = vsel %vm274, %v1479, 0
    %1482 = vmatprep.subr.mxu0 0.0
    %1483 = vmatpush1.msra.mxu0 %v1254
    %1484 = vmatprep.subr.mxu0 0.0
    %1485 = vmatpush1.msra.mxu0 %v1255
    %1486 = vmatprep.subr.mxu0 0.0
    %1487 = vmatpush1.msra.mxu0 %v1256
    %1488 = vmatprep.subr.mxu0 0.0
    %1489 = vmatpush1.msra.mxu0 %v1257
    %1490 = vmatprep.subr.mxu0 0.0
    %1491 = vmatpush1.msra.mxu0 0.0
    %1492 = vmatprep.subr.mxu0 0.0
    %1493 = vmatpush1.msra.mxu0 0.0
    %1494 = vmatprep.subr.mxu0 0.0
    %1495 = vmatpush1.msra.mxu0 0.0
    %1496 = vmatprep.subr.mxu0 0.0
    %1497 = vmatpush1.msra.mxu0 0.0
    %1498 = vmatprep.subr.mxu0 0.0
    %1499 = vmatpush1.msra.mxu0 0.0
    %1500 = vmatprep.subr.mxu0 0.0
    %1501 = vmatpush1.msra.mxu0 0.0
    %1502 = vmatprep.subr.mxu0 0.0
    %1503 = vmatpush1.msra.mxu0 0.0
    %1504 = vmatprep.subr.mxu0 0.0
    %1505 = vmatpush1.msra.mxu0 0.0
    %1506 = vmatprep.subr.mxu0 0.0
    %1507 = vmatpush1.msra.mxu0 0.0
    %1508 = vmatprep.subr.mxu0 0.0
    %1509 = vmatpush1.msra.mxu0 0.0
    %1510 = vmatprep.subr.mxu0 0.0
    %1511 = vmatpush1.msra.mxu0 0.0
    %1512 = vmatprep.subr.mxu0 0.0
    %1513 = vmatpush1.msra.mxu0 0.0
    %1514 = vmatprep.subr.mxu0 0.0
    %1515 = vmatpush1.msra.mxu0 0.0
    %1516 = vmatprep.subr.mxu0 0.0
    %1517 = vmatpush1.msra.mxu0 0.0
    %1518 = vmatprep.subr.mxu0 0.0
    %1519 = vmatpush1.msra.mxu0 0.0
    %1520 = vmatprep.subr.mxu0 0.0
    %1521 = vmatpush1.msra.mxu0 0.0
    %1522 = vmatprep.subr.mxu0 0.0
    %1523 = vmatpush1.msra.mxu0 0.0
    %1524 = vmatprep.subr.mxu0 0.0
    %1525 = vmatpush1.msra.mxu0 0.0
    %1526 = vmatprep.subr.mxu0 0.0
    %1527 = vmatpush1.msra.mxu0 0.0
    %1528 = vmatprep.subr.mxu0 0.0
    %1529 = vmatpush1.msra.mxu0 0.0
    %1530 = vmatprep.subr.mxu0 0.0
    %1531 = vmatpush1.msra.mxu0 0.0
    %1532 = vmatprep.subr.mxu0 0.0
    %1533 = vmatpush1.msra.mxu0 0.0
    %1534 = vmatprep.subr.mxu0 0.0
    %1535 = vmatpush1.msra.mxu0 0.0
    %1536 = vmatprep.subr.mxu0 0.0
    %1537 = vmatpush1.msra.mxu0 0.0
    %1538 = vmatprep.subr.mxu0 0.0
    %1539 = vmatpush1.msra.mxu0 0.0
    %1540 = vmatprep.subr.mxu0 0.0
    %1541 = vmatpush1.msra.mxu0 0.0
    %1542 = vmatprep.subr.mxu0 0.0
    %1543 = vmatpush1.msra.mxu0 0.0
    %1544 = vmatprep.subr.mxu0 0.0
    %1545 = vmatpush1.msra.mxu0 0.0
    %1546 = vmatprep.mubr.f32.mxu0 0.0
    %1547 = vmatmul.mubr.f32.gmra.mrb[0].mxu0 %v1480
    %v1548 = vpop.f32.mrb[0].mxu0
    %v1549 = vadd.f32 0.0, %v1548
    %v1550 = vpop.f32.mrb[0].mxu0
    %1551 = vdwg.mxu0
    %v1553 = vrot.slane %v1549, 4
    %v1555 = vadd.f32 %v1246, %v1553
    %v1556 = vxor.u32 %v1555, 2147483648
    %v1557 = vmul.f32 %v1556, 1.442695
    %v1558 = vpow.pop %v1557
    %v1559 = vadd.f32 %v1558, 1.0
    %v1560 = vrcp.pop %v1559
    %v1561 = vmul.f32 1.0, %v1560
    %v1562 = vtanh.pop %v1555
    %v1564 = vrot.slane %v1465, 6
    %v1566 = vmul.f32 %v1561, %v1564
    %1568 = vrot.lane.b32.xlu0 %v1562, 64
    %v1569 = vpop.permute.xlu0 %1568
    %v1571 = vmul.f32 %v1561, %v1569
    %1573 = vrot.lane.b32.xlu0 %v1571, 32
    %v1574 = vpop.permute.xlu0 %1573
    %v1576 = vadd.f32 %v1566, %v1574
    %v1577 = vtanh.pop %v1576
    %1579 = vrot.lane.b32.xlu0 %v1577, 64
    %v1580 = vpop.permute.xlu0 %1579
    %v1582 = vmul.f32 %v1561, %v1580
    %1584 = vrot.lane.b32.xlu0 %v1582, 32
    %v1585 = vpop.permute.xlu0 %1584
    %1587 = vst.msk [vmem:[#allocation3] sm:$0x30] %vm602, %v1585
    %v1588 = vrot.slane %v1582, 4
    %1589 = vrot.lane.b32.xlu0 %v1588, 32
    %v1590 = vpop.permute.xlu0 %1589
    %v1591 = vsel %vm274, %v1590, 0
    %1593 = vmatprep.subr.mxu0 0.0
    %1594 = vmatpush1.msra.mxu0 %v1254
    %1595 = vmatprep.subr.mxu0 0.0
    %1596 = vmatpush1.msra.mxu0 %v1255
    %1597 = vmatprep.subr.mxu0 0.0
    %1598 = vmatpush1.msra.mxu0 %v1256
    %1599 = vmatprep.subr.mxu0 0.0
    %1600 = vmatpush1.msra.mxu0 %v1257
    %1601 = vmatprep.subr.mxu0 0.0
    %1602 = vmatpush1.msra.mxu0 0.0
    %1603 = vmatprep.subr.mxu0 0.0
    %1604 = vmatpush1.msra.mxu0 0.0
    %1605 = vmatprep.subr.mxu0 0.0
    %1606 = vmatpush1.msra.mxu0 0.0
    %1607 = vmatprep.subr.mxu0 0.0
    %1608 = vmatpush1.msra.mxu0 0.0
    %1609 = vmatprep.subr.mxu0 0.0
    %1610 = vmatpush1.msra.mxu0 0.0
    %1611 = vmatprep.subr.mxu0 0.0
    %1612 = vmatpush1.msra.mxu0 0.0
    %1613 = vmatprep.subr.mxu0 0.0
    %1614 = vmatpush1.msra.mxu0 0.0
    %1615 = vmatprep.subr.mxu0 0.0
    %1616 = vmatpush1.msra.mxu0 0.0
    %1617 = vmatprep.subr.mxu0 0.0
    %1618 = vmatpush1.msra.mxu0 0.0
    %1619 = vmatprep.subr.mxu0 0.0
    %1620 = vmatpush1.msra.mxu0 0.0
    %1621 = vmatprep.subr.mxu0 0.0
    %1622 = vmatpush1.msra.mxu0 0.0
    %1623 = vmatprep.subr.mxu0 0.0
    %1624 = vmatpush1.msra.mxu0 0.0
    %1625 = vmatprep.subr.mxu0 0.0
    %1626 = vmatpush1.msra.mxu0 0.0
    %1627 = vmatprep.subr.mxu0 0.0
    %1628 = vmatpush1.msra.mxu0 0.0
    %1629 = vmatprep.subr.mxu0 0.0
    %1630 = vmatpush1.msra.mxu0 0.0
    %1631 = vmatprep.subr.mxu0 0.0
    %1632 = vmatpush1.msra.mxu0 0.0
    %1633 = vmatprep.subr.mxu0 0.0
    %1634 = vmatpush1.msra.mxu0 0.0
    %1635 = vmatprep.subr.mxu0 0.0
    %1636 = vmatpush1.msra.mxu0 0.0
    %1637 = vmatprep.subr.mxu0 0.0
    %1638 = vmatpush1.msra.mxu0 0.0
    %1639 = vmatprep.subr.mxu0 0.0
    %1640 = vmatpush1.msra.mxu0 0.0
    %1641 = vmatprep.subr.mxu0 0.0
    %1642 = vmatpush1.msra.mxu0 0.0
    %1643 = vmatprep.subr.mxu0 0.0
    %1644 = vmatpush1.msra.mxu0 0.0
    %1645 = vmatprep.subr.mxu0 0.0
    %1646 = vmatpush1.msra.mxu0 0.0
    %1647 = vmatprep.subr.mxu0 0.0
    %1648 = vmatpush1.msra.mxu0 0.0
    %1649 = vmatprep.subr.mxu0 0.0
    %1650 = vmatpush1.msra.mxu0 0.0
    %1651 = vmatprep.subr.mxu0 0.0
    %1652 = vmatpush1.msra.mxu0 0.0
    %1653 = vmatprep.subr.mxu0 0.0
    %1654 = vmatpush1.msra.mxu0 0.0
    %1655 = vmatprep.subr.mxu0 0.0
    %1656 = vmatpush1.msra.mxu0 0.0
    %1657 = vmatprep.mubr.f32.mxu0 0.0
    %1658 = vmatmul.mubr.f32.gmra.mrb[0].mxu0 %v1591
    %v1659 = vpop.f32.mrb[0].mxu0
    %v1660 = vadd.f32 0.0, %v1659
    %v1661 = vpop.f32.mrb[0].mxu0
    %1662 = vdwg.mxu0
    %v1664 = vrot.slane %v1660, 2
    %v1666 = vadd.f32 %v1246, %v1664
    %v1667 = vxor.u32 %v1666, 2147483648
    %v1668 = vmul.f32 %v1667, 1.442695
    %v1669 = vpow.pop %v1668
    %v1670 = vadd.f32 %v1669, 1.0
    %v1671 = vrcp.pop %v1670
    %v1672 = vmul.f32 1.0, %v1671
    %v1673 = vtanh.pop %v1666
    %v1675 = vrot.slane %v1576, 6
    %v1677 = vmul.f32 %v1672, %v1675
    %1679 = vrot.lane.b32.xlu0 %v1673, 64
    %v1680 = vpop.permute.xlu0 %1679
    %v1682 = vmul.f32 %v1672, %v1680
    %1684 = vrot.lane.b32.xlu0 %v1682, 32
    %v1685 = vpop.permute.xlu0 %1684
    %v1687 = vadd.f32 %v1677, %v1685
    %v1688 = vtanh.pop %v1687
    %1690 = vrot.lane.b32.xlu0 %v1688, 64
    %v1691 = vpop.permute.xlu0 %1690
    %v1693 = vmul.f32 %v1672, %v1691
    %1695 = vrot.lane.b32.xlu0 %v1693, 32
    %v1696 = vpop.permute.xlu0 %1695
    %1698 = vst.msk [vmem:[#allocation3] sm:$0xc0] %vm714, %v1696
    %v1699 = vrot.slane %v1693, 6
    %1700 = vrot.lane.b32.xlu0 %v1699, 32
    %v1701 = vpop.permute.xlu0 %1700
    %v1702 = vsel %vm274, %v1701, 0
    %1704 = vmatprep.subr.mxu0 0.0
    %1705 = vmatpush1.msra.mxu0 %v1254
    %1706 = vmatprep.subr.mxu0 0.0
    %1707 = vmatpush1.msra.mxu0 %v1255
    %1708 = vmatprep.subr.mxu0 0.0
    %1709 = vmatpush1.msra.mxu0 %v1256
    %1710 = vmatprep.subr.mxu0 0.0
    %1711 = vmatpush1.msra.mxu0 %v1257
    %1712 = vmatprep.subr.mxu0 0.0
    %1713 = vmatpush1.msra.mxu0 0.0
    %1714 = vmatprep.subr.mxu0 0.0
    %1715 = vmatpush1.msra.mxu0 0.0
    %1716 = vmatprep.subr.mxu0 0.0
    %1717 = vmatpush1.msra.mxu0 0.0
    %1718 = vmatprep.subr.mxu0 0.0
    %1719 = vmatpush1.msra.mxu0 0.0
    %1720 = vmatprep.subr.mxu0 0.0
    %1721 = vmatpush1.msra.mxu0 0.0
    %1722 = vmatprep.subr.mxu0 0.0
    %1723 = vmatpush1.msra.mxu0 0.0
    %1724 = vmatprep.subr.mxu0 0.0
    %1725 = vmatpush1.msra.mxu0 0.0
    %1726 = vmatprep.subr.mxu0 0.0
    %1727 = vmatpush1.msra.mxu0 0.0
    %1728 = vmatprep.subr.mxu0 0.0
    %1729 = vmatpush1.msra.mxu0 0.0
    %1730 = vmatprep.subr.mxu0 0.0
    %1731 = vmatpush1.msra.mxu0 0.0
    %1732 = vmatprep.subr.mxu0 0.0
    %1733 = vmatpush1.msra.mxu0 0.0
    %1734 = vmatprep.subr.mxu0 0.0
    %1735 = vmatpush1.msra.mxu0 0.0
    %1736 = vmatprep.subr.mxu0 0.0
    %1737 = vmatpush1.msra.mxu0 0.0
    %1738 = vmatprep.subr.mxu0 0.0
    %1739 = vmatpush1.msra.mxu0 0.0
    %1740 = vmatprep.subr.mxu0 0.0
    %1741 = vmatpush1.msra.mxu0 0.0
    %1742 = vmatprep.subr.mxu0 0.0
    %1743 = vmatpush1.msra.mxu0 0.0
    %1744 = vmatprep.subr.mxu0 0.0
    %1745 = vmatpush1.msra.mxu0 0.0
    %1746 = vmatprep.subr.mxu0 0.0
    %1747 = vmatpush1.msra.mxu0 0.0
    %1748 = vmatprep.subr.mxu0 0.0
    %1749 = vmatpush1.msra.mxu0 0.0
    %1750 = vmatprep.subr.mxu0 0.0
    %1751 = vmatpush1.msra.mxu0 0.0
    %1752 = vmatprep.subr.mxu0 0.0
    %1753 = vmatpush1.msra.mxu0 0.0
    %1754 = vmatprep.subr.mxu0 0.0
    %1755 = vmatpush1.msra.mxu0 0.0
    %1756 = vmatprep.subr.mxu0 0.0
    %1757 = vmatpush1.msra.mxu0 0.0
    %1758 = vmatprep.subr.mxu0 0.0
    %1759 = vmatpush1.msra.mxu0 0.0
    %1760 = vmatprep.subr.mxu0 0.0
    %1761 = vmatpush1.msra.mxu0 0.0
    %1762 = vmatprep.subr.mxu0 0.0
    %1763 = vmatpush1.msra.mxu0 0.0
    %1764 = vmatprep.subr.mxu0 0.0
    %1765 = vmatpush1.msra.mxu0 0.0
    %1766 = vmatprep.subr.mxu0 0.0
    %1767 = vmatpush1.msra.mxu0 0.0
    %1768 = vmatprep.mubr.f32.mxu0 0.0
    %1769 = vmatmul.mubr.f32.gmra.mrb[0].mxu0 %v1702
    %v1770 = vpop.f32.mrb[0].mxu0
    %v1771 = vadd.f32 0.0, %v1770
    %v1772 = vpop.f32.mrb[0].mxu0
    %1773 = vdwg.mxu0
    %v1774 = vadd.f32 %v1251, %v1771
    %v1775 = vxor.u32 %v1774, 2147483648
    %v1776 = vmul.f32 %v1775, 1.442695
    %v1777 = vpow.pop %v1776
    %v1778 = vadd.f32 %v1777, 1.0
    %v1779 = vrcp.pop %v1778
    %v1780 = vmul.f32 1.0, %v1779
    %v1781 = vtanh.pop %v1774
    %v1783 = vrot.slane %v1687, 6
    %v1785 = vmul.f32 %v1780, %v1783
    %1787 = vrot.lane.b32.xlu0 %v1781, 64
    %v1788 = vpop.permute.xlu0 %1787
    %v1790 = vmul.f32 %v1780, %v1788
    %1792 = vrot.lane.b32.xlu0 %v1790, 32
    %v1793 = vpop.permute.xlu0 %1792
    %v1795 = vadd.f32 %v1785, %v1793
    %v1796 = vtanh.pop %v1795
    %1798 = vrot.lane.b32.xlu0 %v1796, 64
    %v1799 = vpop.permute.xlu0 %1798
    %v1801 = vmul.f32 %v1780, %v1799
    %1803 = vrot.lane.b32.xlu0 %v1801, 32
    %v1804 = vpop.permute.xlu0 %1803
    %1806 = vst.msk [vmem:[#allocation3 + $0x8] sm:$0x3] %vm381, %v1804
    %v1807 = vsel %vm274, %v1804, 0
    %1809 = vmatprep.subr.mxu0 0.0
    %1810 = vmatpush1.msra.mxu0 %v1254
    %1811 = vmatprep.subr.mxu0 0.0
    %1812 = vmatpush1.msra.mxu0 %v1255
    %1813 = vmatprep.subr.mxu0 0.0
    %1814 = vmatpush1.msra.mxu0 %v1256
    %1815 = vmatprep.subr.mxu0 0.0
    %1816 = vmatpush1.msra.mxu0 %v1257
    %1817 = vmatprep.subr.mxu0 0.0
    %1818 = vmatpush1.msra.mxu0 0.0
    %1819 = vmatprep.subr.mxu0 0.0
    %1820 = vmatpush1.msra.mxu0 0.0
    %1821 = vmatprep.subr.mxu0 0.0
    %1822 = vmatpush1.msra.mxu0 0.0
    %1823 = vmatprep.subr.mxu0 0.0
    %1824 = vmatpush1.msra.mxu0 0.0
    %1825 = vmatprep.subr.mxu0 0.0
    %1826 = vmatpush1.msra.mxu0 0.0
    %1827 = vmatprep.subr.mxu0 0.0
    %1828 = vmatpush1.msra.mxu0 0.0
    %1829 = vmatprep.subr.mxu0 0.0
    %1830 = vmatpush1.msra.mxu0 0.0
    %1831 = vmatprep.subr.mxu0 0.0
    %1832 = vmatpush1.msra.mxu0 0.0
    %1833 = vmatprep.subr.mxu0 0.0
    %1834 = vmatpush1.msra.mxu0 0.0
    %1835 = vmatprep.subr.mxu0 0.0
    %1836 = vmatpush1.msra.mxu0 0.0
    %1837 = vmatprep.subr.mxu0 0.0
    %1838 = vmatpush1.msra.mxu0 0.0
    %1839 = vmatprep.subr.mxu0 0.0
    %1840 = vmatpush1.msra.mxu0 0.0
    %1841 = vmatprep.subr.mxu0 0.0
    %1842 = vmatpush1.msra.mxu0 0.0
    %1843 = vmatprep.subr.mxu0 0.0
    %1844 = vmatpush1.msra.mxu0 0.0
    %1845 = vmatprep.subr.mxu0 0.0
    %1846 = vmatpush1.msra.mxu0 0.0
    %1847 = vmatprep.subr.mxu0 0.0
    %1848 = vmatpush1.msra.mxu0 0.0
    %1849 = vmatprep.subr.mxu0 0.0
    %1850 = vmatpush1.msra.mxu0 0.0
    %1851 = vmatprep.subr.mxu0 0.0
    %1852 = vmatpush1.msra.mxu0 0.0
    %1853 = vmatprep.subr.mxu0 0.0
    %1854 = vmatpush1.msra.mxu0 0.0
    %1855 = vmatprep.subr.mxu0 0.0
    %1856 = vmatpush1.msra.mxu0 0.0
    %1857 = vmatprep.subr.mxu0 0.0
    %1858 = vmatpush1.msra.mxu0 0.0
    %1859 = vmatprep.subr.mxu0 0.0
    %1860 = vmatpush1.msra.mxu0 0.0
    %1861 = vmatprep.subr.mxu0 0.0
    %1862 = vmatpush1.msra.mxu0 0.0
    %1863 = vmatprep.subr.mxu0 0.0
    %1864 = vmatpush1.msra.mxu0 0.0
    %1865 = vmatprep.subr.mxu0 0.0
    %1866 = vmatpush1.msra.mxu0 0.0
    %1867 = vmatprep.subr.mxu0 0.0
    %1868 = vmatpush1.msra.mxu0 0.0
    %1869 = vmatprep.subr.mxu0 0.0
    %1870 = vmatpush1.msra.mxu0 0.0
    %1871 = vmatprep.subr.mxu0 0.0
    %1872 = vmatpush1.msra.mxu0 0.0
    %1873 = vmatprep.mubr.f32.mxu0 0.0
    %1874 = vmatmul.mubr.f32.gmra.mrb[0].mxu0 %v1807
    %v1875 = vpop.f32.mrb[0].mxu0
    %v1876 = vadd.f32 0.0, %v1875
    %v1877 = vpop.f32.mrb[0].mxu0
    %1878 = vdwg.mxu0
    %v1880 = vrot.slane %v1876, 6
    %v1882 = vadd.f32 %v1251, %v1880
    %v1883 = vxor.u32 %v1882, 2147483648
    %v1884 = vmul.f32 %v1883, 1.442695
    %v1885 = vpow.pop %v1884
    %v1886 = vadd.f32 %v1885, 1.0
    %v1887 = vrcp.pop %v1886
    %v1888 = vmul.f32 1.0, %v1887
    %v1889 = vtanh.pop %v1882
    %v1891 = vrot.slane %v1795, 6
    %v1893 = vmul.f32 %v1888, %v1891
    %1895 = vrot.lane.b32.xlu0 %v1889, 64
    %v1896 = vpop.permute.xlu0 %1895
    %v1898 = vmul.f32 %v1888, %v1896
    %1900 = vrot.lane.b32.xlu0 %v1898, 32
    %v1901 = vpop.permute.xlu0 %1900
    %v1903 = vadd.f32 %v1893, %v1901
    %v1904 = vtanh.pop %v1903
    %1906 = vrot.lane.b32.xlu0 %v1904, 64
    %v1907 = vpop.permute.xlu0 %1906
    %v1909 = vmul.f32 %v1888, %v1907
    %1911 = vrot.lane.b32.xlu0 %v1909, 32
    %v1912 = vpop.permute.xlu0 %1911
    %1914 = vst.msk [vmem:[#allocation3 + $0x8] sm:$0xc] %vm490, %v1912
    %v1915 = vrot.slane %v1909, 2
    %1916 = vrot.lane.b32.xlu0 %v1915, 32
    %v1917 = vpop.permute.xlu0 %1916
    %v1918 = vsel %vm274, %v1917, 0
    %1920 = vmatprep.subr.mxu0 0.0
    %1921 = vmatpush1.msra.mxu0 %v1254
    %1922 = vmatprep.subr.mxu0 0.0
    %1923 = vmatpush1.msra.mxu0 %v1255
    %1924 = vmatprep.subr.mxu0 0.0
    %1925 = vmatpush1.msra.mxu0 %v1256
    %1926 = vmatprep.subr.mxu0 0.0
    %1927 = vmatpush1.msra.mxu0 %v1257
    %1928 = vmatprep.subr.mxu0 0.0
    %1929 = vmatpush1.msra.mxu0 0.0
    %1930 = vmatprep.subr.mxu0 0.0
    %1931 = vmatpush1.msra.mxu0 0.0
    %1932 = vmatprep.subr.mxu0 0.0
    %1933 = vmatpush1.msra.mxu0 0.0
    %1934 = vmatprep.subr.mxu0 0.0
    %1935 = vmatpush1.msra.mxu0 0.0
    %1936 = vmatprep.subr.mxu0 0.0
    %1937 = vmatpush1.msra.mxu0 0.0
    %1938 = vmatprep.subr.mxu0 0.0
    %1939 = vmatpush1.msra.mxu0 0.0
    %1940 = vmatprep.subr.mxu0 0.0
    %1941 = vmatpush1.msra.mxu0 0.0
    %1942 = vmatprep.subr.mxu0 0.0
    %1943 = vmatpush1.msra.mxu0 0.0
    %1944 = vmatprep.subr.mxu0 0.0
    %1945 = vmatpush1.msra.mxu0 0.0
    %1946 = vmatprep.subr.mxu0 0.0
    %1947 = vmatpush1.msra.mxu0 0.0
    %1948 = vmatprep.subr.mxu0 0.0
    %1949 = vmatpush1.msra.mxu0 0.0
    %1950 = vmatprep.subr.mxu0 0.0
    %1951 = vmatpush1.msra.mxu0 0.0
    %1952 = vmatprep.subr.mxu0 0.0
    %1953 = vmatpush1.msra.mxu0 0.0
    %1954 = vmatprep.subr.mxu0 0.0
    %1955 = vmatpush1.msra.mxu0 0.0
    %1956 = vmatprep.subr.mxu0 0.0
    %1957 = vmatpush1.msra.mxu0 0.0
    %1958 = vmatprep.subr.mxu0 0.0
    %1959 = vmatpush1.msra.mxu0 0.0
    %1960 = vmatprep.subr.mxu0 0.0
    %1961 = vmatpush1.msra.mxu0 0.0
    %1962 = vmatprep.subr.mxu0 0.0
    %1963 = vmatpush1.msra.mxu0 0.0
    %1964 = vmatprep.subr.mxu0 0.0
    %1965 = vmatpush1.msra.mxu0 0.0
    %1966 = vmatprep.subr.mxu0 0.0
    %1967 = vmatpush1.msra.mxu0 0.0
    %1968 = vmatprep.subr.mxu0 0.0
    %1969 = vmatpush1.msra.mxu0 0.0
    %1970 = vmatprep.subr.mxu0 0.0
    %1971 = vmatpush1.msra.mxu0 0.0
    %1972 = vmatprep.subr.mxu0 0.0
    %1973 = vmatpush1.msra.mxu0 0.0
    %1974 = vmatprep.subr.mxu0 0.0
    %1975 = vmatpush1.msra.mxu0 0.0
    %1976 = vmatprep.subr.mxu0 0.0
    %1977 = vmatpush1.msra.mxu0 0.0
    %1978 = vmatprep.subr.mxu0 0.0
    %1979 = vmatpush1.msra.mxu0 0.0
    %1980 = vmatprep.subr.mxu0 0.0
    %1981 = vmatpush1.msra.mxu0 0.0
    %1982 = vmatprep.subr.mxu0 0.0
    %1983 = vmatpush1.msra.mxu0 0.0
    %1984 = vmatprep.mubr.f32.mxu0 0.0
    %1985 = vmatmul.mubr.f32.gmra.mrb[0].mxu0 %v1918
    %v1986 = vpop.f32.mrb[0].mxu0
    %v1987 = vadd.f32 0.0, %v1986
    %v1988 = vpop.f32.mrb[0].mxu0
    %1989 = vdwg.mxu0
    %v1991 = vrot.slane %v1987, 4
    %v1993 = vadd.f32 %v1251, %v1991
    %v1994 = vxor.u32 %v1993, 2147483648
    %v1995 = vmul.f32 %v1994, 1.442695
    %v1996 = vpow.pop %v1995
    %v1997 = vadd.f32 %v1996, 1.0
    %v1998 = vrcp.pop %v1997
    %v1999 = vmul.f32 1.0, %v1998
    %v2000 = vtanh.pop %v1993
    %v2002 = vrot.slane %v1903, 6
    %v2004 = vmul.f32 %v1999, %v2002
    %2006 = vrot.lane.b32.xlu0 %v2000, 64
    %v2007 = vpop.permute.xlu0 %2006
    %v2009 = vmul.f32 %v1999, %v2007
    %2011 = vrot.lane.b32.xlu0 %v2009, 32
    %v2012 = vpop.permute.xlu0 %2011
    %v2014 = vadd.f32 %v2004, %v2012
    %v2015 = vtanh.pop %v2014
    %2017 = vrot.lane.b32.xlu0 %v2015, 64
    %v2018 = vpop.permute.xlu0 %2017
    %v2020 = vmul.f32 %v1999, %v2018
    %2022 = vrot.lane.b32.xlu0 %v2020, 32
    %v2023 = vpop.permute.xlu0 %2022
    %2025 = vst.msk [vmem:[#allocation3 + $0x8] sm:$0x30] %vm602, %v2023
    %v2026 = vrot.slane %v2020, 4
    %2027 = vrot.lane.b32.xlu0 %v2026, 32
    %v2028 = vpop.permute.xlu0 %2027
    %v2029 = vsel %vm274, %v2028, 0
    %2031 = vmatprep.subr.mxu0 0.0
    %2032 = vmatpush1.msra.mxu0 %v1254
    %2033 = vmatprep.subr.mxu0 0.0
    %2034 = vmatpush1.msra.mxu0 %v1255
    %2035 = vmatprep.subr.mxu0 0.0
    %2036 = vmatpush1.msra.mxu0 %v1256
    %2037 = vmatprep.subr.mxu0 0.0
    %2038 = vmatpush1.msra.mxu0 %v1257
    %2039 = vmatprep.subr.mxu0 0.0
    %2040 = vmatpush1.msra.mxu0 0.0
    %2041 = vmatprep.subr.mxu0 0.0
    %2042 = vmatpush1.msra.mxu0 0.0
    %2043 = vmatprep.subr.mxu0 0.0
    %2044 = vmatpush1.msra.mxu0 0.0
    %2045 = vmatprep.subr.mxu0 0.0
    %2046 = vmatpush1.msra.mxu0 0.0
    %2047 = vmatprep.subr.mxu0 0.0
    %2048 = vmatpush1.msra.mxu0 0.0
    %2049 = vmatprep.subr.mxu0 0.0
    %2050 = vmatpush1.msra.mxu0 0.0
    %2051 = vmatprep.subr.mxu0 0.0
    %2052 = vmatpush1.msra.mxu0 0.0
    %2053 = vmatprep.subr.mxu0 0.0
    %2054 = vmatpush1.msra.mxu0 0.0
    %2055 = vmatprep.subr.mxu0 0.0
    %2056 = vmatpush1.msra.mxu0 0.0
    %2057 = vmatprep.subr.mxu0 0.0
    %2058 = vmatpush1.msra.mxu0 0.0
    %2059 = vmatprep.subr.mxu0 0.0
    %2060 = vmatpush1.msra.mxu0 0.0
    %2061 = vmatprep.subr.mxu0 0.0
    %2062 = vmatpush1.msra.mxu0 0.0
    %2063 = vmatprep.subr.mxu0 0.0
    %2064 = vmatpush1.msra.mxu0 0.0
    %2065 = vmatprep.subr.mxu0 0.0
    %2066 = vmatpush1.msra.mxu0 0.0
    %2067 = vmatprep.subr.mxu0 0.0
    %2068 = vmatpush1.msra.mxu0 0.0
    %2069 = vmatprep.subr.mxu0 0.0
    %2070 = vmatpush1.msra.mxu0 0.0
    %2071 = vmatprep.subr.mxu0 0.0
    %2072 = vmatpush1.msra.mxu0 0.0
    %2073 = vmatprep.subr.mxu0 0.0
    %2074 = vmatpush1.msra.mxu0 0.0
    %2075 = vmatprep.subr.mxu0 0.0
    %2076 = vmatpush1.msra.mxu0 0.0
    %2077 = vmatprep.subr.mxu0 0.0
    %2078 = vmatpush1.msra.mxu0 0.0
    %2079 = vmatprep.subr.mxu0 0.0
    %2080 = vmatpush1.msra.mxu0 0.0
    %2081 = vmatprep.subr.mxu0 0.0
    %2082 = vmatpush1.msra.mxu0 0.0
    %2083 = vmatprep.subr.mxu0 0.0
    %2084 = vmatpush1.msra.mxu0 0.0
    %2085 = vmatprep.subr.mxu0 0.0
    %2086 = vmatpush1.msra.mxu0 0.0
    %2087 = vmatprep.subr.mxu0 0.0
    %2088 = vmatpush1.msra.mxu0 0.0
    %2089 = vmatprep.subr.mxu0 0.0
    %2090 = vmatpush1.msra.mxu0 0.0
    %2091 = vmatprep.subr.mxu0 0.0
    %2092 = vmatpush1.msra.mxu0 0.0
    %2093 = vmatprep.subr.mxu0 0.0
    %2094 = vmatpush1.msra.mxu0 0.0
    %2095 = vmatprep.mubr.f32.mxu0 0.0
    %2096 = vmatmul.mubr.f32.gmra.mrb[0].mxu0 %v2029
    %v2097 = vpop.f32.mrb[0].mxu0
    %v2098 = vadd.f32 0.0, %v2097
    %v2099 = vpop.f32.mrb[0].mxu0
    %2100 = vdwg.mxu0
    %v2102 = vrot.slane %v2098, 2
    %v2104 = vadd.f32 %v1251, %v2102
    %v2105 = vxor.u32 %v2104, 2147483648
    %v2106 = vmul.f32 %v2105, 1.442695
    %v2107 = vpow.pop %v2106
    %v2108 = vadd.f32 %v2107, 1.0
    %v2109 = vrcp.pop %v2108
    %v2110 = vmul.f32 1.0, %v2109
    %v2111 = vtanh.pop %v2104
    %v2113 = vrot.slane %v2014, 6
    %v2115 = vmul.f32 %v2110, %v2113
    %2117 = vrot.lane.b32.xlu0 %v2111, 64
    %v2118 = vpop.permute.xlu0 %2117
    %v2120 = vmul.f32 %v2110, %v2118
    %2122 = vrot.lane.b32.xlu0 %v2120, 32
    %v2123 = vpop.permute.xlu0 %2122
    %v2125 = vadd.f32 %v2115, %v2123
    %v2126 = vtanh.pop %v2125
    %2128 = vrot.lane.b32.xlu0 %v2126, 64
    %v2129 = vpop.permute.xlu0 %2128
    %v2131 = vmul.f32 %v2110, %v2129
    %2133 = vrot.lane.b32.xlu0 %v2131, 32
    %v2134 = vpop.permute.xlu0 %2133
    %2136 = vst.msk [vmem:[#allocation3 + $0x8] sm:$0xc0] %vm714, %v2134
    %s2137 = scalar_lea.vmem [#allocation24], 2
    %2138 = vst.msk [vmem:[%s2137 - $0x6] sm:$0xc0] %vm714, %v2134
    %2140 = vrot.lane.b32.xlu0 %v2125, 96
    %v2141 = vpop.permute.xlu0 %2140
    %s2143 = scalar_lea.vmem [#allocation26], 2
    %2144 = vst.msk [vmem:[%s2143 - $0x6] sm:$0xc0] %vm714, %v2141
    %v2145 = vld [vmem:[#allocation15] sm:$0xff]
    %v2146 = vld [vmem:[#allocation15 + $0x8] sm:$0xff]
    %v2147 = vld [vmem:[#allocation15 + $0x10] sm:$0xff]
    %v2148 = vld [vmem:[#allocation15 + $0x18] sm:$0xff]
    %v2149 = vld [vmem:[#allocation18] sm:$0x1]
    %v2150 = vld [vmem:[#allocation3] sm:$0xff]
    %v2151 = vld [vmem:[#allocation3 + $0x8] sm:$0xff]
    %v2153 = vlaneseq
    %v2154 = vshrl.u32 %v2153, 7
    %v2155 = vsub.s32 0, %v2154
    %v2156 = vrot.slane %v2149, %v2155
    %v2159 = vsel %vm274, %v2150, 0
    %v2162 = vsel %vm274, %v2151, 0
    %2164 = vmatprep.subr.mxu0 0.0
    %2165 = vmatpush1.msra.mxu0 %v2145
    %2166 = vmatprep.subr.mxu0 0.0
    %2167 = vmatpush1.msra.mxu0 %v2146
    %2168 = vmatprep.subr.mxu0 0.0
    %2169 = vmatpush1.msra.mxu0 %v2147
    %2170 = vmatprep.subr.mxu0 0.0
    %2171 = vmatpush1.msra.mxu0 %v2148
    %2172 = vmatprep.subr.mxu0 0.0
    %2173 = vmatpush1.msra.mxu0 0.0
    %2174 = vmatprep.subr.mxu0 0.0
    %2175 = vmatpush1.msra.mxu0 0.0
    %2176 = vmatprep.subr.mxu0 0.0
    %2177 = vmatpush1.msra.mxu0 0.0
    %2178 = vmatprep.subr.mxu0 0.0
    %2179 = vmatpush1.msra.mxu0 0.0
    %2180 = vmatprep.subr.mxu0 0.0
    %2181 = vmatpush1.msra.mxu0 0.0
    %2182 = vmatprep.subr.mxu0 0.0
    %2183 = vmatpush1.msra.mxu0 0.0
    %2184 = vmatprep.subr.mxu0 0.0
    %2185 = vmatpush1.msra.mxu0 0.0
    %2186 = vmatprep.subr.mxu0 0.0
    %2187 = vmatpush1.msra.mxu0 0.0
    %2188 = vmatprep.subr.mxu0 0.0
    %2189 = vmatpush1.msra.mxu0 0.0
    %2190 = vmatprep.subr.mxu0 0.0
    %2191 = vmatpush1.msra.mxu0 0.0
    %2192 = vmatprep.subr.mxu0 0.0
    %2193 = vmatpush1.msra.mxu0 0.0
    %2194 = vmatprep.subr.mxu0 0.0
    %2195 = vmatpush1.msra.mxu0 0.0
    %2196 = vmatprep.subr.mxu0 0.0
    %2197 = vmatpush1.msra.mxu0 0.0
    %2198 = vmatprep.subr.mxu0 0.0
    %2199 = vmatpush1.msra.mxu0 0.0
    %2200 = vmatprep.subr.mxu0 0.0
    %2201 = vmatpush1.msra.mxu0 0.0
    %2202 = vmatprep.subr.mxu0 0.0
    %2203 = vmatpush1.msra.mxu0 0.0
    %2204 = vmatprep.subr.mxu0 0.0
    %2205 = vmatpush1.msra.mxu0 0.0
    %2206 = vmatprep.subr.mxu0 0.0
    %2207 = vmatpush1.msra.mxu0 0.0
    %2208 = vmatprep.subr.mxu0 0.0
    %2209 = vmatpush1.msra.mxu0 0.0
    %2210 = vmatprep.subr.mxu0 0.0
    %2211 = vmatpush1.msra.mxu0 0.0
    %2212 = vmatprep.subr.mxu0 0.0
    %2213 = vmatpush1.msra.mxu0 0.0
    %2214 = vmatprep.subr.mxu0 0.0
    %2215 = vmatpush1.msra.mxu0 0.0
    %2216 = vmatprep.subr.mxu0 0.0
    %2217 = vmatpush1.msra.mxu0 0.0
    %2218 = vmatprep.subr.mxu0 0.0
    %2219 = vmatpush1.msra.mxu0 0.0
    %2220 = vmatprep.subr.mxu0 0.0
    %2221 = vmatpush1.msra.mxu0 0.0
    %2222 = vmatprep.subr.mxu0 0.0
    %2223 = vmatpush1.msra.mxu0 0.0
    %2224 = vmatprep.subr.mxu0 0.0
    %2225 = vmatpush1.msra.mxu0 0.0
    %2226 = vmatprep.subr.mxu0 0.0
    %2227 = vmatpush1.msra.mxu0 0.0
    %2228 = vmatprep.mubr.f32.mxu0 0.0
    %2229 = vmatmul.mubr.f32.gmra.mrb[0].mxu0 %v2159
    %v2230 = vpop.f32.mrb[0].mxu0
    %v2231 = vadd.f32 %v2156, %v2230
    %v2232 = vpop.f32.mrb[0].mxu0
    %2233 = vmatprep.mubr.f32.mxu0 0.0
    %2234 = vmatmul.mubr.f32.gmra.mrb[0].mxu0 %v2162
    %v2235 = vpop.f32.mrb[0].mxu0
    %v2236 = vadd.f32 %v2156, %v2235
    %v2237 = vpop.f32.mrb[0].mxu0
    %2238 = vdwg.mxu0
    %v2239 = vld [vmem:[#allocation17] sm:$0xff]
    %v2240 = vld [vmem:[#allocation17 + $0x8] sm:$0xff]
    %v2241 = vld [vmem:[#allocation17 + $0x10] sm:$0xff]
    %v2242 = vld [vmem:[#allocation17 + $0x18] sm:$0xff]
    %s2243 = scalar_lea.vmem %s1, 4
    %v2244 = vld [vmem:[%s2243] sm:$0x3]
    %s2245 = scalar_lea.vmem %s2, 4
    %v2246 = vld [vmem:[%s2245] sm:$0x3]
    %v2248 = vsel %vm274, %v2244, 0
    %2250 = vmatprep.subr.mxu0 0.0
    %2251 = vmatpush1.msra.mxu0 %v2239
    %2252 = vmatprep.subr.mxu0 0.0
    %2253 = vmatpush1.msra.mxu0 %v2240
    %2254 = vmatprep.subr.mxu0 0.0
    %2255 = vmatpush1.msra.mxu0 %v2241
    %2256 = vmatprep.subr.mxu0 0.0
    %2257 = vmatpush1.msra.mxu0 %v2242
    %2258 = vmatprep.subr.mxu0 0.0
    %2259 = vmatpush1.msra.mxu0 0.0
    %2260 = vmatprep.subr.mxu0 0.0
    %2261 = vmatpush1.msra.mxu0 0.0
    %2262 = vmatprep.subr.mxu0 0.0
    %2263 = vmatpush1.msra.mxu0 0.0
    %2264 = vmatprep.subr.mxu0 0.0
    %2265 = vmatpush1.msra.mxu0 0.0
    %2266 = vmatprep.subr.mxu0 0.0
    %2267 = vmatpush1.msra.mxu0 0.0
    %2268 = vmatprep.subr.mxu0 0.0
    %2269 = vmatpush1.msra.mxu0 0.0
    %2270 = vmatprep.subr.mxu0 0.0
    %2271 = vmatpush1.msra.mxu0 0.0
    %2272 = vmatprep.subr.mxu0 0.0
    %2273 = vmatpush1.msra.mxu0 0.0
    %2274 = vmatprep.subr.mxu0 0.0
    %2275 = vmatpush1.msra.mxu0 0.0
    %2276 = vmatprep.subr.mxu0 0.0
    %2277 = vmatpush1.msra.mxu0 0.0
    %2278 = vmatprep.subr.mxu0 0.0
    %2279 = vmatpush1.msra.mxu0 0.0
    %2280 = vmatprep.subr.mxu0 0.0
    %2281 = vmatpush1.msra.mxu0 0.0
    %2282 = vmatprep.subr.mxu0 0.0
    %2283 = vmatpush1.msra.mxu0 0.0
    %2284 = vmatprep.subr.mxu0 0.0
    %2285 = vmatpush1.msra.mxu0 0.0
    %2286 = vmatprep.subr.mxu0 0.0
    %2287 = vmatpush1.msra.mxu0 0.0
    %2288 = vmatprep.subr.mxu0 0.0
    %2289 = vmatpush1.msra.mxu0 0.0
    %2290 = vmatprep.subr.mxu0 0.0
    %2291 = vmatpush1.msra.mxu0 0.0
    %2292 = vmatprep.subr.mxu0 0.0
    %2293 = vmatpush1.msra.mxu0 0.0
    %2294 = vmatprep.subr.mxu0 0.0
    %2295 = vmatpush1.msra.mxu0 0.0
    %2296 = vmatprep.subr.mxu0 0.0
    %2297 = vmatpush1.msra.mxu0 0.0
    %2298 = vmatprep.subr.mxu0 0.0
    %2299 = vmatpush1.msra.mxu0 0.0
    %2300 = vmatprep.subr.mxu0 0.0
    %2301 = vmatpush1.msra.mxu0 0.0
    %2302 = vmatprep.subr.mxu0 0.0
    %2303 = vmatpush1.msra.mxu0 0.0
    %2304 = vmatprep.subr.mxu0 0.0
    %2305 = vmatpush1.msra.mxu0 0.0
    %2306 = vmatprep.subr.mxu0 0.0
    %2307 = vmatpush1.msra.mxu0 0.0
    %2308 = vmatprep.subr.mxu0 0.0
    %2309 = vmatpush1.msra.mxu0 0.0
    %2310 = vmatprep.subr.mxu0 0.0
    %2311 = vmatpush1.msra.mxu0 0.0
    %2312 = vmatprep.subr.mxu0 0.0
    %2313 = vmatpush1.msra.mxu0 0.0
    %2314 = vmatprep.mubr.f32.mxu0 0.0
    %2315 = vmatmul.mubr.f32.gmra.mrb[0].mxu0 %v2248
    %v2316 = vpop.f32.mrb[0].mxu0
    %v2317 = vadd.f32 0.0, %v2316
    %v2318 = vpop.f32.mrb[0].mxu0
    %2319 = vdwg.mxu0
    %v2320 = vadd.f32 %v2231, %v2317
    %v2321 = vxor.u32 %v2320, 2147483648
    %v2322 = vmul.f32 %v2321, 1.442695
    %v2323 = vpow.pop %v2322
    %v2324 = vadd.f32 %v2323, 1.0
    %v2325 = vrcp.pop %v2324
    %v2326 = vmul.f32 1.0, %v2325
    %v2327 = vtanh.pop %v2320
    %2329 = vrot.lane.b32.xlu0 %v2246, 32
    %v2330 = vpop.permute.xlu0 %2329
    %v2332 = vmul.f32 %v2326, %v2330
    %2334 = vrot.lane.b32.xlu0 %v2327, 64
    %v2335 = vpop.permute.xlu0 %2334
    %v2337 = vmul.f32 %v2326, %v2335
    %2339 = vrot.lane.b32.xlu0 %v2337, 32
    %v2340 = vpop.permute.xlu0 %2339
    %v2342 = vadd.f32 %v2332, %v2340
    %v2343 = vtanh.pop %v2342
    %2345 = vrot.lane.b32.xlu0 %v2343, 64
    %v2346 = vpop.permute.xlu0 %2345
    %v2348 = vmul.f32 %v2326, %v2346
    %2350 = vrot.lane.b32.xlu0 %v2348, 32
    %v2351 = vpop.permute.xlu0 %2350
    %2353 = vst.msk [vmem:[#allocation3] sm:$0x3] %vm381, %v2351
    %v2354 = vsel %vm274, %v2351, 0
    %2356 = vmatprep.subr.mxu0 0.0
    %2357 = vmatpush1.msra.mxu0 %v2239
    %2358 = vmatprep.subr.mxu0 0.0
    %2359 = vmatpush1.msra.mxu0 %v2240
    %2360 = vmatprep.subr.mxu0 0.0
    %2361 = vmatpush1.msra.mxu0 %v2241
    %2362 = vmatprep.subr.mxu0 0.0
    %2363 = vmatpush1.msra.mxu0 %v2242
    %2364 = vmatprep.subr.mxu0 0.0
    %2365 = vmatpush1.msra.mxu0 0.0
    %2366 = vmatprep.subr.mxu0 0.0
    %2367 = vmatpush1.msra.mxu0 0.0
    %2368 = vmatprep.subr.mxu0 0.0
    %2369 = vmatpush1.msra.mxu0 0.0
    %2370 = vmatprep.subr.mxu0 0.0
    %2371 = vmatpush1.msra.mxu0 0.0
    %2372 = vmatprep.subr.mxu0 0.0
    %2373 = vmatpush1.msra.mxu0 0.0
    %2374 = vmatprep.subr.mxu0 0.0
    %2375 = vmatpush1.msra.mxu0 0.0
    %2376 = vmatprep.subr.mxu0 0.0
    %2377 = vmatpush1.msra.mxu0 0.0
    %2378 = vmatprep.subr.mxu0 0.0
    %2379 = vmatpush1.msra.mxu0 0.0
    %2380 = vmatprep.subr.mxu0 0.0
    %2381 = vmatpush1.msra.mxu0 0.0
    %2382 = vmatprep.subr.mxu0 0.0
    %2383 = vmatpush1.msra.mxu0 0.0
    %2384 = vmatprep.subr.mxu0 0.0
    %2385 = vmatpush1.msra.mxu0 0.0
    %2386 = vmatprep.subr.mxu0 0.0
    %2387 = vmatpush1.msra.mxu0 0.0
    %2388 = vmatprep.subr.mxu0 0.0
    %2389 = vmatpush1.msra.mxu0 0.0
    %2390 = vmatprep.subr.mxu0 0.0
    %2391 = vmatpush1.msra.mxu0 0.0
    %2392 = vmatprep.subr.mxu0 0.0
    %2393 = vmatpush1.msra.mxu0 0.0
    %2394 = vmatprep.subr.mxu0 0.0
    %2395 = vmatpush1.msra.mxu0 0.0
    %2396 = vmatprep.subr.mxu0 0.0
    %2397 = vmatpush1.msra.mxu0 0.0
    %2398 = vmatprep.subr.mxu0 0.0
    %2399 = vmatpush1.msra.mxu0 0.0
    %2400 = vmatprep.subr.mxu0 0.0
    %2401 = vmatpush1.msra.mxu0 0.0
    %2402 = vmatprep.subr.mxu0 0.0
    %2403 = vmatpush1.msra.mxu0 0.0
    %2404 = vmatprep.subr.mxu0 0.0
    %2405 = vmatpush1.msra.mxu0 0.0
    %2406 = vmatprep.subr.mxu0 0.0
    %2407 = vmatpush1.msra.mxu0 0.0
    %2408 = vmatprep.subr.mxu0 0.0
    %2409 = vmatpush1.msra.mxu0 0.0
    %2410 = vmatprep.subr.mxu0 0.0
    %2411 = vmatpush1.msra.mxu0 0.0
    %2412 = vmatprep.subr.mxu0 0.0
    %2413 = vmatpush1.msra.mxu0 0.0
    %2414 = vmatprep.subr.mxu0 0.0
    %2415 = vmatpush1.msra.mxu0 0.0
    %2416 = vmatprep.subr.mxu0 0.0
    %2417 = vmatpush1.msra.mxu0 0.0
    %2418 = vmatprep.subr.mxu0 0.0
    %2419 = vmatpush1.msra.mxu0 0.0
    %2420 = vmatprep.mubr.f32.mxu0 0.0
    %2421 = vmatmul.mubr.f32.gmra.mrb[0].mxu0 %v2354
    %v2422 = vpop.f32.mrb[0].mxu0
    %v2423 = vadd.f32 0.0, %v2422
    %v2424 = vpop.f32.mrb[0].mxu0
    %2425 = vdwg.mxu0
    %v2427 = vrot.slane %v2423, 6
    %v2429 = vadd.f32 %v2231, %v2427
    %v2430 = vxor.u32 %v2429, 2147483648
    %v2431 = vmul.f32 %v2430, 1.442695
    %v2432 = vpow.pop %v2431
    %v2433 = vadd.f32 %v2432, 1.0
    %v2434 = vrcp.pop %v2433
    %v2435 = vmul.f32 1.0, %v2434
    %v2436 = vtanh.pop %v2429
    %v2438 = vrot.slane %v2342, 6
    %v2440 = vmul.f32 %v2435, %v2438
    %2442 = vrot.lane.b32.xlu0 %v2436, 64
    %v2443 = vpop.permute.xlu0 %2442
    %v2445 = vmul.f32 %v2435, %v2443
    %2447 = vrot.lane.b32.xlu0 %v2445, 32
    %v2448 = vpop.permute.xlu0 %2447
    %v2450 = vadd.f32 %v2440, %v2448
    %v2451 = vtanh.pop %v2450
    %2453 = vrot.lane.b32.xlu0 %v2451, 64
    %v2454 = vpop.permute.xlu0 %2453
    %v2456 = vmul.f32 %v2435, %v2454
    %2458 = vrot.lane.b32.xlu0 %v2456, 32
    %v2459 = vpop.permute.xlu0 %2458
    %2461 = vst.msk [vmem:[#allocation3] sm:$0xc] %vm490, %v2459
    %v2462 = vrot.slane %v2456, 2
    %2463 = vrot.lane.b32.xlu0 %v2462, 32
    %v2464 = vpop.permute.xlu0 %2463
    %v2465 = vsel %vm274, %v2464, 0
    %2467 = vmatprep.subr.mxu0 0.0
    %2468 = vmatpush1.msra.mxu0 %v2239
    %2469 = vmatprep.subr.mxu0 0.0
    %2470 = vmatpush1.msra.mxu0 %v2240
    %2471 = vmatprep.subr.mxu0 0.0
    %2472 = vmatpush1.msra.mxu0 %v2241
    %2473 = vmatprep.subr.mxu0 0.0
    %2474 = vmatpush1.msra.mxu0 %v2242
    %2475 = vmatprep.subr.mxu0 0.0
    %2476 = vmatpush1.msra.mxu0 0.0
    %2477 = vmatprep.subr.mxu0 0.0
    %2478 = vmatpush1.msra.mxu0 0.0
    %2479 = vmatprep.subr.mxu0 0.0
    %2480 = vmatpush1.msra.mxu0 0.0
    %2481 = vmatprep.subr.mxu0 0.0
    %2482 = vmatpush1.msra.mxu0 0.0
    %2483 = vmatprep.subr.mxu0 0.0
    %2484 = vmatpush1.msra.mxu0 0.0
    %2485 = vmatprep.subr.mxu0 0.0
    %2486 = vmatpush1.msra.mxu0 0.0
    %2487 = vmatprep.subr.mxu0 0.0
    %2488 = vmatpush1.msra.mxu0 0.0
    %2489 = vmatprep.subr.mxu0 0.0
    %2490 = vmatpush1.msra.mxu0 0.0
    %2491 = vmatprep.subr.mxu0 0.0
    %2492 = vmatpush1.msra.mxu0 0.0
    %2493 = vmatprep.subr.mxu0 0.0
    %2494 = vmatpush1.msra.mxu0 0.0
    %2495 = vmatprep.subr.mxu0 0.0
    %2496 = vmatpush1.msra.mxu0 0.0
    %2497 = vmatprep.subr.mxu0 0.0
    %2498 = vmatpush1.msra.mxu0 0.0
    %2499 = vmatprep.subr.mxu0 0.0
    %2500 = vmatpush1.msra.mxu0 0.0
    %2501 = vmatprep.subr.mxu0 0.0
    %2502 = vmatpush1.msra.mxu0 0.0
    %2503 = vmatprep.subr.mxu0 0.0
    %2504 = vmatpush1.msra.mxu0 0.0
    %2505 = vmatprep.subr.mxu0 0.0
    %2506 = vmatpush1.msra.mxu0 0.0
    %2507 = vmatprep.subr.mxu0 0.0
    %2508 = vmatpush1.msra.mxu0 0.0
    %2509 = vmatprep.subr.mxu0 0.0
    %2510 = vmatpush1.msra.mxu0 0.0
    %2511 = vmatprep.subr.mxu0 0.0
    %2512 = vmatpush1.msra.mxu0 0.0
    %2513 = vmatprep.subr.mxu0 0.0
    %2514 = vmatpush1.msra.mxu0 0.0
    %2515 = vmatprep.subr.mxu0 0.0
    %2516 = vmatpush1.msra.mxu0 0.0
    %2517 = vmatprep.subr.mxu0 0.0
    %2518 = vmatpush1.msra.mxu0 0.0
    %2519 = vmatprep.subr.mxu0 0.0
    %2520 = vmatpush1.msra.mxu0 0.0
    %2521 = vmatprep.subr.mxu0 0.0
    %2522 = vmatpush1.msra.mxu0 0.0
    %2523 = vmatprep.subr.mxu0 0.0
    %2524 = vmatpush1.msra.mxu0 0.0
    %2525 = vmatprep.subr.mxu0 0.0
    %2526 = vmatpush1.msra.mxu0 0.0
    %2527 = vmatprep.subr.mxu0 0.0
    %2528 = vmatpush1.msra.mxu0 0.0
    %2529 = vmatprep.subr.mxu0 0.0
    %2530 = vmatpush1.msra.mxu0 0.0
    %2531 = vmatprep.mubr.f32.mxu0 0.0
    %2532 = vmatmul.mubr.f32.gmra.mrb[0].mxu0 %v2465
    %v2533 = vpop.f32.mrb[0].mxu0
    %v2534 = vadd.f32 0.0, %v2533
    %v2535 = vpop.f32.mrb[0].mxu0
    %2536 = vdwg.mxu0
    %v2538 = vrot.slane %v2534, 4
    %v2540 = vadd.f32 %v2231, %v2538
    %v2541 = vxor.u32 %v2540, 2147483648
    %v2542 = vmul.f32 %v2541, 1.442695
    %v2543 = vpow.pop %v2542
    %v2544 = vadd.f32 %v2543, 1.0
    %v2545 = vrcp.pop %v2544
    %v2546 = vmul.f32 1.0, %v2545
    %v2547 = vtanh.pop %v2540
    %v2549 = vrot.slane %v2450, 6
    %v2551 = vmul.f32 %v2546, %v2549
    %2553 = vrot.lane.b32.xlu0 %v2547, 64
    %v2554 = vpop.permute.xlu0 %2553
    %v2556 = vmul.f32 %v2546, %v2554
    %2558 = vrot.lane.b32.xlu0 %v2556, 32
    %v2559 = vpop.permute.xlu0 %2558
    %v2561 = vadd.f32 %v2551, %v2559
    %v2562 = vtanh.pop %v2561
    %2564 = vrot.lane.b32.xlu0 %v2562, 64
    %v2565 = vpop.permute.xlu0 %2564
    %v2567 = vmul.f32 %v2546, %v2565
    %2569 = vrot.lane.b32.xlu0 %v2567, 32
    %v2570 = vpop.permute.xlu0 %2569
    %2572 = vst.msk [vmem:[#allocation3] sm:$0x30] %vm602, %v2570
    %v2573 = vrot.slane %v2567, 4
    %2574 = vrot.lane.b32.xlu0 %v2573, 32
    %v2575 = vpop.permute.xlu0 %2574
    %v2576 = vsel %vm274, %v2575, 0
    %2578 = vmatprep.subr.mxu0 0.0
    %2579 = vmatpush1.msra.mxu0 %v2239
    %2580 = vmatprep.subr.mxu0 0.0
    %2581 = vmatpush1.msra.mxu0 %v2240
    %2582 = vmatprep.subr.mxu0 0.0
    %2583 = vmatpush1.msra.mxu0 %v2241
    %2584 = vmatprep.subr.mxu0 0.0
    %2585 = vmatpush1.msra.mxu0 %v2242
    %2586 = vmatprep.subr.mxu0 0.0
    %2587 = vmatpush1.msra.mxu0 0.0
    %2588 = vmatprep.subr.mxu0 0.0
    %2589 = vmatpush1.msra.mxu0 0.0
    %2590 = vmatprep.subr.mxu0 0.0
    %2591 = vmatpush1.msra.mxu0 0.0
    %2592 = vmatprep.subr.mxu0 0.0
    %2593 = vmatpush1.msra.mxu0 0.0
    %2594 = vmatprep.subr.mxu0 0.0
    %2595 = vmatpush1.msra.mxu0 0.0
    %2596 = vmatprep.subr.mxu0 0.0
    %2597 = vmatpush1.msra.mxu0 0.0
    %2598 = vmatprep.subr.mxu0 0.0
    %2599 = vmatpush1.msra.mxu0 0.0
    %2600 = vmatprep.subr.mxu0 0.0
    %2601 = vmatpush1.msra.mxu0 0.0
    %2602 = vmatprep.subr.mxu0 0.0
    %2603 = vmatpush1.msra.mxu0 0.0
    %2604 = vmatprep.subr.mxu0 0.0
    %2605 = vmatpush1.msra.mxu0 0.0
    %2606 = vmatprep.subr.mxu0 0.0
    %2607 = vmatpush1.msra.mxu0 0.0
    %2608 = vmatprep.subr.mxu0 0.0
    %2609 = vmatpush1.msra.mxu0 0.0
    %2610 = vmatprep.subr.mxu0 0.0
    %2611 = vmatpush1.msra.mxu0 0.0
    %2612 = vmatprep.subr.mxu0 0.0
    %2613 = vmatpush1.msra.mxu0 0.0
    %2614 = vmatprep.subr.mxu0 0.0
    %2615 = vmatpush1.msra.mxu0 0.0
    %2616 = vmatprep.subr.mxu0 0.0
    %2617 = vmatpush1.msra.mxu0 0.0
    %2618 = vmatprep.subr.mxu0 0.0
    %2619 = vmatpush1.msra.mxu0 0.0
    %2620 = vmatprep.subr.mxu0 0.0
    %2621 = vmatpush1.msra.mxu0 0.0
    %2622 = vmatprep.subr.mxu0 0.0
    %2623 = vmatpush1.msra.mxu0 0.0
    %2624 = vmatprep.subr.mxu0 0.0
    %2625 = vmatpush1.msra.mxu0 0.0
    %2626 = vmatprep.subr.mxu0 0.0
    %2627 = vmatpush1.msra.mxu0 0.0
    %2628 = vmatprep.subr.mxu0 0.0
    %2629 = vmatpush1.msra.mxu0 0.0
    %2630 = vmatprep.subr.mxu0 0.0
    %2631 = vmatpush1.msra.mxu0 0.0
    %2632 = vmatprep.subr.mxu0 0.0
    %2633 = vmatpush1.msra.mxu0 0.0
    %2634 = vmatprep.subr.mxu0 0.0
    %2635 = vmatpush1.msra.mxu0 0.0
    %2636 = vmatprep.subr.mxu0 0.0
    %2637 = vmatpush1.msra.mxu0 0.0
    %2638 = vmatprep.subr.mxu0 0.0
    %2639 = vmatpush1.msra.mxu0 0.0
    %2640 = vmatprep.subr.mxu0 0.0
    %2641 = vmatpush1.msra.mxu0 0.0
    %2642 = vmatprep.mubr.f32.mxu0 0.0
    %2643 = vmatmul.mubr.f32.gmra.mrb[0].mxu0 %v2576
    %v2644 = vpop.f32.mrb[0].mxu0
    %v2645 = vadd.f32 0.0, %v2644
    %v2646 = vpop.f32.mrb[0].mxu0
    %2647 = vdwg.mxu0
    %v2649 = vrot.slane %v2645, 2
    %v2651 = vadd.f32 %v2231, %v2649
    %v2652 = vxor.u32 %v2651, 2147483648
    %v2653 = vmul.f32 %v2652, 1.442695
    %v2654 = vpow.pop %v2653
    %v2655 = vadd.f32 %v2654, 1.0
    %v2656 = vrcp.pop %v2655
    %v2657 = vmul.f32 1.0, %v2656
    %v2658 = vtanh.pop %v2651
    %v2660 = vrot.slane %v2561, 6
    %v2662 = vmul.f32 %v2657, %v2660
    %2664 = vrot.lane.b32.xlu0 %v2658, 64
    %v2665 = vpop.permute.xlu0 %2664
    %v2667 = vmul.f32 %v2657, %v2665
    %2669 = vrot.lane.b32.xlu0 %v2667, 32
    %v2670 = vpop.permute.xlu0 %2669
    %v2672 = vadd.f32 %v2662, %v2670
    %v2673 = vtanh.pop %v2672
    %2675 = vrot.lane.b32.xlu0 %v2673, 64
    %v2676 = vpop.permute.xlu0 %2675
    %v2678 = vmul.f32 %v2657, %v2676
    %2680 = vrot.lane.b32.xlu0 %v2678, 32
    %v2681 = vpop.permute.xlu0 %2680
    %2683 = vst.msk [vmem:[#allocation3] sm:$0xc0] %vm714, %v2681
    %v2684 = vrot.slane %v2678, 6
    %2685 = vrot.lane.b32.xlu0 %v2684, 32
    %v2686 = vpop.permute.xlu0 %2685
    %v2687 = vsel %vm274, %v2686, 0
    %2689 = vmatprep.subr.mxu0 0.0
    %2690 = vmatpush1.msra.mxu0 %v2239
    %2691 = vmatprep.subr.mxu0 0.0
    %2692 = vmatpush1.msra.mxu0 %v2240
    %2693 = vmatprep.subr.mxu0 0.0
    %2694 = vmatpush1.msra.mxu0 %v2241
    %2695 = vmatprep.subr.mxu0 0.0
    %2696 = vmatpush1.msra.mxu0 %v2242
    %2697 = vmatprep.subr.mxu0 0.0
    %2698 = vmatpush1.msra.mxu0 0.0
    %2699 = vmatprep.subr.mxu0 0.0
    %2700 = vmatpush1.msra.mxu0 0.0
    %2701 = vmatprep.subr.mxu0 0.0
    %2702 = vmatpush1.msra.mxu0 0.0
    %2703 = vmatprep.subr.mxu0 0.0
    %2704 = vmatpush1.msra.mxu0 0.0
    %2705 = vmatprep.subr.mxu0 0.0
    %2706 = vmatpush1.msra.mxu0 0.0
    %2707 = vmatprep.subr.mxu0 0.0
    %2708 = vmatpush1.msra.mxu0 0.0
    %2709 = vmatprep.subr.mxu0 0.0
    %2710 = vmatpush1.msra.mxu0 0.0
    %2711 = vmatprep.subr.mxu0 0.0
    %2712 = vmatpush1.msra.mxu0 0.0
    %2713 = vmatprep.subr.mxu0 0.0
    %2714 = vmatpush1.msra.mxu0 0.0
    %2715 = vmatprep.subr.mxu0 0.0
    %2716 = vmatpush1.msra.mxu0 0.0
    %2717 = vmatprep.subr.mxu0 0.0
    %2718 = vmatpush1.msra.mxu0 0.0
    %2719 = vmatprep.subr.mxu0 0.0
    %2720 = vmatpush1.msra.mxu0 0.0
    %2721 = vmatprep.subr.mxu0 0.0
    %2722 = vmatpush1.msra.mxu0 0.0
    %2723 = vmatprep.subr.mxu0 0.0
    %2724 = vmatpush1.msra.mxu0 0.0
    %2725 = vmatprep.subr.mxu0 0.0
    %2726 = vmatpush1.msra.mxu0 0.0
    %2727 = vmatprep.subr.mxu0 0.0
    %2728 = vmatpush1.msra.mxu0 0.0
    %2729 = vmatprep.subr.mxu0 0.0
    %2730 = vmatpush1.msra.mxu0 0.0
    %2731 = vmatprep.subr.mxu0 0.0
    %2732 = vmatpush1.msra.mxu0 0.0
    %2733 = vmatprep.subr.mxu0 0.0
    %2734 = vmatpush1.msra.mxu0 0.0
    %2735 = vmatprep.subr.mxu0 0.0
    %2736 = vmatpush1.msra.mxu0 0.0
    %2737 = vmatprep.subr.mxu0 0.0
    %2738 = vmatpush1.msra.mxu0 0.0
    %2739 = vmatprep.subr.mxu0 0.0
    %2740 = vmatpush1.msra.mxu0 0.0
    %2741 = vmatprep.subr.mxu0 0.0
    %2742 = vmatpush1.msra.mxu0 0.0
    %2743 = vmatprep.subr.mxu0 0.0
    %2744 = vmatpush1.msra.mxu0 0.0
    %2745 = vmatprep.subr.mxu0 0.0
    %2746 = vmatpush1.msra.mxu0 0.0
    %2747 = vmatprep.subr.mxu0 0.0
    %2748 = vmatpush1.msra.mxu0 0.0
    %2749 = vmatprep.subr.mxu0 0.0
    %2750 = vmatpush1.msra.mxu0 0.0
    %2751 = vmatprep.subr.mxu0 0.0
    %2752 = vmatpush1.msra.mxu0 0.0
    %2753 = vmatprep.mubr.f32.mxu0 0.0
    %2754 = vmatmul.mubr.f32.gmra.mrb[0].mxu0 %v2687
    %v2755 = vpop.f32.mrb[0].mxu0
    %v2756 = vadd.f32 0.0, %v2755
    %v2757 = vpop.f32.mrb[0].mxu0
    %2758 = vdwg.mxu0
    %v2759 = vadd.f32 %v2236, %v2756
    %v2760 = vxor.u32 %v2759, 2147483648
    %v2761 = vmul.f32 %v2760, 1.442695
    %v2762 = vpow.pop %v2761
    %v2763 = vadd.f32 %v2762, 1.0
    %v2764 = vrcp.pop %v2763
    %v2765 = vmul.f32 1.0, %v2764
    %v2766 = vtanh.pop %v2759
    %v2768 = vrot.slane %v2672, 6
    %v2770 = vmul.f32 %v2765, %v2768
    %2772 = vrot.lane.b32.xlu0 %v2766, 64
    %v2773 = vpop.permute.xlu0 %2772
    %v2775 = vmul.f32 %v2765, %v2773
    %2777 = vrot.lane.b32.xlu0 %v2775, 32
    %v2778 = vpop.permute.xlu0 %2777
    %v2780 = vadd.f32 %v2770, %v2778
    %v2781 = vtanh.pop %v2780
    %2783 = vrot.lane.b32.xlu0 %v2781, 64
    %v2784 = vpop.permute.xlu0 %2783
    %v2786 = vmul.f32 %v2765, %v2784
    %2788 = vrot.lane.b32.xlu0 %v2786, 32
    %v2789 = vpop.permute.xlu0 %2788
    %2791 = vst.msk [vmem:[#allocation3 + $0x8] sm:$0x3] %vm381, %v2789
    %v2792 = vsel %vm274, %v2789, 0
    %2794 = vmatprep.subr.mxu0 0.0
    %2795 = vmatpush1.msra.mxu0 %v2239
    %2796 = vmatprep.subr.mxu0 0.0
    %2797 = vmatpush1.msra.mxu0 %v2240
    %2798 = vmatprep.subr.mxu0 0.0
    %2799 = vmatpush1.msra.mxu0 %v2241
    %2800 = vmatprep.subr.mxu0 0.0
    %2801 = vmatpush1.msra.mxu0 %v2242
    %2802 = vmatprep.subr.mxu0 0.0
    %2803 = vmatpush1.msra.mxu0 0.0
    %2804 = vmatprep.subr.mxu0 0.0
    %2805 = vmatpush1.msra.mxu0 0.0
    %2806 = vmatprep.subr.mxu0 0.0
    %2807 = vmatpush1.msra.mxu0 0.0
    %2808 = vmatprep.subr.mxu0 0.0
    %2809 = vmatpush1.msra.mxu0 0.0
    %2810 = vmatprep.subr.mxu0 0.0
    %2811 = vmatpush1.msra.mxu0 0.0
    %2812 = vmatprep.subr.mxu0 0.0
    %2813 = vmatpush1.msra.mxu0 0.0
    %2814 = vmatprep.subr.mxu0 0.0
    %2815 = vmatpush1.msra.mxu0 0.0
    %2816 = vmatprep.subr.mxu0 0.0
    %2817 = vmatpush1.msra.mxu0 0.0
    %2818 = vmatprep.subr.mxu0 0.0
    %2819 = vmatpush1.msra.mxu0 0.0
    %2820 = vmatprep.subr.mxu0 0.0
    %2821 = vmatpush1.msra.mxu0 0.0
    %2822 = vmatprep.subr.mxu0 0.0
    %2823 = vmatpush1.msra.mxu0 0.0
    %2824 = vmatprep.subr.mxu0 0.0
    %2825 = vmatpush1.msra.mxu0 0.0
    %2826 = vmatprep.subr.mxu0 0.0
    %2827 = vmatpush1.msra.mxu0 0.0
    %2828 = vmatprep.subr.mxu0 0.0
    %2829 = vmatpush1.msra.mxu0 0.0
    %2830 = vmatprep.subr.mxu0 0.0
    %2831 = vmatpush1.msra.mxu0 0.0
    %2832 = vmatprep.subr.mxu0 0.0
    %2833 = vmatpush1.msra.mxu0 0.0
    %2834 = vmatprep.subr.mxu0 0.0
    %2835 = vmatpush1.msra.mxu0 0.0
    %2836 = vmatprep.subr.mxu0 0.0
    %2837 = vmatpush1.msra.mxu0 0.0
    %2838 = vmatprep.subr.mxu0 0.0
    %2839 = vmatpush1.msra.mxu0 0.0
    %2840 = vmatprep.subr.mxu0 0.0
    %2841 = vmatpush1.msra.mxu0 0.0
    %2842 = vmatprep.subr.mxu0 0.0
    %2843 = vmatpush1.msra.mxu0 0.0
    %2844 = vmatprep.subr.mxu0 0.0
    %2845 = vmatpush1.msra.mxu0 0.0
    %2846 = vmatprep.subr.mxu0 0.0
    %2847 = vmatpush1.msra.mxu0 0.0
    %2848 = vmatprep.subr.mxu0 0.0
    %2849 = vmatpush1.msra.mxu0 0.0
    %2850 = vmatprep.subr.mxu0 0.0
    %2851 = vmatpush1.msra.mxu0 0.0
    %2852 = vmatprep.subr.mxu0 0.0
    %2853 = vmatpush1.msra.mxu0 0.0
    %2854 = vmatprep.subr.mxu0 0.0
    %2855 = vmatpush1.msra.mxu0 0.0
    %2856 = vmatprep.subr.mxu0 0.0
    %2857 = vmatpush1.msra.mxu0 0.0
    %2858 = vmatprep.mubr.f32.mxu0 0.0
    %2859 = vmatmul.mubr.f32.gmra.mrb[0].mxu0 %v2792
    %v2860 = vpop.f32.mrb[0].mxu0
    %v2861 = vadd.f32 0.0, %v2860
    %v2862 = vpop.f32.mrb[0].mxu0
    %2863 = vdwg.mxu0
    %v2865 = vrot.slane %v2861, 6
    %v2867 = vadd.f32 %v2236, %v2865
    %v2868 = vxor.u32 %v2867, 2147483648
    %v2869 = vmul.f32 %v2868, 1.442695
    %v2870 = vpow.pop %v2869
    %v2871 = vadd.f32 %v2870, 1.0
    %v2872 = vrcp.pop %v2871
    %v2873 = vmul.f32 1.0, %v2872
    %v2874 = vtanh.pop %v2867
    %v2876 = vrot.slane %v2780, 6
    %v2878 = vmul.f32 %v2873, %v2876
    %2880 = vrot.lane.b32.xlu0 %v2874, 64
    %v2881 = vpop.permute.xlu0 %2880
    %v2883 = vmul.f32 %v2873, %v2881
    %2885 = vrot.lane.b32.xlu0 %v2883, 32
    %v2886 = vpop.permute.xlu0 %2885
    %v2888 = vadd.f32 %v2878, %v2886
    %v2889 = vtanh.pop %v2888
    %2891 = vrot.lane.b32.xlu0 %v2889, 64
    %v2892 = vpop.permute.xlu0 %2891
    %v2894 = vmul.f32 %v2873, %v2892
    %2896 = vrot.lane.b32.xlu0 %v2894, 32
    %v2897 = vpop.permute.xlu0 %2896
    %2899 = vst.msk [vmem:[#allocation3 + $0x8] sm:$0xc] %vm490, %v2897
    %v2900 = vrot.slane %v2894, 2
    %2901 = vrot.lane.b32.xlu0 %v2900, 32
    %v2902 = vpop.permute.xlu0 %2901
    %v2903 = vsel %vm274, %v2902, 0
    %2905 = vmatprep.subr.mxu0 0.0
    %2906 = vmatpush1.msra.mxu0 %v2239
    %2907 = vmatprep.subr.mxu0 0.0
    %2908 = vmatpush1.msra.mxu0 %v2240
    %2909 = vmatprep.subr.mxu0 0.0
    %2910 = vmatpush1.msra.mxu0 %v2241
    %2911 = vmatprep.subr.mxu0 0.0
    %2912 = vmatpush1.msra.mxu0 %v2242
    %2913 = vmatprep.subr.mxu0 0.0
    %2914 = vmatpush1.msra.mxu0 0.0
    %2915 = vmatprep.subr.mxu0 0.0
    %2916 = vmatpush1.msra.mxu0 0.0
    %2917 = vmatprep.subr.mxu0 0.0
    %2918 = vmatpush1.msra.mxu0 0.0
    %2919 = vmatprep.subr.mxu0 0.0
    %2920 = vmatpush1.msra.mxu0 0.0
    %2921 = vmatprep.subr.mxu0 0.0
    %2922 = vmatpush1.msra.mxu0 0.0
    %2923 = vmatprep.subr.mxu0 0.0
    %2924 = vmatpush1.msra.mxu0 0.0
    %2925 = vmatprep.subr.mxu0 0.0
    %2926 = vmatpush1.msra.mxu0 0.0
    %2927 = vmatprep.subr.mxu0 0.0
    %2928 = vmatpush1.msra.mxu0 0.0
    %2929 = vmatprep.subr.mxu0 0.0
    %2930 = vmatpush1.msra.mxu0 0.0
    %2931 = vmatprep.subr.mxu0 0.0
    %2932 = vmatpush1.msra.mxu0 0.0
    %2933 = vmatprep.subr.mxu0 0.0
    %2934 = vmatpush1.msra.mxu0 0.0
    %2935 = vmatprep.subr.mxu0 0.0
    %2936 = vmatpush1.msra.mxu0 0.0
    %2937 = vmatprep.subr.mxu0 0.0
    %2938 = vmatpush1.msra.mxu0 0.0
    %2939 = vmatprep.subr.mxu0 0.0
    %2940 = vmatpush1.msra.mxu0 0.0
    %2941 = vmatprep.subr.mxu0 0.0
    %2942 = vmatpush1.msra.mxu0 0.0
    %2943 = vmatprep.subr.mxu0 0.0
    %2944 = vmatpush1.msra.mxu0 0.0
    %2945 = vmatprep.subr.mxu0 0.0
    %2946 = vmatpush1.msra.mxu0 0.0
    %2947 = vmatprep.subr.mxu0 0.0
    %2948 = vmatpush1.msra.mxu0 0.0
    %2949 = vmatprep.subr.mxu0 0.0
    %2950 = vmatpush1.msra.mxu0 0.0
    %2951 = vmatprep.subr.mxu0 0.0
    %2952 = vmatpush1.msra.mxu0 0.0
    %2953 = vmatprep.subr.mxu0 0.0
    %2954 = vmatpush1.msra.mxu0 0.0
    %2955 = vmatprep.subr.mxu0 0.0
    %2956 = vmatpush1.msra.mxu0 0.0
    %2957 = vmatprep.subr.mxu0 0.0
    %2958 = vmatpush1.msra.mxu0 0.0
    %2959 = vmatprep.subr.mxu0 0.0
    %2960 = vmatpush1.msra.mxu0 0.0
    %2961 = vmatprep.subr.mxu0 0.0
    %2962 = vmatpush1.msra.mxu0 0.0
    %2963 = vmatprep.subr.mxu0 0.0
    %2964 = vmatpush1.msra.mxu0 0.0
    %2965 = vmatprep.subr.mxu0 0.0
    %2966 = vmatpush1.msra.mxu0 0.0
    %2967 = vmatprep.subr.mxu0 0.0
    %2968 = vmatpush1.msra.mxu0 0.0
    %2969 = vmatprep.mubr.f32.mxu0 0.0
    %2970 = vmatmul.mubr.f32.gmra.mrb[0].mxu0 %v2903
    %v2971 = vpop.f32.mrb[0].mxu0
    %v2972 = vadd.f32 0.0, %v2971
    %v2973 = vpop.f32.mrb[0].mxu0
    %2974 = vdwg.mxu0
    %v2976 = vrot.slane %v2972, 4
    %v2978 = vadd.f32 %v2236, %v2976
    %v2979 = vxor.u32 %v2978, 2147483648
    %v2980 = vmul.f32 %v2979, 1.442695
    %v2981 = vpow.pop %v2980
    %v2982 = vadd.f32 %v2981, 1.0
    %v2983 = vrcp.pop %v2982
    %v2984 = vmul.f32 1.0, %v2983
    %v2985 = vtanh.pop %v2978
    %v2987 = vrot.slane %v2888, 6
    %v2989 = vmul.f32 %v2984, %v2987
    %2991 = vrot.lane.b32.xlu0 %v2985, 64
    %v2992 = vpop.permute.xlu0 %2991
    %v2994 = vmul.f32 %v2984, %v2992
    %2996 = vrot.lane.b32.xlu0 %v2994, 32
    %v2997 = vpop.permute.xlu0 %2996
    %v2999 = vadd.f32 %v2989, %v2997
    %v3000 = vtanh.pop %v2999
    %3002 = vrot.lane.b32.xlu0 %v3000, 64
    %v3003 = vpop.permute.xlu0 %3002
    %v3005 = vmul.f32 %v2984, %v3003
    %3007 = vrot.lane.b32.xlu0 %v3005, 32
    %v3008 = vpop.permute.xlu0 %3007
    %3010 = vst.msk [vmem:[#allocation3 + $0x8] sm:$0x30] %vm602, %v3008
    %v3011 = vrot.slane %v3005, 4
    %3012 = vrot.lane.b32.xlu0 %v3011, 32
    %v3013 = vpop.permute.xlu0 %3012
    %v3014 = vsel %vm274, %v3013, 0
    %3016 = vmatprep.subr.mxu0 0.0
    %3017 = vmatpush1.msra.mxu0 %v2239
    %3018 = vmatprep.subr.mxu0 0.0
    %3019 = vmatpush1.msra.mxu0 %v2240
    %3020 = vmatprep.subr.mxu0 0.0
    %3021 = vmatpush1.msra.mxu0 %v2241
    %3022 = vmatprep.subr.mxu0 0.0
    %3023 = vmatpush1.msra.mxu0 %v2242
    %3024 = vmatprep.subr.mxu0 0.0
    %3025 = vmatpush1.msra.mxu0 0.0
    %3026 = vmatprep.subr.mxu0 0.0
    %3027 = vmatpush1.msra.mxu0 0.0
    %3028 = vmatprep.subr.mxu0 0.0
    %3029 = vmatpush1.msra.mxu0 0.0
    %3030 = vmatprep.subr.mxu0 0.0
    %3031 = vmatpush1.msra.mxu0 0.0
    %3032 = vmatprep.subr.mxu0 0.0
    %3033 = vmatpush1.msra.mxu0 0.0
    %3034 = vmatprep.subr.mxu0 0.0
    %3035 = vmatpush1.msra.mxu0 0.0
    %3036 = vmatprep.subr.mxu0 0.0
    %3037 = vmatpush1.msra.mxu0 0.0
    %3038 = vmatprep.subr.mxu0 0.0
    %3039 = vmatpush1.msra.mxu0 0.0
    %3040 = vmatprep.subr.mxu0 0.0
    %3041 = vmatpush1.msra.mxu0 0.0
    %3042 = vmatprep.subr.mxu0 0.0
    %3043 = vmatpush1.msra.mxu0 0.0
    %3044 = vmatprep.subr.mxu0 0.0
    %3045 = vmatpush1.msra.mxu0 0.0
    %3046 = vmatprep.subr.mxu0 0.0
    %3047 = vmatpush1.msra.mxu0 0.0
    %3048 = vmatprep.subr.mxu0 0.0
    %3049 = vmatpush1.msra.mxu0 0.0
    %3050 = vmatprep.subr.mxu0 0.0
    %3051 = vmatpush1.msra.mxu0 0.0
    %3052 = vmatprep.subr.mxu0 0.0
    %3053 = vmatpush1.msra.mxu0 0.0
    %3054 = vmatprep.subr.mxu0 0.0
    %3055 = vmatpush1.msra.mxu0 0.0
    %3056 = vmatprep.subr.mxu0 0.0
    %3057 = vmatpush1.msra.mxu0 0.0
    %3058 = vmatprep.subr.mxu0 0.0
    %3059 = vmatpush1.msra.mxu0 0.0
    %3060 = vmatprep.subr.mxu0 0.0
    %3061 = vmatpush1.msra.mxu0 0.0
    %3062 = vmatprep.subr.mxu0 0.0
    %3063 = vmatpush1.msra.mxu0 0.0
    %3064 = vmatprep.subr.mxu0 0.0
    %3065 = vmatpush1.msra.mxu0 0.0
    %3066 = vmatprep.subr.mxu0 0.0
    %3067 = vmatpush1.msra.mxu0 0.0
    %3068 = vmatprep.subr.mxu0 0.0
    %3069 = vmatpush1.msra.mxu0 0.0
    %3070 = vmatprep.subr.mxu0 0.0
    %3071 = vmatpush1.msra.mxu0 0.0
    %3072 = vmatprep.subr.mxu0 0.0
    %3073 = vmatpush1.msra.mxu0 0.0
    %3074 = vmatprep.subr.mxu0 0.0
    %3075 = vmatpush1.msra.mxu0 0.0
    %3076 = vmatprep.subr.mxu0 0.0
    %3077 = vmatpush1.msra.mxu0 0.0
    %3078 = vmatprep.subr.mxu0 0.0
    %3079 = vmatpush1.msra.mxu0 0.0
    %3080 = vmatprep.mubr.f32.mxu0 0.0
    %3081 = vmatmul.mubr.f32.gmra.mrb[0].mxu0 %v3014
    %v3082 = vpop.f32.mrb[0].mxu0
    %v3083 = vadd.f32 0.0, %v3082
    %v3084 = vpop.f32.mrb[0].mxu0
    %3085 = vdwg.mxu0
    %v3087 = vrot.slane %v3083, 2
    %v3089 = vadd.f32 %v2236, %v3087
    %v3090 = vxor.u32 %v3089, 2147483648
    %v3091 = vmul.f32 %v3090, 1.442695
    %v3092 = vpow.pop %v3091
    %v3093 = vadd.f32 %v3092, 1.0
    %v3094 = vrcp.pop %v3093
    %v3095 = vmul.f32 1.0, %v3094
    %v3096 = vtanh.pop %v3089
    %v3098 = vrot.slane %v2999, 6
    %v3100 = vmul.f32 %v3095, %v3098
    %3102 = vrot.lane.b32.xlu0 %v3096, 64
    %v3103 = vpop.permute.xlu0 %3102
    %v3105 = vmul.f32 %v3095, %v3103
    %3107 = vrot.lane.b32.xlu0 %v3105, 32
    %v3108 = vpop.permute.xlu0 %3107
    %v3110 = vadd.f32 %v3100, %v3108
    %v3111 = vtanh.pop %v3110
    %3113 = vrot.lane.b32.xlu0 %v3111, 64
    %v3114 = vpop.permute.xlu0 %3113
    %v3116 = vmul.f32 %v3095, %v3114
    %3118 = vrot.lane.b32.xlu0 %v3116, 32
    %v3119 = vpop.permute.xlu0 %3118
    %3121 = vst.msk [vmem:[#allocation3 + $0x8] sm:$0xc0] %vm714, %v3119
    %s3122 = scalar_lea.vmem [#allocation24], 4
    %3123 = vst.msk [vmem:[%s3122 - $0x6] sm:$0xc0] %vm714, %v3119
    %3125 = vrot.lane.b32.xlu0 %v3110, 96
    %v3126 = vpop.permute.xlu0 %3125
    %s3128 = scalar_lea.vmem [#allocation26], 4
    %3129 = vst.msk [vmem:[%s3128 - $0x6] sm:$0xc0] %vm714, %v3126
    %v3130 = vld [vmem:[#allocation3] sm:$0xff]
    %v3131 = vld [vmem:[#allocation3 + $0x8] sm:$0xff]
    %v3132 = vld [vmem:[#allocation20] sm:$0xff]
    %v3133 = vld [vmem:[#allocation20 + $0x8] sm:$0xff]
    %v3134 = vld [vmem:[#allocation20 + $0x10] sm:$0xff]
    %v3135 = vld [vmem:[#allocation20 + $0x18] sm:$0xff]
    %v3136 = vld [vmem:[#allocation21] sm:$0x1]
    %v3138 = vlaneseq
    %v3139 = vshrl.u32 %v3138, 7
    %v3140 = vsub.s32 0, %v3139
    %v3141 = vrot.slane %v3136, %v3140
    %v3144 = vsel %vm274, %v3130, 0
    %v3147 = vsel %vm274, %v3131, 0
    %3149 = vmatprep.subr.mxu0 0.0
    %3150 = vmatpush1.msra.mxu0 %v3132
    %3151 = vmatprep.subr.mxu0 0.0
    %3152 = vmatpush1.msra.mxu0 %v3133
    %3153 = vmatprep.subr.mxu0 0.0
    %3154 = vmatpush1.msra.mxu0 %v3134
    %3155 = vmatprep.subr.mxu0 0.0
    %3156 = vmatpush1.msra.mxu0 %v3135
    %3157 = vmatprep.subr.mxu0 0.0
    %3158 = vmatpush1.msra.mxu0 0.0
    %3159 = vmatprep.subr.mxu0 0.0
    %3160 = vmatpush1.msra.mxu0 0.0
    %3161 = vmatprep.subr.mxu0 0.0
    %3162 = vmatpush1.msra.mxu0 0.0
    %3163 = vmatprep.subr.mxu0 0.0
    %3164 = vmatpush1.msra.mxu0 0.0
    %3165 = vmatprep.subr.mxu0 0.0
    %3166 = vmatpush1.msra.mxu0 0.0
    %3167 = vmatprep.subr.mxu0 0.0
    %3168 = vmatpush1.msra.mxu0 0.0
    %3169 = vmatprep.subr.mxu0 0.0
    %3170 = vmatpush1.msra.mxu0 0.0
    %3171 = vmatprep.subr.mxu0 0.0
    %3172 = vmatpush1.msra.mxu0 0.0
    %3173 = vmatprep.subr.mxu0 0.0
    %3174 = vmatpush1.msra.mxu0 0.0
    %3175 = vmatprep.subr.mxu0 0.0
    %3176 = vmatpush1.msra.mxu0 0.0
    %3177 = vmatprep.subr.mxu0 0.0
    %3178 = vmatpush1.msra.mxu0 0.0
    %3179 = vmatprep.subr.mxu0 0.0
    %3180 = vmatpush1.msra.mxu0 0.0
    %3181 = vmatprep.subr.mxu0 0.0
    %3182 = vmatpush1.msra.mxu0 0.0
    %3183 = vmatprep.subr.mxu0 0.0
    %3184 = vmatpush1.msra.mxu0 0.0
    %3185 = vmatprep.subr.mxu0 0.0
    %3186 = vmatpush1.msra.mxu0 0.0
    %3187 = vmatprep.subr.mxu0 0.0
    %3188 = vmatpush1.msra.mxu0 0.0
    %3189 = vmatprep.subr.mxu0 0.0
    %3190 = vmatpush1.msra.mxu0 0.0
    %3191 = vmatprep.subr.mxu0 0.0
    %3192 = vmatpush1.msra.mxu0 0.0
    %3193 = vmatprep.subr.mxu0 0.0
    %3194 = vmatpush1.msra.mxu0 0.0
    %3195 = vmatprep.subr.mxu0 0.0
    %3196 = vmatpush1.msra.mxu0 0.0
    %3197 = vmatprep.subr.mxu0 0.0
    %3198 = vmatpush1.msra.mxu0 0.0
    %3199 = vmatprep.subr.mxu0 0.0
    %3200 = vmatpush1.msra.mxu0 0.0
    %3201 = vmatprep.subr.mxu0 0.0
    %3202 = vmatpush1.msra.mxu0 0.0
    %3203 = vmatprep.subr.mxu0 0.0
    %3204 = vmatpush1.msra.mxu0 0.0
    %3205 = vmatprep.subr.mxu0 0.0
    %3206 = vmatpush1.msra.mxu0 0.0
    %3207 = vmatprep.subr.mxu0 0.0
    %3208 = vmatpush1.msra.mxu0 0.0
    %3209 = vmatprep.subr.mxu0 0.0
    %3210 = vmatpush1.msra.mxu0 0.0
    %3211 = vmatprep.subr.mxu0 0.0
    %3212 = vmatpush1.msra.mxu0 0.0
    %3213 = vmatprep.mubr.f32.mxu0 0.0
    %3214 = vmatmul.mubr.f32.gmra.mrb[0].mxu0 %v3144
    %v3215 = vpop.f32.mrb[0].mxu0
    %v3216 = vadd.f32 %v3141, %v3215
    %v3217 = vpop.f32.mrb[0].mxu0
    %3218 = vmatprep.mubr.f32.mxu0 0.0
    %3219 = vmatmul.mubr.f32.gmra.mrb[0].mxu0 %v3147
    %v3220 = vpop.f32.mrb[0].mxu0
    %v3221 = vadd.f32 %v3141, %v3220
    %v3222 = vpop.f32.mrb[0].mxu0
    %3223 = vdwg.mxu0
    %vm3224 = vcmask 523264
    %3225 = vst.msk [vmem:[#allocation23] sm:$0xff] %vm3224, %v3216
    %3226 = vst.msk [vmem:[#allocation23 + $0x8] sm:$0xff] %vm3224, %v3221
    // Predicated region
    $region102: #{my_lstm_forward.1} parent=1 // pred_check
      _
    $region103: #{my_lstm_forward.1} parent=1 // pred_check_branch
      %3228 = sbr.rel (0) target = $region105
    $region104: #{my_lstm_forward.1} parent=1 // pred_region
      %s3230 = ssub.s32 256, 256
      %3231 = vsyncadd [#allocation6], %s3230
      %s3232 = sshll.u32 [#allocation23], 4
      %s3233 = int_to_ptr.vmem [resolvable:$true] %s3232
      %3238 = dma.vmem_to_hbm [thread:$0]  %s3233, 256, %s14, [#allocation6], 128, 128, 8
    $region105: #{my_lstm_forward.1} parent=1 // pred_fallthru
      _
    // Predicated region
    $region106: #{my_lstm_forward.1} parent=1 // pred_check
      _
    $region107: #{my_lstm_forward.1} parent=1 // pred_check_branch
      %3240 = sbr.rel (0) target = $region109
    $region108: #{my_lstm_forward.1} parent=1 // pred_region
      %s3242 = ssub.s32 96, 96
      %3243 = vsyncadd [#allocation25], %s3242
      %s3244 = sshll.u32 [#allocation24], 4
      %s3245 = int_to_ptr.vmem [resolvable:$true] %s3244
      %3250 = dma.vmem_to_hbm [thread:$0]  %s3245, 96, %s15, [#allocation25], 32, 32, 2
    $region109: #{my_lstm_forward.1} parent=1 // pred_fallthru
      _
    // Predicated region
    $region110: #{my_lstm_forward.1} parent=1 // pred_check
      _
    $region111: #{my_lstm_forward.1} parent=1 // pred_check_branch
      %3252 = sbr.rel (0) target = $region113
    $region112: #{my_lstm_forward.1} parent=1 // pred_region
      %s3254 = ssub.s32 96, 96
      %3255 = vsyncadd [#allocation25], %s3254
      %s3256 = sshll.u32 [#allocation26], 4
      %s3257 = int_to_ptr.vmem [resolvable:$true] %s3256
      %3262 = dma.vmem_to_hbm [thread:$0]  %s3257, 96, %s16, [#allocation25], 32, 32, 2
    $region113: #{my_lstm_forward.1} parent=1 // pred_fallthru
      _
    // Predicated region
    $region114: #{my_lstm_forward.1} parent=1 // pred_check
      _
    $region115: #{my_lstm_forward.1} parent=1 // pred_check_branch
      %3264 = sbr.rel (0) target = $region117
    $region116: #{my_lstm_forward.1} parent=1 // pred_region
      %3265 = dma.done [#allocation6], 256
    $region117: #{my_lstm_forward.1} parent=1 // pred_fallthru
      _
    // Predicated region
    $region118: #{my_lstm_forward.1} parent=1 // pred_check
      _
    $region119: #{my_lstm_forward.1} parent=1 // pred_check_branch
      %3267 = sbr.rel (0) target = $region121
    $region120: #{my_lstm_forward.1} parent=1 // pred_region
      %3268 = dma.done [#allocation25], 96
    $region121: #{my_lstm_forward.1} parent=1 // pred_fallthru
      _
    // Predicated region
    $region122: #{my_lstm_forward.1} parent=1 // pred_check
      _
    $region123: #{my_lstm_forward.1} parent=1 // pred_check_branch
      %3270 = sbr.rel (0) target = $region125
    $region124: #{my_lstm_forward.1} parent=1 // pred_region
      %3271 = dma.done [#allocation25], 96
    $region125: #{my_lstm_forward.1} parent=1 // pred_fallthru
      _
    %3272 = vsyncpa [#allocation5], 1
    %3273 = vsyncpa [#allocation10], 1
    %3274 = vsyncpa [#allocation13], 1
    %3275 = vsyncpa [#allocation16], 1
    %3276 = vsyncpa [#allocation19], 1
    %3277 = vsyncpa [#allocation22], 1
    %3278 = vsyncpa [#allocation6], 1
    %3279 = vsyncpa [#allocation25], 1
    %3280 = vsyncpa [#allocation7], 1

</llo_original>
